<compile_context>
chip_gen: v7x
topology: tpu7x:2x2x1
jax: 0.10.0
libtpu: 0.0.40
codegen_flags: <defaults>
</compile_context>

<pallas_src>
import jax
import jax.numpy as jnp
from jax.experimental import pallas as pl
from jax.experimental.pallas import tpu as pltpu

EPS = 1e-5
LANE = 128


def _round_up(x, m):
    return (x + m - 1) // m * m


def _compiler_params(working_set_bytes):
    # Explicit VMEM limit (the scoped default bites before physical capacity), but
    # capped at 48 MiB so we leave compiler-scratch headroom under v7x's 64 MiB.
    limit = int(min(48 * 2**20, max(2 * working_set_bytes, 16 * 2**20)))
    return pltpu.CompilerParams(
        dimension_semantics=("parallel",),
        vmem_limit_bytes=limit,
    )


# ---------------------------------------------------------------------------
# Shared helper: 3x3 conv of a spatially padded [1, H+2, W+2, Cin] ref against a
# [9*Cin, Cout] weight slab as 3 accumulating K=3*Cin matmuls (per-dy 3-tap slab).
# ---------------------------------------------------------------------------
def _conv3x3_from_padded(src_ref, w_ref, slab_ref):
    _, hp2, wp2, cin = src_ref.shape
    h, w = hp2 - 2, wp2 - 2
    cout = w_ref.shape[-1]
    acc = jnp.zeros((h * w, cout), jnp.float32)
    for dy in range(3):
        # Pack the 3 taps of this kernel row side by side along the lane axis;
        # every destination slice is lane-aligned because cin % 128 == 0.
        for dx in range(3):
            slab_ref[:, :, :, dx * cin:(dx + 1) * cin] = (
                src_ref[:, dy:dy + h, dx:dx + w, :])
        acc = acc + jnp.dot(
            slab_ref[...].reshape(h * w, 3 * cin),
            w_ref[dy * 3 * cin:(dy + 1) * 3 * cin, :],
            preferred_element_type=jnp.float32)
    return acc


# ---------------------------------------------------------------------------
# Pass 1: conv1 (input already zero-padded) + per-image BN1 partial stats.
# ---------------------------------------------------------------------------
def _conv3x3_stats_kernel(xpad_ref, w_ref, y_ref, sum_ref, sqsum_ref, slab_ref):
    # xpad_ref: [1, H+2, W+2, Cin_p] bf16; w_ref: [9*Cin_p, Cout_p] bf16
    # y_ref:    [1, H, W, Cout_p] bf16 (raw conv output)
    # sum_ref / sqsum_ref: [1, 1, Cout_p] f32 per-image partial stats
    _, h, w, cout = y_ref.shape
    acc = _conv3x3_from_padded(xpad_ref, w_ref, slab_ref)
    y_ref[...] = acc.reshape(1, h, w, cout).astype(y_ref.dtype)
    sum_ref[...] = jnp.sum(acc, axis=0).reshape(1, 1, cout)
    sqsum_ref[...] = jnp.sum(acc * acc, axis=0).reshape(1, 1, cout)


def _conv1_call(xpad, w_slab, compute_dtype):
    b, hp2, wp2, cin_p = xpad.shape
    h, w = hp2 - 2, wp2 - 2
    cout_p = w_slab.shape[1]
    cd = jnp.dtype(compute_dtype).itemsize

    flops = 2 * b * h * w * (9 * cin_p) * cout_p
    bytes_accessed = (xpad.size * cd + w_slab.size * cd
                      + b * h * w * cout_p * cd + 2 * b * cout_p * 4)
    working_set = (2 * hp2 * wp2 * cin_p * cd       # double-buffered input block
                   + 2 * h * w * cout_p * cd        # double-buffered output block
                   + 9 * cin_p * cout_p * cd        # resident weight slab
                   + 2 * h * w * 3 * cin_p * cd     # 3-tap slab (+ possible reshape copy)
                   + 2 * h * w * cout_p * 4)        # f32 acc + temporaries

    grid_spec = pltpu.PrefetchScalarGridSpec(
        num_scalar_prefetch=0,
        grid=(b,),
        in_specs=[
            pl.BlockSpec((1, hp2, wp2, cin_p), lambda i: (i, 0, 0, 0)),
            pl.BlockSpec((9 * cin_p, cout_p), lambda i: (0, 0)),
        ],
        out_specs=(
            pl.BlockSpec((1, h, w, cout_p), lambda i: (i, 0, 0, 0)),
            pl.BlockSpec((1, 1, cout_p), lambda i: (i, 0, 0)),
            pl.BlockSpec((1, 1, cout_p), lambda i: (i, 0, 0)),
        ),
        scratch_shapes=[pltpu.VMEM((1, h, w, 3 * cin_p), compute_dtype)],
    )
    return pl.pallas_call(
        _conv3x3_stats_kernel,
        out_shape=(
            jax.ShapeDtypeStruct((b, h, w, cout_p), compute_dtype),
            jax.ShapeDtypeStruct((b, 1, cout_p), jnp.float32),
            jax.ShapeDtypeStruct((b, 1, cout_p), jnp.float32),
        ),
        grid_spec=grid_spec,
        compiler_params=_compiler_params(working_set),
        cost_estimate=pl.CostEstimate(flops=flops, transcendentals=0,
                                      bytes_accessed=int(bytes_accessed)),
    )(xpad, w_slab)


# ---------------------------------------------------------------------------
# Pass 2 (fused): BN1(scale/shift) + ReLU + time  ->  conv2 + BN2 partial stats.
# The normalized activation never leaves VMEM.
# ---------------------------------------------------------------------------
def _fused_bn_relu_time_conv_kernel(y1_ref, scale_ref, shift_ref, t_ref, w_ref,
                                    y2_ref, sum_ref, sqsum_ref, hpad_ref, slab_ref):
    # y1_ref: [1, H, W, C] bf16 raw conv1 output; scale/shift: [1, C] f32
    # t_ref:  [1, 1, C] f32 per-image time row; w_ref: [9*C, Cout_p] bf16
    # y2_ref: [1, H, W, Cout_p] bf16; sum/sqsum: [1, 1, Cout_p] f32
    # hpad_ref: VMEM [1, H+2, W+2, C] bf16; slab_ref: VMEM [1, H, W, 3*C] bf16
    _, h, w, c = y1_ref.shape
    cout = y2_ref.shape[-1]

    act = jnp.maximum(
        y1_ref[...].astype(jnp.float32) * scale_ref[...].reshape(1, 1, 1, c)
        + shift_ref[...].reshape(1, 1, 1, c), 0.0) + t_ref[...].reshape(1, 1, 1, c)

    # Zero-init the padded scratch (cheap at these tile sizes), then fill the interior.
    hpad_ref[...] = jnp.zeros_like(hpad_ref)
    hpad_ref[:, 1:h + 1, 1:w + 1, :] = act.astype(hpad_ref.dtype)

    acc = _conv3x3_from_padded(hpad_ref, w_ref, slab_ref)
    y2_ref[...] = acc.reshape(1, h, w, cout).astype(y2_ref.dtype)
    sum_ref[...] = jnp.sum(acc, axis=0).reshape(1, 1, cout)
    sqsum_ref[...] = jnp.sum(acc * acc, axis=0).reshape(1, 1, cout)


def _conv2_fused_call(y1, scale1, shift1, t, w_slab, compute_dtype):
    b, h, w, c = y1.shape
    cout_p = w_slab.shape[1]
    cd = jnp.dtype(compute_dtype).itemsize

    flops = 2 * b * h * w * (9 * c) * cout_p
    bytes_accessed = (y1.size * cd + w_slab.size * cd + b * h * w * cout_p * cd
                      + (2 * c + b * c + 2 * b * cout_p) * 4)
    working_set = (2 * h * w * c * cd                   # y1 block double-buffered
                   + 2 * h * w * cout_p * cd            # y2 block double-buffered
                   + 9 * c * cout_p * cd                # resident weight slab
                   + (h + 2) * (w + 2) * c * cd         # padded activation scratch
                   + 2 * h * w * 3 * c * cd             # 3-tap slab (+ reshape copy)
                   + h * w * c * 4                      # f32 activation temp
                   + 2 * h * w * cout_p * 4)            # f32 acc + temporaries

    grid_spec = pltpu.PrefetchScalarGridSpec(
        num_scalar_prefetch=0,
        grid=(b,),
        in_specs=[
            pl.BlockSpec((1, h, w, c), lambda i: (i, 0, 0, 0)),
            pl.BlockSpec((1, c), lambda i: (0, 0)),
            pl.BlockSpec((1, c), lambda i: (0, 0)),
            pl.BlockSpec((1, 1, c), lambda i: (i, 0, 0)),
            pl.BlockSpec((9 * c, cout_p), lambda i: (0, 0)),
        ],
        out_specs=(
            pl.BlockSpec((1, h, w, cout_p), lambda i: (i, 0, 0, 0)),
            pl.BlockSpec((1, 1, cout_p), lambda i: (i, 0, 0)),
            pl.BlockSpec((1, 1, cout_p), lambda i: (i, 0, 0)),
        ),
        scratch_shapes=[
            pltpu.VMEM((1, h + 2, w + 2, c), compute_dtype),
            pltpu.VMEM((1, h, w, 3 * c), compute_dtype),
        ],
    )
    return pl.pallas_call(
        _fused_bn_relu_time_conv_kernel,
        out_shape=(
            jax.ShapeDtypeStruct((b, h, w, cout_p), compute_dtype),
            jax.ShapeDtypeStruct((b, 1, cout_p), jnp.float32),
            jax.ShapeDtypeStruct((b, 1, cout_p), jnp.float32),
        ),
        grid_spec=grid_spec,
        compiler_params=_compiler_params(working_set),
        cost_estimate=pl.CostEstimate(flops=flops, transcendentals=0,
                                      bytes_accessed=int(bytes_accessed)),
    )(y1, scale1, shift1, t, w_slab)


# ---------------------------------------------------------------------------
# Pass 3: BN2(scale/shift) + residual + ReLU (projection / identity variants).
# ---------------------------------------------------------------------------
def _bn_res_relu_kernel(y2_ref, scale_ref, shift_ref, xpad_ref, wr_ref, br_ref, o_ref):
    # projection residual (1x1 conv): in_channels != out_channels
    _, h, w, cout = o_ref.shape
    cin = xpad_ref.shape[-1]
    x_int = xpad_ref[:, 1:h + 1, 1:w + 1, :].reshape(h * w, cin)
    res = jnp.dot(x_int, wr_ref[...], preferred_element_type=jnp.float32) + br_ref[...]
    o_ref[...] = jnp.maximum(
        y2_ref[...].astype(jnp.float32) * scale_ref[...].reshape(1, 1, 1, cout)
        + shift_ref[...].reshape(1, 1, 1, cout)
        + res.reshape(1, h, w, cout), 0.0)


def _bn_res_relu_id_kernel(y2_ref, scale_ref, shift_ref, xpad_ref, o_ref):
    # identity residual: in_channels == out_channels (no 1x1 matmul)
    _, h, w, cout = o_ref.shape
    x_int = xpad_ref[:, 1:h + 1, 1:w + 1, :].astype(jnp.float32)
    o_ref[...] = jnp.maximum(
        y2_ref[...].astype(jnp.float32) * scale_ref[...].reshape(1, 1, 1, cout)
        + shift_ref[...].reshape(1, 1, 1, cout) + x_int, 0.0)


# ---------------------------------------------------------------------------
# Wrapper: layout glue (NCHW <-> NHWC, lane padding), tiny XLA BN/time folds,
# and 3 per-image pallas_calls.
# ---------------------------------------------------------------------------
def resblock_forward(x_nchw, time_emb, params, *, compute_dtype=jnp.bfloat16):
    """x_nchw: [B, Cin, H, W], time_emb: [B, Temb] -> [B, Cout, H, W] (f32)."""
    B, Cin, H, W = x_nchw.shape
    Cout = params["conv1_w"].shape[0]
    Cin_p = _round_up(Cin, LANE)
    Cout_p = _round_up(Cout, LANE)
    cd = jnp.dtype(compute_dtype).itemsize

    # ---- layout glue: cast BEFORE the transpose, single fused pad (chan + spatial) ----
    x_nhwc = jnp.transpose(x_nchw.astype(compute_dtype), (0, 2, 3, 1))
    xpad = jnp.pad(x_nhwc, ((0, 0), (1, 1), (1, 1), (0, Cin_p - Cin)))

    def pad_row(v, n, fill=0.0):
        v = v.astype(jnp.float32).reshape(1, -1)
        return jnp.pad(v, ((0, 0), (0, n - v.shape[1])), constant_values=fill)

    def conv_w_slab(wt, cin, cin_p, cout, cout_p):
        # PyTorch OIHW -> HWIO -> zero-pad channels -> [9*cin_p, cout_p]
        wt = jnp.transpose(wt.astype(jnp.float32), (2, 3, 1, 0))
        wt = jnp.pad(wt, ((0, 0), (0, 0), (0, cin_p - cin), (0, cout_p - cout)))
        return wt.reshape(9 * cin_p, cout_p).astype(compute_dtype)

    # Conv biases are dropped: they are exactly cancelled by training-mode BN's mean
    # subtraction.  The residual 1x1 conv and time MLP biases are kept.
    w1 = conv_w_slab(params["conv1_w"], Cin, Cin_p, Cout, Cout_p)
    w2 = conv_w_slab(params["conv2_w"], Cout, Cout_p, Cout, Cout_p)

    # Time projection hoisted to XLA (tiny [B, Cout] matmul), one row per image.
    t = (time_emb.astype(jnp.float32) @ params["time_w"].astype(jnp.float32).T
         + params["time_b"].astype(jnp.float32))
    t = jnp.pad(t, ((0, 0), (0, Cout_p - Cout))).reshape(B, 1, Cout_p)

    inv_count = 1.0 / float(B * H * W)

    def finish_bn(s, q, gamma_name, beta_name):
        # Finish the tiny batch reduction + gamma/beta fold in plain XLA (hoisted out
        # of the per-image grid).  var = E[x^2] - E[x]^2 clamped at 0 (see NOTE above).
        g = pad_row(params[gamma_name], Cout_p, 1.0)
        be = pad_row(params[beta_name], Cout_p, 0.0)
        mean = jnp.sum(s, axis=0) * inv_count                    # [1, Cout_p]
        var = jnp.maximum(jnp.sum(q, axis=0) * inv_count - mean * mean, 0.0)
        scale = g * jax.lax.rsqrt(var + EPS)
        shift = be - mean * scale
        return scale, shift

    # ---- pass 1: conv1 (3 accumulating K=3*Cin_p matmuls) + BN1 partials (bf16 y1) ----
    y1, s1, q1 = _conv1_call(xpad, w1, compute_dtype)
    scale1, shift1 = finish_bn(s1, q1, "bn1_g", "bn1_b")

    # ---- pass 2: fused BN1 + ReLU + time -> conv2 + BN2 partials (no HBM h trip) -----
    y2, s2, q2 = _conv2_fused_call(y1, scale1, shift1, t, w2, compute_dtype)
    scale2, shift2 = finish_bn(s2, q2, "bn2_g", "bn2_b")

    # ---- pass 3: BN2 + residual + ReLU ------------------------------------------------
    img_out = pl.BlockSpec((1, H, W, Cout_p), lambda i: (i, 0, 0, 0))
    row_spec = pl.BlockSpec((1, Cout_p), lambda i: (0, 0))
    xpad_spec = pl.BlockSpec((1, H + 2, W + 2, Cin_p), lambda i: (i, 0, 0, 0))
    elem_ws = (2 * H * W * Cout_p * (cd + 4)
               + 2 * (H + 2) * (W + 2) * Cin_p * cd
               + Cin_p * Cout_p * cd + 2 * H * W * Cout_p * 4)
    elem_bytes = (B * H * W * (Cout_p * cd + Cout_p * 4)
                  + B * (H + 2) * (W + 2) * Cin_p * cd + 4 * Cout_p * 4)

    if Cin != Cout:
        wr = jnp.pad(
            jnp.transpose(params["res_w"][:, :, 0, 0].astype(jnp.float32), (1, 0)),
            ((0, Cin_p - Cin), (0, Cout_p - Cout))).astype(compute_dtype)
        br = pad_row(params["res_b"], Cout_p)
        out_nhwc = pl.pallas_call(
            _bn_res_relu_kernel,
            out_shape=jax.ShapeDtypeStruct((B, H, W, Cout_p), jnp.float32),
            grid_spec=pltpu.PrefetchScalarGridSpec(
                num_scalar_prefetch=0,
                grid=(B,),
                in_specs=[img_out, row_spec, row_spec, xpad_spec,
                          pl.BlockSpec((Cin_p, Cout_p), lambda i: (0, 0)), row_spec],
                out_specs=pl.BlockSpec((1, H, W, Cout_p), lambda i: (i, 0, 0, 0)),
            ),
            compiler_params=_compiler_params(elem_ws),
            cost_estimate=pl.CostEstimate(flops=2 * B * H * W * Cin_p * Cout_p,
                                          transcendentals=0,
                                          bytes_accessed=int(elem_bytes)),
        )(y2, scale2, shift2, xpad, wr, br)
    else:
        out_nhwc = pl.pallas_call(
            _bn_res_relu_id_kernel,
            out_shape=jax.ShapeDtypeStruct((B, H, W, Cout_p), jnp.float32),
            grid_spec=pltpu.PrefetchScalarGridSpec(
                num_scalar_prefetch=0,
                grid=(B,),
                in_specs=[img_out, row_spec, row_spec, xpad_spec],
                out_specs=pl.BlockSpec((1, H, W, Cout_p), lambda i: (i, 0, 0, 0)),
            ),
            compiler_params=_compiler_params(elem_ws),
            cost_estimate=pl.CostEstimate(flops=3 * B * H * W * Cout_p,
                                          transcendentals=0,
                                          bytes_accessed=int(elem_bytes)),
        )(y2, scale2, shift2, xpad)

    out = out_nhwc[..., :Cout]                 # drop lane padding
    return jnp.transpose(out, (0, 3, 1, 2))    # back to NCHW


# ---------------------------------------------------------------------------
# Pure-JAX (XLA) reference in f32 — exact PyTorch forward semantics.
# ---------------------------------------------------------------------------
def _reference_forward(x, time_emb, params):
    cout, cin = params["conv1_w"].shape[0], params["conv1_w"].shape[1]

    def conv(xx, w, b, pad):
        y = jax.lax.conv_general_dilated(
            xx, w, window_strides=(1, 1), padding=((pad, pad), (pad, pad)),
            dimension_numbers=("NCHW", "OIHW", "NCHW"))
        return y + b[None, :, None, None]

    def bn(xx, g, b):
        m = jnp.mean(xx, axis=(0, 2, 3), keepdims=True)
        v = jnp.mean((xx - m) ** 2, axis=(0, 2, 3), keepdims=True)
        return ((xx - m) * jax.lax.rsqrt(v + EPS) * g[None, :, None, None]
                + b[None, :, None, None])

    residual = conv(x, params["res_w"], params["res_b"], 0) if cin != cout else x
    h = jax.nn.relu(bn(conv(x, params["conv1_w"], params["conv1_b"], 1),
                       params["bn1_g"], params["bn1_b"]))
    t = time_emb @ params["time_w"].T + params["time_b"]
    h = h + t[:, :, None, None]
    h = bn(conv(h, params["conv2_w"], params["conv2_b"], 1),
           params["bn2_g"], params["bn2_b"])
    return jax.nn.relu(h + residual)


def make_params(key, in_channels, out_channels, time_emb_dim):
    ks = jax.random.split(key, 8)
    s = 0.1
    return {
        "conv1_w": s * jax.random.normal(ks[0], (out_channels, in_channels, 3, 3), jnp.float32),
        "conv1_b": s * jax.random.normal(ks[1], (out_channels,), jnp.float32),
        "bn1_g": jnp.ones((out_channels,), jnp.float32),
        "bn1_b": jnp.zeros((out_channels,), jnp.float32),
        "time_w": s * jax.random.normal(ks[2], (out_channels, time_emb_dim), jnp.float32),
        "time_b": s * jax.random.normal(ks[3], (out_channels,), jnp.float32),
        "conv2_w": s * jax.random.normal(ks[4], (out_channels, out_channels, 3, 3), jnp.float32),
        "conv2_b": s * jax.random.normal(ks[5], (out_channels,), jnp.float32),
        "bn2_g": jnp.ones((out_channels,), jnp.float32),
        "bn2_b": jnp.zeros((out_channels,), jnp.float32),
        "res_w": s * jax.random.normal(ks[6], (out_channels, in_channels, 1, 1), jnp.float32),
        "res_b": s * jax.random.normal(ks[7], (out_channels,), jnp.float32),
    }


if __name__ == "__main__":
    B, Cin, Cout, H, W, Temb = 2, 4, 8, 16, 16, 32

    key = jax.random.PRNGKey(0)
    kx, kt, kp = jax.random.split(key, 3)
    x = jax.random.normal(kx, (B, Cin, H, W), jnp.float32)
    time_emb = jax.random.normal(kt, (B, Temb), jnp.float32)
    params = make_params(kp, Cin, Cout, Temb)

    # projection-residual path (Cin != Cout)
    out = jax.block_until_ready(resblock_forward(x, time_emb, params))
    assert out.shape == (B, Cout, H, W)
    ref = _reference_forward(x, time_emb, params)
    err = float(jnp.max(jnp.abs(out - ref)))
    assert err < 0.25, f"mismatch vs reference (proj path): {err}"

    # identity-residual path (Cin == Cout)
    params_id = make_params(jax.random.PRNGKey(1), Cout, Cout, Temb)
    x_id = jax.random.normal(jax.random.PRNGKey(2), (B, Cout, H, W), jnp.float32)
    out_id = jax.block_until_ready(resblock_forward(x_id, time_emb, params_id))
    assert out_id.shape == (B, Cout, H, W)
    ref_id = _reference_forward(x_id, time_emb, params_id)
    err_id = float(jnp.max(jnp.abs(out_id - ref_id)))
    assert err_id < 0.25, f"mismatch vs reference (identity path): {err_id}"

    print("KERNEL_OK")
</pallas_src>

<mosaic_0001>
module attributes {stable_mosaic.version = 11 : i64} {
  func.func @_conv3x3_stats_kernel(%arg0: i32, %arg1: memref<1x18x18x128xbf16, #tpu.memory_space<vmem>>, %arg2: memref<1152x128xbf16, #tpu.memory_space<vmem>>, %arg3: memref<1x16x16x128xbf16, #tpu.memory_space<vmem>>, %arg4: memref<1x1x128xf32, #tpu.memory_space<vmem>>, %arg5: memref<1x1x128xf32, #tpu.memory_space<vmem>>, %arg6: memref<1x16x16x384xbf16, #tpu.memory_space<vmem>>) attributes {dimension_semantics = [#tpu.dimension_semantics<parallel>], iteration_bounds = array<i64: 2>, scalar_prefetch = 0 : i64, scratch_operands = 1 : i64, tpu.core_type = #tpu.core_type<tc>, window_params = [{transform_indices = @transform_0, window_bounds = array<i64: 1, 18, 18, 128>}, {pipeline_mode = #tpu.pipeline_mode<synchronous>, transform_indices = @transform_1, window_bounds = array<i64: 1152, 128>}, {transform_indices = @transform_2, window_bounds = array<i64: 1, 16, 16, 128>}, {transform_indices = @transform_3, window_bounds = array<i64: 1, 1, 128>}, {transform_indices = @transform_4, window_bounds = array<i64: 1, 1, 128>}]} {
    %cst = arith.constant 0.000000e+00 : f32
    %0 = vector.broadcast %cst : f32 to vector<256x128xf32>
    %c0 = arith.constant 0 : index
    %c0_0 = arith.constant 0 : index
    %c0_1 = arith.constant 0 : index
    %c0_2 = arith.constant 0 : index
    %1 = vector.load %arg1[%c0, %c0_0, %c0_1, %c0_2] : memref<1x18x18x128xbf16, #tpu.memory_space<vmem>>, vector<1x16x16x128xbf16>
    %c0_3 = arith.constant 0 : index
    %c0_4 = arith.constant 0 : index
    %c0_5 = arith.constant 0 : index
    %c0_6 = arith.constant 0 : index
    %2 = vector.load %arg6[%c0_3, %c0_4, %c0_5, %c0_6] : memref<1x16x16x384xbf16, #tpu.memory_space<vmem>>, vector<1x16x16x128xbf16>
    tpu.vector_store %arg6[%c0_3, %c0_4, %c0_5, %c0_6], %1 {strides = array<i32>} : memref<1x16x16x384xbf16, #tpu.memory_space<vmem>>, vector<1x16x16x128xbf16>,
    %c0_7 = arith.constant 0 : index
    %c0_8 = arith.constant 0 : index
    %c1 = arith.constant 1 : index
    %c0_9 = arith.constant 0 : index
    %3 = vector.load %arg1[%c0_7, %c0_8, %c1, %c0_9] : memref<1x18x18x128xbf16, #tpu.memory_space<vmem>>, vector<1x16x16x128xbf16>
    %c0_10 = arith.constant 0 : index
    %c0_11 = arith.constant 0 : index
    %c0_12 = arith.constant 0 : index
    %c128 = arith.constant 128 : index
    %4 = vector.load %arg6[%c0_10, %c0_11, %c0_12, %c128] : memref<1x16x16x384xbf16, #tpu.memory_space<vmem>>, vector<1x16x16x128xbf16>
    tpu.vector_store %arg6[%c0_10, %c0_11, %c0_12, %c128], %3 {strides = array<i32>} : memref<1x16x16x384xbf16, #tpu.memory_space<vmem>>, vector<1x16x16x128xbf16>,
    %c0_13 = arith.constant 0 : index
    %c0_14 = arith.constant 0 : index
    %c2 = arith.constant 2 : index
    %c0_15 = arith.constant 0 : index
    %5 = vector.load %arg1[%c0_13, %c0_14, %c2, %c0_15] : memref<1x18x18x128xbf16, #tpu.memory_space<vmem>>, vector<1x16x16x128xbf16>
    %c0_16 = arith.constant 0 : index
    %c0_17 = arith.constant 0 : index
    %c0_18 = arith.constant 0 : index
    %c256 = arith.constant 256 : index
    %6 = vector.load %arg6[%c0_16, %c0_17, %c0_18, %c256] : memref<1x16x16x384xbf16, #tpu.memory_space<vmem>>, vector<1x16x16x128xbf16>
    tpu.vector_store %arg6[%c0_16, %c0_17, %c0_18, %c256], %5 {strides = array<i32>} : memref<1x16x16x384xbf16, #tpu.memory_space<vmem>>, vector<1x16x16x128xbf16>,
    %c0_19 = arith.constant 0 : index
    %c0_20 = arith.constant 0 : index
    %c0_21 = arith.constant 0 : index
    %c0_22 = arith.constant 0 : index
    %7 = vector.load %arg6[%c0_19, %c0_20, %c0_21, %c0_22] : memref<1x16x16x384xbf16, #tpu.memory_space<vmem>>, vector<1x16x16x384xbf16>
    %8 = vector.shape_cast %7 : vector<1x16x16x384xbf16> to vector<256x384xbf16>
    %c0_23 = arith.constant 0 : index
    %c0_24 = arith.constant 0 : index
    %9 = vector.load %arg2[%c0_23, %c0_24] : memref<1152x128xbf16, #tpu.memory_space<vmem>>, vector<384x128xbf16>
    %cst_25 = arith.constant dense<0.000000e+00> : vector<256x128xf32>
    %10 = tpu.matmul %8, %9, %cst_25 {dimension_numbers = #tpu.dot_dimension_numbers<[1], [0], [0], [1], [0, 0, 1, 1], [], []>} : vector<256x384xbf16>, vector<384x128xbf16>, vector<256x128xf32> -> vector<256x128xf32>
    %11 = arith.addf %0, %10 : vector<256x128xf32>
    %c0_26 = arith.constant 0 : index
    %c1_27 = arith.constant 1 : index
    %c0_28 = arith.constant 0 : index
    %c0_29 = arith.constant 0 : index
    %12 = vector.load %arg1[%c0_26, %c1_27, %c0_28, %c0_29] : memref<1x18x18x128xbf16, #tpu.memory_space<vmem>>, vector<1x16x16x128xbf16>
    %c0_30 = arith.constant 0 : index
    %c0_31 = arith.constant 0 : index
    %c0_32 = arith.constant 0 : index
    %c0_33 = arith.constant 0 : index
    %13 = vector.load %arg6[%c0_30, %c0_31, %c0_32, %c0_33] : memref<1x16x16x384xbf16, #tpu.memory_space<vmem>>, vector<1x16x16x128xbf16>
    tpu.vector_store %arg6[%c0_30, %c0_31, %c0_32, %c0_33], %12 {strides = array<i32>} : memref<1x16x16x384xbf16, #tpu.memory_space<vmem>>, vector<1x16x16x128xbf16>,
    %c0_34 = arith.constant 0 : index
    %c1_35 = arith.constant 1 : index
    %c1_36 = arith.constant 1 : index
    %c0_37 = arith.constant 0 : index
    %14 = vector.load %arg1[%c0_34, %c1_35, %c1_36, %c0_37] : memref<1x18x18x128xbf16, #tpu.memory_space<vmem>>, vector<1x16x16x128xbf16>
    %c0_38 = arith.constant 0 : index
    %c0_39 = arith.constant 0 : index
    %c0_40 = arith.constant 0 : index
    %c128_41 = arith.constant 128 : index
    %15 = vector.load %arg6[%c0_38, %c0_39, %c0_40, %c128_41] : memref<1x16x16x384xbf16, #tpu.memory_space<vmem>>, vector<1x16x16x128xbf16>
    tpu.vector_store %arg6[%c0_38, %c0_39, %c0_40, %c128_41], %14 {strides = array<i32>} : memref<1x16x16x384xbf16, #tpu.memory_space<vmem>>, vector<1x16x16x128xbf16>,
    %c0_42 = arith.constant 0 : index
    %c1_43 = arith.constant 1 : index
    %c2_44 = arith.constant 2 : index
    %c0_45 = arith.constant 0 : index
    %16 = vector.load %arg1[%c0_42, %c1_43, %c2_44, %c0_45] : memref<1x18x18x128xbf16, #tpu.memory_space<vmem>>, vector<1x16x16x128xbf16>
    %c0_46 = arith.constant 0 : index
    %c0_47 = arith.constant 0 : index
    %c0_48 = arith.constant 0 : index
    %c256_49 = arith.constant 256 : index
    %17 = vector.load %arg6[%c0_46, %c0_47, %c0_48, %c256_49] : memref<1x16x16x384xbf16, #tpu.memory_space<vmem>>, vector<1x16x16x128xbf16>
    tpu.vector_store %arg6[%c0_46, %c0_47, %c0_48, %c256_49], %16 {strides = array<i32>} : memref<1x16x16x384xbf16, #tpu.memory_space<vmem>>, vector<1x16x16x128xbf16>,
    %c0_50 = arith.constant 0 : index
    %c0_51 = arith.constant 0 : index
    %c0_52 = arith.constant 0 : index
    %c0_53 = arith.constant 0 : index
    %18 = vector.load %arg6[%c0_50, %c0_51, %c0_52, %c0_53] : memref<1x16x16x384xbf16, #tpu.memory_space<vmem>>, vector<1x16x16x384xbf16>
    %19 = vector.shape_cast %18 : vector<1x16x16x384xbf16> to vector<256x384xbf16>
    %c384 = arith.constant 384 : index
    %c0_54 = arith.constant 0 : index
    %20 = vector.load %arg2[%c384, %c0_54] : memref<1152x128xbf16, #tpu.memory_space<vmem>>, vector<384x128xbf16>
    %cst_55 = arith.constant dense<0.000000e+00> : vector<256x128xf32>
    %21 = tpu.matmul %19, %20, %cst_55 {dimension_numbers = #tpu.dot_dimension_numbers<[1], [0], [0], [1], [0, 0, 1, 1], [], []>} : vector<256x384xbf16>, vector<384x128xbf16>, vector<256x128xf32> -> vector<256x128xf32>
    %22 = arith.addf %11, %21 : vector<256x128xf32>
    %c0_56 = arith.constant 0 : index
    %c2_57 = arith.constant 2 : index
    %c0_58 = arith.constant 0 : index
    %c0_59 = arith.constant 0 : index
    %23 = vector.load %arg1[%c0_56, %c2_57, %c0_58, %c0_59] : memref<1x18x18x128xbf16, #tpu.memory_space<vmem>>, vector<1x16x16x128xbf16>
    %c0_60 = arith.constant 0 : index
    %c0_61 = arith.constant 0 : index
    %c0_62 = arith.constant 0 : index
    %c0_63 = arith.constant 0 : index
    %24 = vector.load %arg6[%c0_60, %c0_61, %c0_62, %c0_63] : memref<1x16x16x384xbf16, #tpu.memory_space<vmem>>, vector<1x16x16x128xbf16>
    tpu.vector_store %arg6[%c0_60, %c0_61, %c0_62, %c0_63], %23 {strides = array<i32>} : memref<1x16x16x384xbf16, #tpu.memory_space<vmem>>, vector<1x16x16x128xbf16>,
    %c0_64 = arith.constant 0 : index
    %c2_65 = arith.constant 2 : index
    %c1_66 = arith.constant 1 : index
    %c0_67 = arith.constant 0 : index
    %25 = vector.load %arg1[%c0_64, %c2_65, %c1_66, %c0_67] : memref<1x18x18x128xbf16, #tpu.memory_space<vmem>>, vector<1x16x16x128xbf16>
    %c0_68 = arith.constant 0 : index
    %c0_69 = arith.constant 0 : index
    %c0_70 = arith.constant 0 : index
    %c128_71 = arith.constant 128 : index
    %26 = vector.load %arg6[%c0_68, %c0_69, %c0_70, %c128_71] : memref<1x16x16x384xbf16, #tpu.memory_space<vmem>>, vector<1x16x16x128xbf16>
    tpu.vector_store %arg6[%c0_68, %c0_69, %c0_70, %c128_71], %25 {strides = array<i32>} : memref<1x16x16x384xbf16, #tpu.memory_space<vmem>>, vector<1x16x16x128xbf16>,
    %c0_72 = arith.constant 0 : index
    %c2_73 = arith.constant 2 : index
    %c2_74 = arith.constant 2 : index
    %c0_75 = arith.constant 0 : index
    %27 = vector.load %arg1[%c0_72, %c2_73, %c2_74, %c0_75] : memref<1x18x18x128xbf16, #tpu.memory_space<vmem>>, vector<1x16x16x128xbf16>
    %c0_76 = arith.constant 0 : index
    %c0_77 = arith.constant 0 : index
    %c0_78 = arith.constant 0 : index
    %c256_79 = arith.constant 256 : index
    %28 = vector.load %arg6[%c0_76, %c0_77, %c0_78, %c256_79] : memref<1x16x16x384xbf16, #tpu.memory_space<vmem>>, vector<1x16x16x128xbf16>
    tpu.vector_store %arg6[%c0_76, %c0_77, %c0_78, %c256_79], %27 {strides = array<i32>} : memref<1x16x16x384xbf16, #tpu.memory_space<vmem>>, vector<1x16x16x128xbf16>,
    %c0_80 = arith.constant 0 : index
    %c0_81 = arith.constant 0 : index
    %c0_82 = arith.constant 0 : index
    %c0_83 = arith.constant 0 : index
    %29 = vector.load %arg6[%c0_80, %c0_81, %c0_82, %c0_83] : memref<1x16x16x384xbf16, #tpu.memory_space<vmem>>, vector<1x16x16x384xbf16>
    %30 = vector.shape_cast %29 : vector<1x16x16x384xbf16> to vector<256x384xbf16>
    %c768 = arith.constant 768 : index
    %c0_84 = arith.constant 0 : index
    %31 = vector.load %arg2[%c768, %c0_84] : memref<1152x128xbf16, #tpu.memory_space<vmem>>, vector<384x128xbf16>
    %cst_85 = arith.constant dense<0.000000e+00> : vector<256x128xf32>
    %32 = tpu.matmul %30, %31, %cst_85 {dimension_numbers = #tpu.dot_dimension_numbers<[1], [0], [0], [1], [0, 0, 1, 1], [], []>} : vector<256x384xbf16>, vector<384x128xbf16>, vector<256x128xf32> -> vector<256x128xf32>
    %33 = arith.addf %22, %32 : vector<256x128xf32>
    %34 = vector.shape_cast %33 : vector<256x128xf32> to vector<1x16x16x128xf32>
    %35 = arith.truncf %34 : vector<1x16x16x128xf32> to vector<1x16x16x128xbf16>
    %c0_86 = arith.constant 0 : index
    %c0_87 = arith.constant 0 : index
    %c0_88 = arith.constant 0 : index
    %c0_89 = arith.constant 0 : index
    %36 = vector.load %arg3[%c0_86, %c0_87, %c0_88, %c0_89] : memref<1x16x16x128xbf16, #tpu.memory_space<vmem>>, vector<1x16x16x128xbf16>
    tpu.vector_store %arg3[%c0_86, %c0_87, %c0_88, %c0_89], %35 {strides = array<i32>} : memref<1x16x16x128xbf16, #tpu.memory_space<vmem>>, vector<1x16x16x128xbf16>,
    %cst_90 = arith.constant dense<0.000000e+00> : vector<128xf32>
    %37 = vector.multi_reduction <add>, %33, %cst_90 [0] : vector<256x128xf32> to vector<128xf32>
    %38 = vector.shape_cast %37 : vector<128xf32> to vector<1x1x128xf32>
    %c0_91 = arith.constant 0 : index
    %c0_92 = arith.constant 0 : index
    %c0_93 = arith.constant 0 : index
    %39 = vector.load %arg4[%c0_91, %c0_92, %c0_93] : memref<1x1x128xf32, #tpu.memory_space<vmem>>, vector<1x1x128xf32>
    tpu.vector_store %arg4[%c0_91, %c0_92, %c0_93], %38 {strides = array<i32>} : memref<1x1x128xf32, #tpu.memory_space<vmem>>, vector<1x1x128xf32>,
    %40 = arith.mulf %33, %33 : vector<256x128xf32>
    %cst_94 = arith.constant dense<0.000000e+00> : vector<128xf32>
    %41 = vector.multi_reduction <add>, %40, %cst_94 [0] : vector<256x128xf32> to vector<128xf32>
    %42 = vector.shape_cast %41 : vector<128xf32> to vector<1x1x128xf32>
    %c0_95 = arith.constant 0 : index
    %c0_96 = arith.constant 0 : index
    %c0_97 = arith.constant 0 : index
    %43 = vector.load %arg5[%c0_95, %c0_96, %c0_97] : memref<1x1x128xf32, #tpu.memory_space<vmem>>, vector<1x1x128xf32>
    tpu.vector_store %arg5[%c0_95, %c0_96, %c0_97], %42 {strides = array<i32>} : memref<1x1x128xf32, #tpu.memory_space<vmem>>, vector<1x1x128xf32>,
    return
  }
  func.func @transform_0(%arg0: i32) -> (i32, i32, i32, i32) {
    %c0_i32 = arith.constant 0 : i32
    %c0_i32_0 = arith.constant 0 : i32
    %c0_i32_1 = arith.constant 0 : i32
    %c0_i32_2 = arith.constant 0 : i32
    return %arg0, %c0_i32, %c0_i32_0, %c0_i32_1 : i32, i32, i32, i32
  }
  func.func @transform_1(%arg0: i32) -> (i32, i32) {
    %c0_i32 = arith.constant 0 : i32
    %c0_i32_0 = arith.constant 0 : i32
    %c0_i32_1 = arith.constant 0 : i32
    return %c0_i32, %c0_i32_0 : i32, i32
  }
  func.func @transform_2(%arg0: i32) -> (i32, i32, i32, i32) {
    %c0_i32 = arith.constant 0 : i32
    %c0_i32_0 = arith.constant 0 : i32
    %c0_i32_1 = arith.constant 0 : i32
    %c0_i32_2 = arith.constant 0 : i32
    return %arg0, %c0_i32, %c0_i32_0, %c0_i32_1 : i32, i32, i32, i32
  }
  func.func @transform_3(%arg0: i32) -> (i32, i32, i32) {
    %c0_i32 = arith.constant 0 : i32
    %c0_i32_0 = arith.constant 0 : i32
    %c0_i32_1 = arith.constant 0 : i32
    return %arg0, %c0_i32, %c0_i32_0 : i32, i32, i32
  }
  func.func @transform_4(%arg0: i32) -> (i32, i32, i32) {
    %c0_i32 = arith.constant 0 : i32
    %c0_i32_0 = arith.constant 0 : i32
    %c0_i32_1 = arith.constant 0 : i32
    return %arg0, %c0_i32, %c0_i32_0 : i32, i32, i32
  }
}

</mosaic_0001>

<llo_original>
// kernel: tpu_custom_call.1
$region0: #{tpu_custom_call.1}
  #allocation0 [shape = 'u32[]', space=smem, size = 0x4, offset = 0x4, fixed_abs, tag = 'smem constant byte address 0x4 - core index']
  #allocation1 [shape = 'u32[144,128]{1,0:T(1,128)}', space=vmem, size = 0x12000, scoped, tag = 'internal scratch']
  #allocation2 [shape = 'bf16[1,16,16,384]{3,2,1,0:T(16,128)(2,1)}', space=vmem, size = 0x30000, scoped, tag = 'scratch operand']
  %s0 = inlined_call_operand.vmem [shape: bf16[2,18,18,128], index: 0, kind: input, shape index: {}]
  %s1 = inlined_call_operand.vmem [shape: bf16[1152,128], index: 1, kind: input, shape index: {}]
  %s2 = inlined_call_operand.hbm [shape: bf16[2,16,16,128], index: 2, kind: output, shape index: {0}]
  %s3 = inlined_call_operand.hbm [shape: f32[2,1,128], index: 3, kind: output, shape index: {1}]
  %s4 = inlined_call_operand.hbm [shape: f32[2,1,128], index: 4, kind: output, shape index: {2}]
  %5 = xla_tuple %s2, %s3, %s4
  %s6 = sld [smem:[#allocation0]]
  $region57: #{tpu_custom_call.1} parent=0
    _
  %s8 = ssub.s32 1, %s6
  %s9 = scalar_select 0, %s8, %s6
  $region1: #{tpu_custom_call.1} parent=0
    #allocation3 [shape = 'u8[131072]{0}', space=vmem, size = 0x20000, scoped, tag = 'output window, operand 0']
    #allocation4 [shape = 's32[2]{0}', space=sflag, size = 0x8, scoped, tag = 'scoped memory for tpu_custom_call.1']
    #allocation5 [shape = 'u8[1024]{0}', space=vmem, size = 0x400, scoped, tag = 'output window, operand 1']
    #allocation6 [shape = 's32[2]{0}', space=sflag, size = 0x8, scoped, tag = 'scoped memory for tpu_custom_call.1']
    #allocation7 [shape = 'u8[1024]{0}', space=vmem, size = 0x400, scoped, tag = 'output window, operand 2']
    %10 = vsyncpa [#allocation4], 0
    %s11 = scalar_lea.sflag [#allocation4], 1
    %12 = vsyncpa %s11, 0
    %13 = vsyncpa [#allocation6], 0
    %s14 = scalar_lea.sflag [#allocation6], 1
    %15 = vsyncpa %s14, 0
    loop: start=0, step=1, limit=4
    $region2: #{tpu_custom_call.1} parent=1 // loop_pre_header
      _
    $region3: #{tpu_custom_call.1} parent=1 // loop_header
      %s17 = sphi 0, %s21
      %p18 = scmp.ge.s32.totalorder %s17, 4
      %s27 = sphi 0, %s29
      %s30 = sphi 0, %s27
      %s31 = sphi 0, %s30
      %s47 = sphi 0, %s31
      %s51 = sphi 0, %s51
      %s53 = sphi 0, %s51
      %s54 = sphi 0, %s53
      %s68 = sphi 0, %s54
      %s74 = sphi 0, %s76
      %s77 = sphi 0, %s74
      %s78 = sphi 0, %s77
      %s94 = sphi 0, %s78
      %s100 = sphi 0, %s102
      %s103 = sphi 0, %s100
      %s104 = sphi 0, %s103
      %s120 = sphi 0, %s104
      %s126 = sphi 0, %s128
      %s129 = sphi 0, %s126
      %s130 = sphi 0, %s129
      %s146 = sphi 0, %s130
    $region4: #{tpu_custom_call.1} parent=1 // loop_header_branch
      %20 = sbr.rel (%p18) target = $region8
    $region5: #{tpu_custom_call.1} parent=1 // loop_body
      %s22 = ssub.s32 %s17, 1
      %s23 = ssub.s32 %s17, 2
      %s24 = sadd.s32 %s17, 1
      %s25 = ssub.s32 %s17, %s24
      %p26 = scmp.eq.s32.totalorder %s25, 0
      %s28 = sadd.s32 %s27, 1
      %s29 = scalar_select %p26, %s27, %s28
      %p32 = pneg %p26
      %p33 = scmp.eq.s32.totalorder %s17, 1
      %p34 = por %p32, %p33
      %p35 = scmp.ne.s32.totalorder %s27, %s30
      %p36 = scmp.eq.s32.totalorder %s17, 0
      %p37 = por %p35, %p36
      %p38 = scmp.ne.s32.totalorder %s27, %s30
      %p39 = scmp.eq.s32.totalorder %s22, 1
      %p40 = por %p38, %p39
      %p41 = scmp.ne.s32.totalorder %s30, %s31
      %p42 = scmp.eq.s32.totalorder %s22, 0
      %p43 = por %p41, %p42
      %p44 = scmp.ne.s32.totalorder %s30, %s31
      %p45 = scmp.eq.s32.totalorder %s23, 1
      %p46 = por %p44, %p45
      %p48 = scmp.ne.s32.totalorder %s31, %s47
      %p49 = scmp.eq.s32.totalorder %s23, 0
      %p50 = por %p48, %p49
      %s52 = sadd.s32 %s51, 1
      %p55 = scmp.eq.s32.totalorder %s17, 1
      %p56 = scmp.ne.s32.totalorder %s51, %s53
      %p57 = scmp.eq.s32.totalorder %s17, 0
      %p58 = por %p56, %p57
      %p59 = scmp.ne.s32.totalorder %s51, %s53
      %p60 = scmp.eq.s32.totalorder %s22, 1
      %p61 = por %p59, %p60
      %p62 = scmp.ne.s32.totalorder %s53, %s54
      %p63 = scmp.eq.s32.totalorder %s22, 0
      %p64 = por %p62, %p63
      %p65 = scmp.ne.s32.totalorder %s53, %s54
      %p66 = scmp.eq.s32.totalorder %s23, 1
      %p67 = por %p65, %p66
      %p69 = scmp.ne.s32.totalorder %s54, %s68
      %p70 = scmp.eq.s32.totalorder %s23, 0
      %p71 = por %p69, %p70
      %s72 = ssub.s32 %s17, %s24
      %p73 = scmp.eq.s32.totalorder %s72, 0
      %s75 = sadd.s32 %s74, 1
      %s76 = scalar_select %p73, %s74, %s75
      %p79 = pneg %p73
      %p80 = scmp.eq.s32.totalorder %s17, 1
      %p81 = por %p79, %p80
      %p82 = scmp.ne.s32.totalorder %s74, %s77
      %p83 = scmp.eq.s32.totalorder %s17, 0
      %p84 = por %p82, %p83
      %p85 = scmp.ne.s32.totalorder %s74, %s77
      %p86 = scmp.eq.s32.totalorder %s22, 1
      %p87 = por %p85, %p86
      %p88 = scmp.ne.s32.totalorder %s77, %s78
      %p89 = scmp.eq.s32.totalorder %s22, 0
      %p90 = por %p88, %p89
      %p91 = scmp.ne.s32.totalorder %s77, %s78
      %p92 = scmp.eq.s32.totalorder %s23, 1
      %p93 = por %p91, %p92
      %p95 = scmp.ne.s32.totalorder %s78, %s94
      %p96 = scmp.eq.s32.totalorder %s23, 0
      %p97 = por %p95, %p96
      %s98 = ssub.s32 %s17, %s24
      %p99 = scmp.eq.s32.totalorder %s98, 0
      %s101 = sadd.s32 %s100, 1
      %s102 = scalar_select %p99, %s100, %s101
      %p105 = pneg %p99
      %p106 = scmp.eq.s32.totalorder %s17, 1
      %p107 = por %p105, %p106
      %p108 = scmp.ne.s32.totalorder %s100, %s103
      %p109 = scmp.eq.s32.totalorder %s17, 0
      %p110 = por %p108, %p109
      %p111 = scmp.ne.s32.totalorder %s100, %s103
      %p112 = scmp.eq.s32.totalorder %s22, 1
      %p113 = por %p111, %p112
      %p114 = scmp.ne.s32.totalorder %s103, %s104
      %p115 = scmp.eq.s32.totalorder %s22, 0
      %p116 = por %p114, %p115
      %p117 = scmp.ne.s32.totalorder %s103, %s104
      %p118 = scmp.eq.s32.totalorder %s23, 1
      %p119 = por %p117, %p118
      %p121 = scmp.ne.s32.totalorder %s104, %s120
      %p122 = scmp.eq.s32.totalorder %s23, 0
      %p123 = por %p121, %p122
      %s124 = ssub.s32 %s17, %s24
      %p125 = scmp.eq.s32.totalorder %s124, 0
      %s127 = sadd.s32 %s126, 1
      %s128 = scalar_select %p125, %s126, %s127
      %p131 = pneg %p125
      %p132 = scmp.eq.s32.totalorder %s17, 1
      %p133 = por %p131, %p132
      %p134 = scmp.ne.s32.totalorder %s126, %s129
      %p135 = scmp.eq.s32.totalorder %s17, 0
      %p136 = por %p134, %p135
      %p137 = scmp.ne.s32.totalorder %s126, %s129
      %p138 = scmp.eq.s32.totalorder %s22, 1
      %p139 = por %p137, %p138
      %p140 = scmp.ne.s32.totalorder %s129, %s130
      %p141 = scmp.eq.s32.totalorder %s22, 0
      %p142 = por %p140, %p141
      %p143 = scmp.ne.s32.totalorder %s129, %s130
      %p144 = scmp.eq.s32.totalorder %s23, 1
      %p145 = por %p143, %p144
      %p147 = scmp.ne.s32.totalorder %s130, %s146
      %p148 = scmp.eq.s32.totalorder %s23, 0
      %p149 = por %p147, %p148
      %p150 = scmp.le.s32.totalorder 1, %s17
      %p151 = scmp.lt.s32.totalorder %s17, 3
      %p152 = pnand %p150, %p151
      %p153 = pneg %p152
      // Predicated region
      $region9: #{tpu_custom_call.1} parent=5 // pred_check
        _
      $region10: #{tpu_custom_call.1} parent=5 // pred_check_branch
        %155 = sbr.rel (%p152) target = $region12
      $region11: #{tpu_custom_call.1} parent=5 // pred_region
        %s156 = ssub.s32 %s17, 1
        // Predicated region
        $region13: #{tpu_custom_call.1} parent=11 // pred_check
          %p157 = pneg %p64
        $region14: #{tpu_custom_call.1} parent=11 // pred_check_branch
          %159 = sbr.rel (%p157) target = $region16
        $region15: #{tpu_custom_call.1} parent=11 // pred_region
          _
        $region16: #{tpu_custom_call.1} parent=11 // pred_fallthru
          _
      $region12: #{tpu_custom_call.1} parent=5 // pred_fallthru
        _
      %p160 = scmp.lt.s32.totalorder %s17, 2
      // Predicated region
      $region17: #{tpu_custom_call.1} parent=5 // pred_check
        %p161 = pneg %p160
      $region18: #{tpu_custom_call.1} parent=5 // pred_check_branch
        %163 = sbr.rel (%p161) target = $region20
      $region19: #{tpu_custom_call.1} parent=5 // pred_region
        // Predicated region
        $region21: #{tpu_custom_call.1} parent=19 // pred_check
          %p164 = pneg %p37
        $region22: #{tpu_custom_call.1} parent=19 // pred_check_branch
          %166 = sbr.rel (%p164) target = $region24
        $region23: #{tpu_custom_call.1} parent=19 // pred_region
          %p167 = scmp.lt.s32.totalorder %s17, 1
          %s168 = scalar_select %p167, %s17, 1
          %s169 = smul.addr %s168, 54
          %s170 = smul.addr %s169, 4
          %s171 = scalar_lea.vmem %s0, %s170
        $region24: #{tpu_custom_call.1} parent=19 // pred_fallthru
          _
      $region20: #{tpu_custom_call.1} parent=5 // pred_fallthru
        _
      %p172 = scmp.le.s32.totalorder 1, %s17
      %p173 = scmp.lt.s32.totalorder %s17, 3
      %p174 = pnand %p172, %p173
      %p175 = pneg %p174
      // Predicated region
      $region25: #{tpu_custom_call.1} parent=5 // pred_check
        _
      $region26: #{tpu_custom_call.1} parent=5 // pred_check_branch
        %177 = sbr.rel (%p174) target = $region28
      $region27: #{tpu_custom_call.1} parent=5 // pred_region
        %s178 = ssub.s32 %s17, 1
        %p179 = scmp.lt.s32.totalorder %s22, 1
        %s180 = scalar_select %p179, %s22, 1
        %s181 = smul.addr %s180, 54
        %s182 = smul.addr %s181, 4
        %s183 = scalar_lea.vmem %s0, %s182
        %p184 = pneg %p43
        %p185 = pneg %p40
        %p186 = pneg %p64
        %p187 = pneg %p61
        %p188 = pneg %p90
        %p189 = pneg %p87
        %s190 = sand.u32 %s77, 1
        %s191 = scalar_lea.sflag [#allocation4], %s190
        %s192 = sand.u32 %s77, 1
        %s193 = smul.addr %s192, 128
        %s194 = scalar_lea.vmem [#allocation3], %s193
        %p195 = pneg %p116
        %p196 = pneg %p113
        %s197 = sand.u32 %s22, 1
        %s198 = scalar_lea.sflag [#allocation6], %s197
        %s199 = sand.u32 %s103, 1
        %s200 = scalar_lea.vmem [#allocation5], %s199
        %p201 = pneg %p142
        %p202 = pneg %p139
        %s203 = sand.u32 %s22, 1
        %s204 = scalar_lea.sflag [#allocation6], %s203
        %s205 = sand.u32 %s129, 1
        %s206 = scalar_lea.vmem [#allocation7], %s205
        %p207 = scmp.lt.s32.totalorder %s22, 1
        %s208 = scalar_select %p207, %s22, 1
        %s209 = smul.addr %s208, 54
        %s210 = smul.addr %s209, 4
        %s211 = scalar_lea.vmem %s0, %s210
        %v213 = vld [vmem:[%s211] sm:$0xf]
        %v214 = vld [vmem:[%s211 + $0x4] sm:$0xf]
        %v215 = vld [vmem:[%s211 + $0xc] sm:$0xf]
        %v216 = vld [vmem:[%s211 + $0x10] sm:$0xf]
        %v217 = vld [vmem:[%s211 + $0x18] sm:$0xf]
        %v218 = vld [vmem:[%s211 + $0x1c] sm:$0xf]
        %v219 = vld [vmem:[%s211 + $0x24] sm:$0xf]
        %v220 = vld [vmem:[%s211 + $0x28] sm:$0xf]
        %v221 = vld [vmem:[%s211 + $0x30] sm:$0xf]
        %v222 = vld [vmem:[%s211 + $0x34] sm:$0xf]
        %v223 = vld [vmem:[%s211 + $0x3c] sm:$0xf]
        %v224 = vld [vmem:[%s211 + $0x40] sm:$0xf]
        %v225 = vld [vmem:[%s211 + $0x48] sm:$0xf]
        %v226 = vld [vmem:[%s211 + $0x4c] sm:$0xf]
        %v227 = vld [vmem:[%s211 + $0x54] sm:$0xf]
        %v228 = vld [vmem:[%s211 + $0x58] sm:$0xf]
        %v229 = vld [vmem:[%s211 + $0x60] sm:$0xf]
        %v230 = vld [vmem:[%s211 + $0x64] sm:$0xf]
        %v231 = vld [vmem:[%s211 + $0x6c] sm:$0xf]
        %v232 = vld [vmem:[%s211 + $0x70] sm:$0xf]
        %v233 = vld [vmem:[%s211 + $0x78] sm:$0xf]
        %v234 = vld [vmem:[%s211 + $0x7c] sm:$0xf]
        %v235 = vld [vmem:[%s211 + $0x84] sm:$0xf]
        %v236 = vld [vmem:[%s211 + $0x88] sm:$0xf]
        %v237 = vld [vmem:[%s211 + $0x90] sm:$0xf]
        %v238 = vld [vmem:[%s211 + $0x94] sm:$0xf]
        %v239 = vld [vmem:[%s211 + $0x9c] sm:$0xf]
        %v240 = vld [vmem:[%s211 + $0xa0] sm:$0xf]
        %v241 = vld [vmem:[%s211 + $0xa8] sm:$0xf]
        %v242 = vld [vmem:[%s211 + $0xac] sm:$0xf]
        %v243 = vld [vmem:[%s211 + $0xb4] sm:$0xf]
        %v244 = vld [vmem:[%s211 + $0xb8] sm:$0xf]
        %v277 = vunpack.c.l.b16 %v213
        %v278 = vunpack.c.l.b16 %v214
        %v279 = vunpack.c.l.b16 %v215
        %v280 = vunpack.c.l.b16 %v216
        %v281 = vunpack.c.l.b16 %v217
        %v282 = vunpack.c.l.b16 %v218
        %v283 = vunpack.c.l.b16 %v219
        %v284 = vunpack.c.l.b16 %v220
        %v285 = vunpack.c.l.b16 %v221
        %v286 = vunpack.c.l.b16 %v222
        %v287 = vunpack.c.l.b16 %v223
        %v288 = vunpack.c.l.b16 %v224
        %v289 = vunpack.c.l.b16 %v225
        %v290 = vunpack.c.l.b16 %v226
        %v291 = vunpack.c.l.b16 %v227
        %v292 = vunpack.c.l.b16 %v228
        %v293 = vunpack.c.l.b16 %v229
        %v294 = vunpack.c.l.b16 %v230
        %v295 = vunpack.c.l.b16 %v231
        %v296 = vunpack.c.l.b16 %v232
        %v297 = vunpack.c.l.b16 %v233
        %v298 = vunpack.c.l.b16 %v234
        %v299 = vunpack.c.l.b16 %v235
        %v300 = vunpack.c.l.b16 %v236
        %v301 = vunpack.c.l.b16 %v237
        %v302 = vunpack.c.l.b16 %v238
        %v303 = vunpack.c.l.b16 %v239
        %v304 = vunpack.c.l.b16 %v240
        %v305 = vunpack.c.l.b16 %v241
        %v306 = vunpack.c.l.b16 %v242
        %v307 = vunpack.c.l.b16 %v243
        %v308 = vunpack.c.l.b16 %v244
        %v309 = vpack.c.b16 %v278, %v277
        %v310 = vpack.c.b16 %v280, %v279
        %v311 = vpack.c.b16 %v282, %v281
        %v312 = vpack.c.b16 %v284, %v283
        %v313 = vpack.c.b16 %v286, %v285
        %v314 = vpack.c.b16 %v288, %v287
        %v315 = vpack.c.b16 %v290, %v289
        %v316 = vpack.c.b16 %v292, %v291
        %v317 = vpack.c.b16 %v294, %v293
        %v318 = vpack.c.b16 %v296, %v295
        %v319 = vpack.c.b16 %v298, %v297
        %v320 = vpack.c.b16 %v300, %v299
        %v321 = vpack.c.b16 %v302, %v301
        %v322 = vpack.c.b16 %v304, %v303
        %v323 = vpack.c.b16 %v306, %v305
        %v324 = vpack.c.b16 %v308, %v307
        %341 = vst [vmem:[#allocation2] sm:$0xff] %v309
        %342 = vst [vmem:[#allocation2 + $0x18] sm:$0xff] %v310
        %343 = vst [vmem:[#allocation2 + $0x30] sm:$0xff] %v311
        %344 = vst [vmem:[#allocation2 + $0x48] sm:$0xff] %v312
        %345 = vst [vmem:[#allocation2 + $0x60] sm:$0xff] %v313
        %346 = vst [vmem:[#allocation2 + $0x78] sm:$0xff] %v314
        %347 = vst [vmem:[#allocation2 + $0x90] sm:$0xff] %v315
        %348 = vst [vmem:[#allocation2 + $0xa8] sm:$0xff] %v316
        %349 = vst [vmem:[#allocation2 + $0xc0] sm:$0xff] %v317
        %350 = vst [vmem:[#allocation2 + $0xd8] sm:$0xff] %v318
        %351 = vst [vmem:[#allocation2 + $0xf0] sm:$0xff] %v319
        %352 = vst [vmem:[#allocation2 + $0x108] sm:$0xff] %v320
        %353 = vst [vmem:[#allocation2 + $0x120] sm:$0xff] %v321
        %354 = vst [vmem:[#allocation2 + $0x138] sm:$0xff] %v322
        %355 = vst [vmem:[#allocation2 + $0x150] sm:$0xff] %v323
        %356 = vst [vmem:[#allocation2 + $0x168] sm:$0xff] %v324
        %v357 = vld [vmem:[%s211] sm:$0xf]
        %v358 = vld [vmem:[%s211 + $0x4] sm:$0xf]
        %v359 = vld [vmem:[%s211 + $0x8] sm:$0x1]
        %v360 = vld [vmem:[%s211 + $0xc] sm:$0xf]
        %v361 = vld [vmem:[%s211 + $0x10] sm:$0xf]
        %v362 = vld [vmem:[%s211 + $0x14] sm:$0x1]
        %v363 = vld [vmem:[%s211 + $0x18] sm:$0xf]
        %v364 = vld [vmem:[%s211 + $0x1c] sm:$0xf]
        %v365 = vld [vmem:[%s211 + $0x20] sm:$0x1]
        %v366 = vld [vmem:[%s211 + $0x24] sm:$0xf]
        %v367 = vld [vmem:[%s211 + $0x28] sm:$0xf]
        %v368 = vld [vmem:[%s211 + $0x2c] sm:$0x1]
        %v369 = vld [vmem:[%s211 + $0x30] sm:$0xf]
        %v370 = vld [vmem:[%s211 + $0x34] sm:$0xf]
        %v371 = vld [vmem:[%s211 + $0x38] sm:$0x1]
        %v372 = vld [vmem:[%s211 + $0x3c] sm:$0xf]
        %v373 = vld [vmem:[%s211 + $0x40] sm:$0xf]
        %v374 = vld [vmem:[%s211 + $0x44] sm:$0x1]
        %v375 = vld [vmem:[%s211 + $0x48] sm:$0xf]
        %v376 = vld [vmem:[%s211 + $0x4c] sm:$0xf]
        %v377 = vld [vmem:[%s211 + $0x50] sm:$0x1]
        %v378 = vld [vmem:[%s211 + $0x54] sm:$0xf]
        %v379 = vld [vmem:[%s211 + $0x58] sm:$0xf]
        %v380 = vld [vmem:[%s211 + $0x5c] sm:$0x1]
        %v381 = vld [vmem:[%s211 + $0x60] sm:$0xf]
        %v382 = vld [vmem:[%s211 + $0x64] sm:$0xf]
        %v383 = vld [vmem:[%s211 + $0x68] sm:$0x1]
        %v384 = vld [vmem:[%s211 + $0x6c] sm:$0xf]
        %v385 = vld [vmem:[%s211 + $0x70] sm:$0xf]
        %v386 = vld [vmem:[%s211 + $0x74] sm:$0x1]
        %v387 = vld [vmem:[%s211 + $0x78] sm:$0xf]
        %v388 = vld [vmem:[%s211 + $0x7c] sm:$0xf]
        %v389 = vld [vmem:[%s211 + $0x80] sm:$0x1]
        %v390 = vld [vmem:[%s211 + $0x84] sm:$0xf]
        %v391 = vld [vmem:[%s211 + $0x88] sm:$0xf]
        %v392 = vld [vmem:[%s211 + $0x8c] sm:$0x1]
        %v393 = vld [vmem:[%s211 + $0x90] sm:$0xf]
        %v394 = vld [vmem:[%s211 + $0x94] sm:$0xf]
        %v395 = vld [vmem:[%s211 + $0x98] sm:$0x1]
        %v396 = vld [vmem:[%s211 + $0x9c] sm:$0xf]
        %v397 = vld [vmem:[%s211 + $0xa0] sm:$0xf]
        %v398 = vld [vmem:[%s211 + $0xa4] sm:$0x1]
        %v399 = vld [vmem:[%s211 + $0xa8] sm:$0xf]
        %v400 = vld [vmem:[%s211 + $0xac] sm:$0xf]
        %v401 = vld [vmem:[%s211 + $0xb0] sm:$0x1]
        %v402 = vld [vmem:[%s211 + $0xb4] sm:$0xf]
        %v403 = vld [vmem:[%s211 + $0xb8] sm:$0xf]
        %v404 = vld [vmem:[%s211 + $0xbc] sm:$0x1]
        %v453 = vunpack.c.l.b16 %v357
        %v454 = vunpack.c.l.b16 %v358
        %v455 = vunpack.c.l.b16 %v359
        %v456 = vunpack.c.l.b16 %v360
        %v457 = vunpack.c.l.b16 %v361
        %v458 = vunpack.c.l.b16 %v362
        %v459 = vunpack.c.l.b16 %v363
        %v460 = vunpack.c.l.b16 %v364
        %v461 = vunpack.c.l.b16 %v365
        %v462 = vunpack.c.l.b16 %v366
        %v463 = vunpack.c.l.b16 %v367
        %v464 = vunpack.c.l.b16 %v368
        %v465 = vunpack.c.l.b16 %v369
        %v466 = vunpack.c.l.b16 %v370
        %v467 = vunpack.c.l.b16 %v371
        %v468 = vunpack.c.l.b16 %v372
        %v469 = vunpack.c.l.b16 %v373
        %v470 = vunpack.c.l.b16 %v374
        %v471 = vunpack.c.l.b16 %v375
        %v472 = vunpack.c.l.b16 %v376
        %v473 = vunpack.c.l.b16 %v377
        %v474 = vunpack.c.l.b16 %v378
        %v475 = vunpack.c.l.b16 %v379
        %v476 = vunpack.c.l.b16 %v380
        %v477 = vunpack.c.l.b16 %v381
        %v478 = vunpack.c.l.b16 %v382
        %v479 = vunpack.c.l.b16 %v383
        %v480 = vunpack.c.l.b16 %v384
        %v481 = vunpack.c.l.b16 %v385
        %v482 = vunpack.c.l.b16 %v386
        %v483 = vunpack.c.l.b16 %v387
        %v484 = vunpack.c.l.b16 %v388
        %v485 = vunpack.c.l.b16 %v389
        %v486 = vunpack.c.l.b16 %v390
        %v487 = vunpack.c.l.b16 %v391
        %v488 = vunpack.c.l.b16 %v392
        %v489 = vunpack.c.l.b16 %v393
        %v490 = vunpack.c.l.b16 %v394
        %v491 = vunpack.c.l.b16 %v395
        %v492 = vunpack.c.l.b16 %v396
        %v493 = vunpack.c.l.b16 %v397
        %v494 = vunpack.c.l.b16 %v398
        %v495 = vunpack.c.l.b16 %v399
        %v496 = vunpack.c.l.b16 %v400
        %v497 = vunpack.c.l.b16 %v401
        %v498 = vunpack.c.l.b16 %v402
        %v499 = vunpack.c.l.b16 %v403
        %v500 = vunpack.c.l.b16 %v404
        %v501 = vpack.c.b16 %v454, %v453
        %v502 = vpack.c.b16 %v455, %v455
        %v503 = vpack.c.b16 %v457, %v456
        %v504 = vpack.c.b16 %v458, %v458
        %v505 = vpack.c.b16 %v460, %v459
        %v506 = vpack.c.b16 %v461, %v461
        %v507 = vpack.c.b16 %v463, %v462
        %v508 = vpack.c.b16 %v464, %v464
        %v509 = vpack.c.b16 %v466, %v465
        %v510 = vpack.c.b16 %v467, %v467
        %v511 = vpack.c.b16 %v469, %v468
        %v512 = vpack.c.b16 %v470, %v470
        %v513 = vpack.c.b16 %v472, %v471
        %v514 = vpack.c.b16 %v473, %v473
        %v515 = vpack.c.b16 %v475, %v474
        %v516 = vpack.c.b16 %v476, %v476
        %v517 = vpack.c.b16 %v478, %v477
        %v518 = vpack.c.b16 %v479, %v479
        %v519 = vpack.c.b16 %v481, %v480
        %v520 = vpack.c.b16 %v482, %v482
        %v521 = vpack.c.b16 %v484, %v483
        %v522 = vpack.c.b16 %v485, %v485
        %v523 = vpack.c.b16 %v487, %v486
        %v524 = vpack.c.b16 %v488, %v488
        %v525 = vpack.c.b16 %v490, %v489
        %v526 = vpack.c.b16 %v491, %v491
        %v527 = vpack.c.b16 %v493, %v492
        %v528 = vpack.c.b16 %v494, %v494
        %v529 = vpack.c.b16 %v496, %v495
        %v530 = vpack.c.b16 %v497, %v497
        %v531 = vpack.c.b16 %v499, %v498
        %v532 = vpack.c.b16 %v500, %v500
        %vm533 = vsmask.f32 7424
        %v535 = vshrl.u32 %v501, 16
        %v537 = vshll.u32 %v501, 16
        %v539 = vrot.slane %v537, 1
        %v540 = vor.u32 %v535, %v539
        %v542 = vshll.u32 %v502, 16
        %v544 = vrot.slane %v542, 1
        %v545 = vsel %vm533, %v540, %v544
        %v547 = vshrl.u32 %v503, 16
        %v549 = vshll.u32 %v503, 16
        %v551 = vrot.slane %v549, 1
        %v552 = vor.u32 %v547, %v551
        %v554 = vshll.u32 %v504, 16
        %v556 = vrot.slane %v554, 1
        %v557 = vsel %vm533, %v552, %v556
        %v559 = vshrl.u32 %v505, 16
        %v561 = vshll.u32 %v505, 16
        %v563 = vrot.slane %v561, 1
        %v564 = vor.u32 %v559, %v563
        %v566 = vshll.u32 %v506, 16
        %v568 = vrot.slane %v566, 1
        %v569 = vsel %vm533, %v564, %v568
        %v571 = vshrl.u32 %v507, 16
        %v573 = vshll.u32 %v507, 16
        %v575 = vrot.slane %v573, 1
        %v576 = vor.u32 %v571, %v575
        %v578 = vshll.u32 %v508, 16
        %v580 = vrot.slane %v578, 1
        %v581 = vsel %vm533, %v576, %v580
        %v583 = vshrl.u32 %v509, 16
        %v585 = vshll.u32 %v509, 16
        %v587 = vrot.slane %v585, 1
        %v588 = vor.u32 %v583, %v587
        %v590 = vshll.u32 %v510, 16
        %v592 = vrot.slane %v590, 1
        %v593 = vsel %vm533, %v588, %v592
        %v595 = vshrl.u32 %v511, 16
        %v597 = vshll.u32 %v511, 16
        %v599 = vrot.slane %v597, 1
        %v600 = vor.u32 %v595, %v599
        %v602 = vshll.u32 %v512, 16
        %v604 = vrot.slane %v602, 1
        %v605 = vsel %vm533, %v600, %v604
        %v607 = vshrl.u32 %v513, 16
        %v609 = vshll.u32 %v513, 16
        %v611 = vrot.slane %v609, 1
        %v612 = vor.u32 %v607, %v611
        %v614 = vshll.u32 %v514, 16
        %v616 = vrot.slane %v614, 1
        %v617 = vsel %vm533, %v612, %v616
        %v619 = vshrl.u32 %v515, 16
        %v621 = vshll.u32 %v515, 16
        %v623 = vrot.slane %v621, 1
        %v624 = vor.u32 %v619, %v623
        %v626 = vshll.u32 %v516, 16
        %v628 = vrot.slane %v626, 1
        %v629 = vsel %vm533, %v624, %v628
        %v631 = vshrl.u32 %v517, 16
        %v633 = vshll.u32 %v517, 16
        %v635 = vrot.slane %v633, 1
        %v636 = vor.u32 %v631, %v635
        %v638 = vshll.u32 %v518, 16
        %v640 = vrot.slane %v638, 1
        %v641 = vsel %vm533, %v636, %v640
        %v643 = vshrl.u32 %v519, 16
        %v645 = vshll.u32 %v519, 16
        %v647 = vrot.slane %v645, 1
        %v648 = vor.u32 %v643, %v647
        %v650 = vshll.u32 %v520, 16
        %v652 = vrot.slane %v650, 1
        %v653 = vsel %vm533, %v648, %v652
        %v655 = vshrl.u32 %v521, 16
        %v657 = vshll.u32 %v521, 16
        %v659 = vrot.slane %v657, 1
        %v660 = vor.u32 %v655, %v659
        %v662 = vshll.u32 %v522, 16
        %v664 = vrot.slane %v662, 1
        %v665 = vsel %vm533, %v660, %v664
        %v667 = vshrl.u32 %v523, 16
        %v669 = vshll.u32 %v523, 16
        %v671 = vrot.slane %v669, 1
        %v672 = vor.u32 %v667, %v671
        %v674 = vshll.u32 %v524, 16
        %v676 = vrot.slane %v674, 1
        %v677 = vsel %vm533, %v672, %v676
        %v679 = vshrl.u32 %v525, 16
        %v681 = vshll.u32 %v525, 16
        %v683 = vrot.slane %v681, 1
        %v684 = vor.u32 %v679, %v683
        %v686 = vshll.u32 %v526, 16
        %v688 = vrot.slane %v686, 1
        %v689 = vsel %vm533, %v684, %v688
        %v691 = vshrl.u32 %v527, 16
        %v693 = vshll.u32 %v527, 16
        %v695 = vrot.slane %v693, 1
        %v696 = vor.u32 %v691, %v695
        %v698 = vshll.u32 %v528, 16
        %v700 = vrot.slane %v698, 1
        %v701 = vsel %vm533, %v696, %v700
        %v703 = vshrl.u32 %v529, 16
        %v705 = vshll.u32 %v529, 16
        %v707 = vrot.slane %v705, 1
        %v708 = vor.u32 %v703, %v707
        %v710 = vshll.u32 %v530, 16
        %v712 = vrot.slane %v710, 1
        %v713 = vsel %vm533, %v708, %v712
        %v715 = vshrl.u32 %v531, 16
        %v717 = vshll.u32 %v531, 16
        %v719 = vrot.slane %v717, 1
        %v720 = vor.u32 %v715, %v719
        %v722 = vshll.u32 %v532, 16
        %v724 = vrot.slane %v722, 1
        %v725 = vsel %vm533, %v720, %v724
        %742 = vst [vmem:[#allocation2 + $0x8] sm:$0xff] %v545
        %743 = vst [vmem:[#allocation2 + $0x20] sm:$0xff] %v557
        %744 = vst [vmem:[#allocation2 + $0x38] sm:$0xff] %v569
        %745 = vst [vmem:[#allocation2 + $0x50] sm:$0xff] %v581
        %746 = vst [vmem:[#allocation2 + $0x68] sm:$0xff] %v593
        %747 = vst [vmem:[#allocation2 + $0x80] sm:$0xff] %v605
        %748 = vst [vmem:[#allocation2 + $0x98] sm:$0xff] %v617
        %749 = vst [vmem:[#allocation2 + $0xb0] sm:$0xff] %v629
        %750 = vst [vmem:[#allocation2 + $0xc8] sm:$0xff] %v641
        %751 = vst [vmem:[#allocation2 + $0xe0] sm:$0xff] %v653
        %752 = vst [vmem:[#allocation2 + $0xf8] sm:$0xff] %v665
        %753 = vst [vmem:[#allocation2 + $0x110] sm:$0xff] %v677
        %754 = vst [vmem:[#allocation2 + $0x128] sm:$0xff] %v689
        %755 = vst [vmem:[#allocation2 + $0x140] sm:$0xff] %v701
        %756 = vst [vmem:[#allocation2 + $0x158] sm:$0xff] %v713
        %757 = vst [vmem:[#allocation2 + $0x170] sm:$0xff] %v725
        %v758 = vld [vmem:[%s211] sm:$0xe]
        %v759 = vld [vmem:[%s211 + $0x4] sm:$0xf]
        %v760 = vld [vmem:[%s211 + $0x8] sm:$0x1]
        %v761 = vld [vmem:[%s211 + $0xc] sm:$0xe]
        %v762 = vld [vmem:[%s211 + $0x10] sm:$0xf]
        %v763 = vld [vmem:[%s211 + $0x14] sm:$0x1]
        %v764 = vld [vmem:[%s211 + $0x18] sm:$0xe]
        %v765 = vld [vmem:[%s211 + $0x1c] sm:$0xf]
        %v766 = vld [vmem:[%s211 + $0x20] sm:$0x1]
        %v767 = vld [vmem:[%s211 + $0x24] sm:$0xe]
        %v768 = vld [vmem:[%s211 + $0x28] sm:$0xf]
        %v769 = vld [vmem:[%s211 + $0x2c] sm:$0x1]
        %v770 = vld [vmem:[%s211 + $0x30] sm:$0xe]
        %v771 = vld [vmem:[%s211 + $0x34] sm:$0xf]
        %v772 = vld [vmem:[%s211 + $0x38] sm:$0x1]
        %v773 = vld [vmem:[%s211 + $0x3c] sm:$0xe]
        %v774 = vld [vmem:[%s211 + $0x40] sm:$0xf]
        %v775 = vld [vmem:[%s211 + $0x44] sm:$0x1]
        %v776 = vld [vmem:[%s211 + $0x48] sm:$0xe]
        %v777 = vld [vmem:[%s211 + $0x4c] sm:$0xf]
        %v778 = vld [vmem:[%s211 + $0x50] sm:$0x1]
        %v779 = vld [vmem:[%s211 + $0x54] sm:$0xe]
        %v780 = vld [vmem:[%s211 + $0x58] sm:$0xf]
        %v781 = vld [vmem:[%s211 + $0x5c] sm:$0x1]
        %v782 = vld [vmem:[%s211 + $0x60] sm:$0xe]
        %v783 = vld [vmem:[%s211 + $0x64] sm:$0xf]
        %v784 = vld [vmem:[%s211 + $0x68] sm:$0x1]
        %v785 = vld [vmem:[%s211 + $0x6c] sm:$0xe]
        %v786 = vld [vmem:[%s211 + $0x70] sm:$0xf]
        %v787 = vld [vmem:[%s211 + $0x74] sm:$0x1]
        %v788 = vld [vmem:[%s211 + $0x78] sm:$0xe]
        %v789 = vld [vmem:[%s211 + $0x7c] sm:$0xf]
        %v790 = vld [vmem:[%s211 + $0x80] sm:$0x1]
        %v791 = vld [vmem:[%s211 + $0x84] sm:$0xe]
        %v792 = vld [vmem:[%s211 + $0x88] sm:$0xf]
        %v793 = vld [vmem:[%s211 + $0x8c] sm:$0x1]
        %v794 = vld [vmem:[%s211 + $0x90] sm:$0xe]
        %v795 = vld [vmem:[%s211 + $0x94] sm:$0xf]
        %v796 = vld [vmem:[%s211 + $0x98] sm:$0x1]
        %v797 = vld [vmem:[%s211 + $0x9c] sm:$0xe]
        %v798 = vld [vmem:[%s211 + $0xa0] sm:$0xf]
        %v799 = vld [vmem:[%s211 + $0xa4] sm:$0x1]
        %v800 = vld [vmem:[%s211 + $0xa8] sm:$0xe]
        %v801 = vld [vmem:[%s211 + $0xac] sm:$0xf]
        %v802 = vld [vmem:[%s211 + $0xb0] sm:$0x1]
        %v803 = vld [vmem:[%s211 + $0xb4] sm:$0xe]
        %v804 = vld [vmem:[%s211 + $0xb8] sm:$0xf]
        %v805 = vld [vmem:[%s211 + $0xbc] sm:$0x1]
        %v854 = vunpack.c.l.b16 %v758
        %v855 = vunpack.c.l.b16 %v759
        %v856 = vunpack.c.l.b16 %v760
        %v857 = vunpack.c.l.b16 %v761
        %v858 = vunpack.c.l.b16 %v762
        %v859 = vunpack.c.l.b16 %v763
        %v860 = vunpack.c.l.b16 %v764
        %v861 = vunpack.c.l.b16 %v765
        %v862 = vunpack.c.l.b16 %v766
        %v863 = vunpack.c.l.b16 %v767
        %v864 = vunpack.c.l.b16 %v768
        %v865 = vunpack.c.l.b16 %v769
        %v866 = vunpack.c.l.b16 %v770
        %v867 = vunpack.c.l.b16 %v771
        %v868 = vunpack.c.l.b16 %v772
        %v869 = vunpack.c.l.b16 %v773
        %v870 = vunpack.c.l.b16 %v774
        %v871 = vunpack.c.l.b16 %v775
        %v872 = vunpack.c.l.b16 %v776
        %v873 = vunpack.c.l.b16 %v777
        %v874 = vunpack.c.l.b16 %v778
        %v875 = vunpack.c.l.b16 %v779
        %v876 = vunpack.c.l.b16 %v780
        %v877 = vunpack.c.l.b16 %v781
        %v878 = vunpack.c.l.b16 %v782
        %v879 = vunpack.c.l.b16 %v783
        %v880 = vunpack.c.l.b16 %v784
        %v881 = vunpack.c.l.b16 %v785
        %v882 = vunpack.c.l.b16 %v786
        %v883 = vunpack.c.l.b16 %v787
        %v884 = vunpack.c.l.b16 %v788
        %v885 = vunpack.c.l.b16 %v789
        %v886 = vunpack.c.l.b16 %v790
        %v887 = vunpack.c.l.b16 %v791
        %v888 = vunpack.c.l.b16 %v792
        %v889 = vunpack.c.l.b16 %v793
        %v890 = vunpack.c.l.b16 %v794
        %v891 = vunpack.c.l.b16 %v795
        %v892 = vunpack.c.l.b16 %v796
        %v893 = vunpack.c.l.b16 %v797
        %v894 = vunpack.c.l.b16 %v798
        %v895 = vunpack.c.l.b16 %v799
        %v896 = vunpack.c.l.b16 %v800
        %v897 = vunpack.c.l.b16 %v801
        %v898 = vunpack.c.l.b16 %v802
        %v899 = vunpack.c.l.b16 %v803
        %v900 = vunpack.c.l.b16 %v804
        %v901 = vunpack.c.l.b16 %v805
        %v902 = vpack.c.b16 %v855, %v854
        %v903 = vpack.c.b16 %v856, %v856
        %v904 = vpack.c.b16 %v858, %v857
        %v905 = vpack.c.b16 %v859, %v859
        %v906 = vpack.c.b16 %v861, %v860
        %v907 = vpack.c.b16 %v862, %v862
        %v908 = vpack.c.b16 %v864, %v863
        %v909 = vpack.c.b16 %v865, %v865
        %v910 = vpack.c.b16 %v867, %v866
        %v911 = vpack.c.b16 %v868, %v868
        %v912 = vpack.c.b16 %v870, %v869
        %v913 = vpack.c.b16 %v871, %v871
        %v914 = vpack.c.b16 %v873, %v872
        %v915 = vpack.c.b16 %v874, %v874
        %v916 = vpack.c.b16 %v876, %v875
        %v917 = vpack.c.b16 %v877, %v877
        %v918 = vpack.c.b16 %v879, %v878
        %v919 = vpack.c.b16 %v880, %v880
        %v920 = vpack.c.b16 %v882, %v881
        %v921 = vpack.c.b16 %v883, %v883
        %v922 = vpack.c.b16 %v885, %v884
        %v923 = vpack.c.b16 %v886, %v886
        %v924 = vpack.c.b16 %v888, %v887
        %v925 = vpack.c.b16 %v889, %v889
        %v926 = vpack.c.b16 %v891, %v890
        %v927 = vpack.c.b16 %v892, %v892
        %v928 = vpack.c.b16 %v894, %v893
        %v929 = vpack.c.b16 %v895, %v895
        %v930 = vpack.c.b16 %v897, %v896
        %v931 = vpack.c.b16 %v898, %v898
        %v932 = vpack.c.b16 %v900, %v899
        %v933 = vpack.c.b16 %v901, %v901
        %vm934 = vcmask 1046528
        %v935 = vrot.slane %v902, 1
        %v936 = vrot.slane %v903, 1
        %v937 = vsel %vm934, %v935, %v936
        %v938 = vrot.slane %v904, 1
        %v939 = vrot.slane %v905, 1
        %v940 = vsel %vm934, %v938, %v939
        %v941 = vrot.slane %v906, 1
        %v942 = vrot.slane %v907, 1
        %v943 = vsel %vm934, %v941, %v942
        %v944 = vrot.slane %v908, 1
        %v945 = vrot.slane %v909, 1
        %v946 = vsel %vm934, %v944, %v945
        %v947 = vrot.slane %v910, 1
        %v948 = vrot.slane %v911, 1
        %v949 = vsel %vm934, %v947, %v948
        %v950 = vrot.slane %v912, 1
        %v951 = vrot.slane %v913, 1
        %v952 = vsel %vm934, %v950, %v951
        %v953 = vrot.slane %v914, 1
        %v954 = vrot.slane %v915, 1
        %v955 = vsel %vm934, %v953, %v954
        %v956 = vrot.slane %v916, 1
        %v957 = vrot.slane %v917, 1
        %v958 = vsel %vm934, %v956, %v957
        %v959 = vrot.slane %v918, 1
        %v960 = vrot.slane %v919, 1
        %v961 = vsel %vm934, %v959, %v960
        %v962 = vrot.slane %v920, 1
        %v963 = vrot.slane %v921, 1
        %v964 = vsel %vm934, %v962, %v963
        %v965 = vrot.slane %v922, 1
        %v966 = vrot.slane %v923, 1
        %v967 = vsel %vm934, %v965, %v966
        %v968 = vrot.slane %v924, 1
        %v969 = vrot.slane %v925, 1
        %v970 = vsel %vm934, %v968, %v969
        %v971 = vrot.slane %v926, 1
        %v972 = vrot.slane %v927, 1
        %v973 = vsel %vm934, %v971, %v972
        %v974 = vrot.slane %v928, 1
        %v975 = vrot.slane %v929, 1
        %v976 = vsel %vm934, %v974, %v975
        %v977 = vrot.slane %v930, 1
        %v978 = vrot.slane %v931, 1
        %v979 = vsel %vm934, %v977, %v978
        %v980 = vrot.slane %v932, 1
        %v981 = vrot.slane %v933, 1
        %v982 = vsel %vm934, %v980, %v981
        %999 = vst [vmem:[#allocation2 + $0x10] sm:$0xff] %v937
        %1000 = vst [vmem:[#allocation2 + $0x28] sm:$0xff] %v940
        %1001 = vst [vmem:[#allocation2 + $0x40] sm:$0xff] %v943
        %1002 = vst [vmem:[#allocation2 + $0x58] sm:$0xff] %v946
        %1003 = vst [vmem:[#allocation2 + $0x70] sm:$0xff] %v949
        %1004 = vst [vmem:[#allocation2 + $0x88] sm:$0xff] %v952
        %1005 = vst [vmem:[#allocation2 + $0xa0] sm:$0xff] %v955
        %1006 = vst [vmem:[#allocation2 + $0xb8] sm:$0xff] %v958
        %1007 = vst [vmem:[#allocation2 + $0xd0] sm:$0xff] %v961
        %1008 = vst [vmem:[#allocation2 + $0xe8] sm:$0xff] %v964
        %1009 = vst [vmem:[#allocation2 + $0x100] sm:$0xff] %v967
        %1010 = vst [vmem:[#allocation2 + $0x118] sm:$0xff] %v970
        %1011 = vst [vmem:[#allocation2 + $0x130] sm:$0xff] %v973
        %1012 = vst [vmem:[#allocation2 + $0x148] sm:$0xff] %v976
        %1013 = vst [vmem:[#allocation2 + $0x160] sm:$0xff] %v979
        %1014 = vst [vmem:[#allocation2 + $0x178] sm:$0xff] %v982
        %v1015 = vld [vmem:[#allocation2] sm:$0xff]
        %v1016 = vld [vmem:[#allocation2 + $0x8] sm:$0xff]
        %v1017 = vld [vmem:[#allocation2 + $0x10] sm:$0xff]
        %v1018 = vld [vmem:[#allocation2 + $0x18] sm:$0xff]
        %v1019 = vld [vmem:[#allocation2 + $0x20] sm:$0xff]
        %v1020 = vld [vmem:[#allocation2 + $0x28] sm:$0xff]
        %v1021 = vld [vmem:[#allocation2 + $0x30] sm:$0xff]
        %v1022 = vld [vmem:[#allocation2 + $0x38] sm:$0xff]
        %v1023 = vld [vmem:[#allocation2 + $0x40] sm:$0xff]
        %v1024 = vld [vmem:[#allocation2 + $0x48] sm:$0xff]
        %v1025 = vld [vmem:[#allocation2 + $0x50] sm:$0xff]
        %v1026 = vld [vmem:[#allocation2 + $0x58] sm:$0xff]
        %v1027 = vld [vmem:[#allocation2 + $0x60] sm:$0xff]
        %v1028 = vld [vmem:[#allocation2 + $0x68] sm:$0xff]
        %v1029 = vld [vmem:[#allocation2 + $0x70] sm:$0xff]
        %v1030 = vld [vmem:[#allocation2 + $0x78] sm:$0xff]
        %v1031 = vld [vmem:[#allocation2 + $0x80] sm:$0xff]
        %v1032 = vld [vmem:[#allocation2 + $0x88] sm:$0xff]
        %v1033 = vld [vmem:[#allocation2 + $0x90] sm:$0xff]
        %v1034 = vld [vmem:[#allocation2 + $0x98] sm:$0xff]
        %v1035 = vld [vmem:[#allocation2 + $0xa0] sm:$0xff]
        %v1036 = vld [vmem:[#allocation2 + $0xa8] sm:$0xff]
        %v1037 = vld [vmem:[#allocation2 + $0xb0] sm:$0xff]
        %v1038 = vld [vmem:[#allocation2 + $0xb8] sm:$0xff]
        %v1039 = vld [vmem:[#allocation2 + $0xc0] sm:$0xff]
        %v1040 = vld [vmem:[#allocation2 + $0xc8] sm:$0xff]
        %v1041 = vld [vmem:[#allocation2 + $0xd0] sm:$0xff]
        %v1042 = vld [vmem:[#allocation2 + $0xd8] sm:$0xff]
        %v1043 = vld [vmem:[#allocation2 + $0xe0] sm:$0xff]
        %v1044 = vld [vmem:[#allocation2 + $0xe8] sm:$0xff]
        %v1045 = vld [vmem:[#allocation2 + $0xf0] sm:$0xff]
        %v1046 = vld [vmem:[#allocation2 + $0xf8] sm:$0xff]
        %v1047 = vld [vmem:[#allocation2 + $0x100] sm:$0xff]
        %v1048 = vld [vmem:[#allocation2 + $0x108] sm:$0xff]
        %v1049 = vld [vmem:[#allocation2 + $0x110] sm:$0xff]
        %v1050 = vld [vmem:[#allocation2 + $0x118] sm:$0xff]
        %v1051 = vld [vmem:[#allocation2 + $0x120] sm:$0xff]
        %v1052 = vld [vmem:[#allocation2 + $0x128] sm:$0xff]
        %v1053 = vld [vmem:[#allocation2 + $0x130] sm:$0xff]
        %v1054 = vld [vmem:[#allocation2 + $0x138] sm:$0xff]
        %v1055 = vld [vmem:[#allocation2 + $0x140] sm:$0xff]
        %v1056 = vld [vmem:[#allocation2 + $0x148] sm:$0xff]
        %v1057 = vld [vmem:[#allocation2 + $0x150] sm:$0xff]
        %v1058 = vld [vmem:[#allocation2 + $0x158] sm:$0xff]
        %v1059 = vld [vmem:[#allocation2 + $0x160] sm:$0xff]
        %v1060 = vld [vmem:[#allocation2 + $0x168] sm:$0xff]
        %v1061 = vld [vmem:[#allocation2 + $0x170] sm:$0xff]
        %v1062 = vld [vmem:[#allocation2 + $0x178] sm:$0xff]
        %v1063 = vld [vmem:[%s1] sm:$0xf]
        %v1064 = vld [vmem:[%s1 + $0x4] sm:$0xf]
        %v1065 = vld [vmem:[%s1 + $0x8] sm:$0xf]
        %v1066 = vld [vmem:[%s1 + $0xc] sm:$0xf]
        %v1067 = vld [vmem:[%s1 + $0x10] sm:$0xf]
        %v1068 = vld [vmem:[%s1 + $0x14] sm:$0xf]
        %v1069 = vld [vmem:[%s1 + $0x18] sm:$0xf]
        %v1070 = vld [vmem:[%s1 + $0x1c] sm:$0xf]
        %v1071 = vld [vmem:[%s1 + $0x20] sm:$0xf]
        %v1072 = vld [vmem:[%s1 + $0x24] sm:$0xf]
        %v1073 = vld [vmem:[%s1 + $0x28] sm:$0xf]
        %v1074 = vld [vmem:[%s1 + $0x2c] sm:$0xf]
        %v1075 = vld [vmem:[%s1 + $0x30] sm:$0xf]
        %v1076 = vld [vmem:[%s1 + $0x34] sm:$0xf]
        %v1077 = vld [vmem:[%s1 + $0x38] sm:$0xf]
        %v1078 = vld [vmem:[%s1 + $0x3c] sm:$0xf]
        %v1079 = vld [vmem:[%s1 + $0x40] sm:$0xf]
        %v1080 = vld [vmem:[%s1 + $0x44] sm:$0xf]
        %v1081 = vld [vmem:[%s1 + $0x48] sm:$0xf]
        %v1082 = vld [vmem:[%s1 + $0x4c] sm:$0xf]
        %v1083 = vld [vmem:[%s1 + $0x50] sm:$0xf]
        %v1084 = vld [vmem:[%s1 + $0x54] sm:$0xf]
        %v1085 = vld [vmem:[%s1 + $0x58] sm:$0xf]
        %v1086 = vld [vmem:[%s1 + $0x5c] sm:$0xf]
        %v1087 = vld [vmem:[%s1 + $0x60] sm:$0xf]
        %v1088 = vld [vmem:[%s1 + $0x64] sm:$0xf]
        %v1089 = vld [vmem:[%s1 + $0x68] sm:$0xf]
        %v1090 = vld [vmem:[%s1 + $0x6c] sm:$0xf]
        %v1091 = vld [vmem:[%s1 + $0x70] sm:$0xf]
        %v1092 = vld [vmem:[%s1 + $0x74] sm:$0xf]
        %v1093 = vld [vmem:[%s1 + $0x78] sm:$0xf]
        %v1094 = vld [vmem:[%s1 + $0x7c] sm:$0xf]
        %v1095 = vld [vmem:[%s1 + $0x80] sm:$0xf]
        %v1096 = vld [vmem:[%s1 + $0x84] sm:$0xf]
        %v1097 = vld [vmem:[%s1 + $0x88] sm:$0xf]
        %v1098 = vld [vmem:[%s1 + $0x8c] sm:$0xf]
        %v1099 = vld [vmem:[%s1 + $0x90] sm:$0xf]
        %v1100 = vld [vmem:[%s1 + $0x94] sm:$0xf]
        %v1101 = vld [vmem:[%s1 + $0x98] sm:$0xf]
        %v1102 = vld [vmem:[%s1 + $0x9c] sm:$0xf]
        %v1103 = vld [vmem:[%s1 + $0xa0] sm:$0xf]
        %v1104 = vld [vmem:[%s1 + $0xa4] sm:$0xf]
        %v1105 = vld [vmem:[%s1 + $0xa8] sm:$0xf]
        %v1106 = vld [vmem:[%s1 + $0xac] sm:$0xf]
        %v1107 = vld [vmem:[%s1 + $0xb0] sm:$0xf]
        %v1108 = vld [vmem:[%s1 + $0xb4] sm:$0xf]
        %v1109 = vld [vmem:[%s1 + $0xb8] sm:$0xf]
        %v1110 = vld [vmem:[%s1 + $0xbc] sm:$0xf]
        %s1111 = scalar_lea.vmem %s211, 12
        %v1112 = vld [vmem:[%s1111] sm:$0xf]
        %v1113 = vld [vmem:[%s1111 + $0x4] sm:$0xf]
        %v1114 = vld [vmem:[%s1111 + $0xc] sm:$0xf]
        %v1115 = vld [vmem:[%s1111 + $0x10] sm:$0xf]
        %v1116 = vld [vmem:[%s1111 + $0x18] sm:$0xf]
        %v1117 = vld [vmem:[%s1111 + $0x1c] sm:$0xf]
        %v1118 = vld [vmem:[%s1111 + $0x24] sm:$0xf]
        %v1119 = vld [vmem:[%s1111 + $0x28] sm:$0xf]
        %v1120 = vld [vmem:[%s1111 + $0x30] sm:$0xf]
        %v1121 = vld [vmem:[%s1111 + $0x34] sm:$0xf]
        %v1122 = vld [vmem:[%s1111 + $0x3c] sm:$0xf]
        %v1123 = vld [vmem:[%s1111 + $0x40] sm:$0xf]
        %v1124 = vld [vmem:[%s1111 + $0x48] sm:$0xf]
        %v1125 = vld [vmem:[%s1111 + $0x4c] sm:$0xf]
        %v1126 = vld [vmem:[%s1111 + $0x54] sm:$0xf]
        %v1127 = vld [vmem:[%s1111 + $0x58] sm:$0xf]
        %v1128 = vld [vmem:[%s1111 + $0x60] sm:$0xf]
        %v1129 = vld [vmem:[%s1111 + $0x64] sm:$0xf]
        %v1130 = vld [vmem:[%s1111 + $0x6c] sm:$0xf]
        %v1131 = vld [vmem:[%s1111 + $0x70] sm:$0xf]
        %v1132 = vld [vmem:[%s1111 + $0x78] sm:$0xf]
        %v1133 = vld [vmem:[%s1111 + $0x7c] sm:$0xf]
        %v1134 = vld [vmem:[%s1111 + $0x84] sm:$0xf]
        %v1135 = vld [vmem:[%s1111 + $0x88] sm:$0xf]
        %v1136 = vld [vmem:[%s1111 + $0x90] sm:$0xf]
        %v1137 = vld [vmem:[%s1111 + $0x94] sm:$0xf]
        %v1138 = vld [vmem:[%s1111 + $0x9c] sm:$0xf]
        %v1139 = vld [vmem:[%s1111 + $0xa0] sm:$0xf]
        %v1140 = vld [vmem:[%s1111 + $0xa8] sm:$0xf]
        %v1141 = vld [vmem:[%s1111 + $0xac] sm:$0xf]
        %v1142 = vld [vmem:[%s1111 + $0xb4] sm:$0xf]
        %v1143 = vld [vmem:[%s1111 + $0xb8] sm:$0xf]
        %v1176 = vunpack.c.l.b16 %v1112
        %v1177 = vunpack.c.l.b16 %v1113
        %v1178 = vunpack.c.l.b16 %v1114
        %v1179 = vunpack.c.l.b16 %v1115
        %v1180 = vunpack.c.l.b16 %v1116
        %v1181 = vunpack.c.l.b16 %v1117
        %v1182 = vunpack.c.l.b16 %v1118
        %v1183 = vunpack.c.l.b16 %v1119
        %v1184 = vunpack.c.l.b16 %v1120
        %v1185 = vunpack.c.l.b16 %v1121
        %v1186 = vunpack.c.l.b16 %v1122
        %v1187 = vunpack.c.l.b16 %v1123
        %v1188 = vunpack.c.l.b16 %v1124
        %v1189 = vunpack.c.l.b16 %v1125
        %v1190 = vunpack.c.l.b16 %v1126
        %v1191 = vunpack.c.l.b16 %v1127
        %v1192 = vunpack.c.l.b16 %v1128
        %v1193 = vunpack.c.l.b16 %v1129
        %v1194 = vunpack.c.l.b16 %v1130
        %v1195 = vunpack.c.l.b16 %v1131
        %v1196 = vunpack.c.l.b16 %v1132
        %v1197 = vunpack.c.l.b16 %v1133
        %v1198 = vunpack.c.l.b16 %v1134
        %v1199 = vunpack.c.l.b16 %v1135
        %v1200 = vunpack.c.l.b16 %v1136
        %v1201 = vunpack.c.l.b16 %v1137
        %v1202 = vunpack.c.l.b16 %v1138
        %v1203 = vunpack.c.l.b16 %v1139
        %v1204 = vunpack.c.l.b16 %v1140
        %v1205 = vunpack.c.l.b16 %v1141
        %v1206 = vunpack.c.l.b16 %v1142
        %v1207 = vunpack.c.l.b16 %v1143
        %v1208 = vpack.c.b16 %v1177, %v1176
        %v1209 = vpack.c.b16 %v1179, %v1178
        %v1210 = vpack.c.b16 %v1181, %v1180
        %v1211 = vpack.c.b16 %v1183, %v1182
        %v1212 = vpack.c.b16 %v1185, %v1184
        %v1213 = vpack.c.b16 %v1187, %v1186
        %v1214 = vpack.c.b16 %v1189, %v1188
        %v1215 = vpack.c.b16 %v1191, %v1190
        %v1216 = vpack.c.b16 %v1193, %v1192
        %v1217 = vpack.c.b16 %v1195, %v1194
        %v1218 = vpack.c.b16 %v1197, %v1196
        %v1219 = vpack.c.b16 %v1199, %v1198
        %v1220 = vpack.c.b16 %v1201, %v1200
        %v1221 = vpack.c.b16 %v1203, %v1202
        %v1222 = vpack.c.b16 %v1205, %v1204
        %v1223 = vpack.c.b16 %v1207, %v1206
        %1240 = vst [vmem:[#allocation2] sm:$0xff] %v1208
        %1241 = vst [vmem:[#allocation2 + $0x18] sm:$0xff] %v1209
        %1242 = vst [vmem:[#allocation2 + $0x30] sm:$0xff] %v1210
        %1243 = vst [vmem:[#allocation2 + $0x48] sm:$0xff] %v1211
        %1244 = vst [vmem:[#allocation2 + $0x60] sm:$0xff] %v1212
        %1245 = vst [vmem:[#allocation2 + $0x78] sm:$0xff] %v1213
        %1246 = vst [vmem:[#allocation2 + $0x90] sm:$0xff] %v1214
        %1247 = vst [vmem:[#allocation2 + $0xa8] sm:$0xff] %v1215
        %1248 = vst [vmem:[#allocation2 + $0xc0] sm:$0xff] %v1216
        %1249 = vst [vmem:[#allocation2 + $0xd8] sm:$0xff] %v1217
        %1250 = vst [vmem:[#allocation2 + $0xf0] sm:$0xff] %v1218
        %1251 = vst [vmem:[#allocation2 + $0x108] sm:$0xff] %v1219
        %1252 = vst [vmem:[#allocation2 + $0x120] sm:$0xff] %v1220
        %1253 = vst [vmem:[#allocation2 + $0x138] sm:$0xff] %v1221
        %1254 = vst [vmem:[#allocation2 + $0x150] sm:$0xff] %v1222
        %1255 = vst [vmem:[#allocation2 + $0x168] sm:$0xff] %v1223
        %v1256 = vld [vmem:[%s1111] sm:$0xf]
        %v1257 = vld [vmem:[%s1111 + $0x4] sm:$0xf]
        %v1258 = vld [vmem:[%s1111 + $0x8] sm:$0x1]
        %v1259 = vld [vmem:[%s1111 + $0xc] sm:$0xf]
        %v1260 = vld [vmem:[%s1111 + $0x10] sm:$0xf]
        %v1261 = vld [vmem:[%s1111 + $0x14] sm:$0x1]
        %v1262 = vld [vmem:[%s1111 + $0x18] sm:$0xf]
        %v1263 = vld [vmem:[%s1111 + $0x1c] sm:$0xf]
        %v1264 = vld [vmem:[%s1111 + $0x20] sm:$0x1]
        %v1265 = vld [vmem:[%s1111 + $0x24] sm:$0xf]
        %v1266 = vld [vmem:[%s1111 + $0x28] sm:$0xf]
        %v1267 = vld [vmem:[%s1111 + $0x2c] sm:$0x1]
        %v1268 = vld [vmem:[%s1111 + $0x30] sm:$0xf]
        %v1269 = vld [vmem:[%s1111 + $0x34] sm:$0xf]
        %v1270 = vld [vmem:[%s1111 + $0x38] sm:$0x1]
        %v1271 = vld [vmem:[%s1111 + $0x3c] sm:$0xf]
        %v1272 = vld [vmem:[%s1111 + $0x40] sm:$0xf]
        %v1273 = vld [vmem:[%s1111 + $0x44] sm:$0x1]
        %v1274 = vld [vmem:[%s1111 + $0x48] sm:$0xf]
        %v1275 = vld [vmem:[%s1111 + $0x4c] sm:$0xf]
        %v1276 = vld [vmem:[%s1111 + $0x50] sm:$0x1]
        %v1277 = vld [vmem:[%s1111 + $0x54] sm:$0xf]
        %v1278 = vld [vmem:[%s1111 + $0x58] sm:$0xf]
        %v1279 = vld [vmem:[%s1111 + $0x5c] sm:$0x1]
        %v1280 = vld [vmem:[%s1111 + $0x60] sm:$0xf]
        %v1281 = vld [vmem:[%s1111 + $0x64] sm:$0xf]
        %v1282 = vld [vmem:[%s1111 + $0x68] sm:$0x1]
        %v1283 = vld [vmem:[%s1111 + $0x6c] sm:$0xf]
        %v1284 = vld [vmem:[%s1111 + $0x70] sm:$0xf]
        %v1285 = vld [vmem:[%s1111 + $0x74] sm:$0x1]
        %v1286 = vld [vmem:[%s1111 + $0x78] sm:$0xf]
        %v1287 = vld [vmem:[%s1111 + $0x7c] sm:$0xf]
        %v1288 = vld [vmem:[%s1111 + $0x80] sm:$0x1]
        %v1289 = vld [vmem:[%s1111 + $0x84] sm:$0xf]
        %v1290 = vld [vmem:[%s1111 + $0x88] sm:$0xf]
        %v1291 = vld [vmem:[%s1111 + $0x8c] sm:$0x1]
        %v1292 = vld [vmem:[%s1111 + $0x90] sm:$0xf]
        %v1293 = vld [vmem:[%s1111 + $0x94] sm:$0xf]
        %v1294 = vld [vmem:[%s1111 + $0x98] sm:$0x1]
        %v1295 = vld [vmem:[%s1111 + $0x9c] sm:$0xf]
        %v1296 = vld [vmem:[%s1111 + $0xa0] sm:$0xf]
        %v1297 = vld [vmem:[%s1111 + $0xa4] sm:$0x1]
        %v1298 = vld [vmem:[%s1111 + $0xa8] sm:$0xf]
        %v1299 = vld [vmem:[%s1111 + $0xac] sm:$0xf]
        %v1300 = vld [vmem:[%s1111 + $0xb0] sm:$0x1]
        %v1301 = vld [vmem:[%s1111 + $0xb4] sm:$0xf]
        %v1302 = vld [vmem:[%s1111 + $0xb8] sm:$0xf]
        %v1303 = vld [vmem:[%s1111 + $0xbc] sm:$0x1]
        %v1352 = vunpack.c.l.b16 %v1256
        %v1353 = vunpack.c.l.b16 %v1257
        %v1354 = vunpack.c.l.b16 %v1258
        %v1355 = vunpack.c.l.b16 %v1259
        %v1356 = vunpack.c.l.b16 %v1260
        %v1357 = vunpack.c.l.b16 %v1261
        %v1358 = vunpack.c.l.b16 %v1262
        %v1359 = vunpack.c.l.b16 %v1263
        %v1360 = vunpack.c.l.b16 %v1264
        %v1361 = vunpack.c.l.b16 %v1265
        %v1362 = vunpack.c.l.b16 %v1266
        %v1363 = vunpack.c.l.b16 %v1267
        %v1364 = vunpack.c.l.b16 %v1268
        %v1365 = vunpack.c.l.b16 %v1269
        %v1366 = vunpack.c.l.b16 %v1270
        %v1367 = vunpack.c.l.b16 %v1271
        %v1368 = vunpack.c.l.b16 %v1272
        %v1369 = vunpack.c.l.b16 %v1273
        %v1370 = vunpack.c.l.b16 %v1274
        %v1371 = vunpack.c.l.b16 %v1275
        %v1372 = vunpack.c.l.b16 %v1276
        %v1373 = vunpack.c.l.b16 %v1277
        %v1374 = vunpack.c.l.b16 %v1278
        %v1375 = vunpack.c.l.b16 %v1279
        %v1376 = vunpack.c.l.b16 %v1280
        %v1377 = vunpack.c.l.b16 %v1281
        %v1378 = vunpack.c.l.b16 %v1282
        %v1379 = vunpack.c.l.b16 %v1283
        %v1380 = vunpack.c.l.b16 %v1284
        %v1381 = vunpack.c.l.b16 %v1285
        %v1382 = vunpack.c.l.b16 %v1286
        %v1383 = vunpack.c.l.b16 %v1287
        %v1384 = vunpack.c.l.b16 %v1288
        %v1385 = vunpack.c.l.b16 %v1289
        %v1386 = vunpack.c.l.b16 %v1290
        %v1387 = vunpack.c.l.b16 %v1291
        %v1388 = vunpack.c.l.b16 %v1292
        %v1389 = vunpack.c.l.b16 %v1293
        %v1390 = vunpack.c.l.b16 %v1294
        %v1391 = vunpack.c.l.b16 %v1295
        %v1392 = vunpack.c.l.b16 %v1296
        %v1393 = vunpack.c.l.b16 %v1297
        %v1394 = vunpack.c.l.b16 %v1298
        %v1395 = vunpack.c.l.b16 %v1299
        %v1396 = vunpack.c.l.b16 %v1300
        %v1397 = vunpack.c.l.b16 %v1301
        %v1398 = vunpack.c.l.b16 %v1302
        %v1399 = vunpack.c.l.b16 %v1303
        %v1400 = vpack.c.b16 %v1353, %v1352
        %v1401 = vpack.c.b16 %v1354, %v1354
        %v1402 = vpack.c.b16 %v1356, %v1355
        %v1403 = vpack.c.b16 %v1357, %v1357
        %v1404 = vpack.c.b16 %v1359, %v1358
        %v1405 = vpack.c.b16 %v1360, %v1360
        %v1406 = vpack.c.b16 %v1362, %v1361
        %v1407 = vpack.c.b16 %v1363, %v1363
        %v1408 = vpack.c.b16 %v1365, %v1364
        %v1409 = vpack.c.b16 %v1366, %v1366
        %v1410 = vpack.c.b16 %v1368, %v1367
        %v1411 = vpack.c.b16 %v1369, %v1369
        %v1412 = vpack.c.b16 %v1371, %v1370
        %v1413 = vpack.c.b16 %v1372, %v1372
        %v1414 = vpack.c.b16 %v1374, %v1373
        %v1415 = vpack.c.b16 %v1375, %v1375
        %v1416 = vpack.c.b16 %v1377, %v1376
        %v1417 = vpack.c.b16 %v1378, %v1378
        %v1418 = vpack.c.b16 %v1380, %v1379
        %v1419 = vpack.c.b16 %v1381, %v1381
        %v1420 = vpack.c.b16 %v1383, %v1382
        %v1421 = vpack.c.b16 %v1384, %v1384
        %v1422 = vpack.c.b16 %v1386, %v1385
        %v1423 = vpack.c.b16 %v1387, %v1387
        %v1424 = vpack.c.b16 %v1389, %v1388
        %v1425 = vpack.c.b16 %v1390, %v1390
        %v1426 = vpack.c.b16 %v1392, %v1391
        %v1427 = vpack.c.b16 %v1393, %v1393
        %v1428 = vpack.c.b16 %v1395, %v1394
        %v1429 = vpack.c.b16 %v1396, %v1396
        %v1430 = vpack.c.b16 %v1398, %v1397
        %v1431 = vpack.c.b16 %v1399, %v1399
        %v1433 = vshrl.u32 %v1400, 16
        %v1435 = vshll.u32 %v1400, 16
        %v1437 = vrot.slane %v1435, 1
        %v1438 = vor.u32 %v1433, %v1437
        %v1440 = vshll.u32 %v1401, 16
        %v1442 = vrot.slane %v1440, 1
        %v1443 = vsel %vm533, %v1438, %v1442
        %v1445 = vshrl.u32 %v1402, 16
        %v1447 = vshll.u32 %v1402, 16
        %v1449 = vrot.slane %v1447, 1
        %v1450 = vor.u32 %v1445, %v1449
        %v1452 = vshll.u32 %v1403, 16
        %v1454 = vrot.slane %v1452, 1
        %v1455 = vsel %vm533, %v1450, %v1454
        %v1457 = vshrl.u32 %v1404, 16
        %v1459 = vshll.u32 %v1404, 16
        %v1461 = vrot.slane %v1459, 1
        %v1462 = vor.u32 %v1457, %v1461
        %v1464 = vshll.u32 %v1405, 16
        %v1466 = vrot.slane %v1464, 1
        %v1467 = vsel %vm533, %v1462, %v1466
        %v1469 = vshrl.u32 %v1406, 16
        %v1471 = vshll.u32 %v1406, 16
        %v1473 = vrot.slane %v1471, 1
        %v1474 = vor.u32 %v1469, %v1473
        %v1476 = vshll.u32 %v1407, 16
        %v1478 = vrot.slane %v1476, 1
        %v1479 = vsel %vm533, %v1474, %v1478
        %v1481 = vshrl.u32 %v1408, 16
        %v1483 = vshll.u32 %v1408, 16
        %v1485 = vrot.slane %v1483, 1
        %v1486 = vor.u32 %v1481, %v1485
        %v1488 = vshll.u32 %v1409, 16
        %v1490 = vrot.slane %v1488, 1
        %v1491 = vsel %vm533, %v1486, %v1490
        %v1493 = vshrl.u32 %v1410, 16
        %v1495 = vshll.u32 %v1410, 16
        %v1497 = vrot.slane %v1495, 1
        %v1498 = vor.u32 %v1493, %v1497
        %v1500 = vshll.u32 %v1411, 16
        %v1502 = vrot.slane %v1500, 1
        %v1503 = vsel %vm533, %v1498, %v1502
        %v1505 = vshrl.u32 %v1412, 16
        %v1507 = vshll.u32 %v1412, 16
        %v1509 = vrot.slane %v1507, 1
        %v1510 = vor.u32 %v1505, %v1509
        %v1512 = vshll.u32 %v1413, 16
        %v1514 = vrot.slane %v1512, 1
        %v1515 = vsel %vm533, %v1510, %v1514
        %v1517 = vshrl.u32 %v1414, 16
        %v1519 = vshll.u32 %v1414, 16
        %v1521 = vrot.slane %v1519, 1
        %v1522 = vor.u32 %v1517, %v1521
        %v1524 = vshll.u32 %v1415, 16
        %v1526 = vrot.slane %v1524, 1
        %v1527 = vsel %vm533, %v1522, %v1526
        %v1529 = vshrl.u32 %v1416, 16
        %v1531 = vshll.u32 %v1416, 16
        %v1533 = vrot.slane %v1531, 1
        %v1534 = vor.u32 %v1529, %v1533
        %v1536 = vshll.u32 %v1417, 16
        %v1538 = vrot.slane %v1536, 1
        %v1539 = vsel %vm533, %v1534, %v1538
        %v1541 = vshrl.u32 %v1418, 16
        %v1543 = vshll.u32 %v1418, 16
        %v1545 = vrot.slane %v1543, 1
        %v1546 = vor.u32 %v1541, %v1545
        %v1548 = vshll.u32 %v1419, 16
        %v1550 = vrot.slane %v1548, 1
        %v1551 = vsel %vm533, %v1546, %v1550
        %v1553 = vshrl.u32 %v1420, 16
        %v1555 = vshll.u32 %v1420, 16
        %v1557 = vrot.slane %v1555, 1
        %v1558 = vor.u32 %v1553, %v1557
        %v1560 = vshll.u32 %v1421, 16
        %v1562 = vrot.slane %v1560, 1
        %v1563 = vsel %vm533, %v1558, %v1562
        %v1565 = vshrl.u32 %v1422, 16
        %v1567 = vshll.u32 %v1422, 16
        %v1569 = vrot.slane %v1567, 1
        %v1570 = vor.u32 %v1565, %v1569
        %v1572 = vshll.u32 %v1423, 16
        %v1574 = vrot.slane %v1572, 1
        %v1575 = vsel %vm533, %v1570, %v1574
        %v1577 = vshrl.u32 %v1424, 16
        %v1579 = vshll.u32 %v1424, 16
        %v1581 = vrot.slane %v1579, 1
        %v1582 = vor.u32 %v1577, %v1581
        %v1584 = vshll.u32 %v1425, 16
        %v1586 = vrot.slane %v1584, 1
        %v1587 = vsel %vm533, %v1582, %v1586
        %v1589 = vshrl.u32 %v1426, 16
        %v1591 = vshll.u32 %v1426, 16
        %v1593 = vrot.slane %v1591, 1
        %v1594 = vor.u32 %v1589, %v1593
        %v1596 = vshll.u32 %v1427, 16
        %v1598 = vrot.slane %v1596, 1
        %v1599 = vsel %vm533, %v1594, %v1598
        %v1601 = vshrl.u32 %v1428, 16
        %v1603 = vshll.u32 %v1428, 16
        %v1605 = vrot.slane %v1603, 1
        %v1606 = vor.u32 %v1601, %v1605
        %v1608 = vshll.u32 %v1429, 16
        %v1610 = vrot.slane %v1608, 1
        %v1611 = vsel %vm533, %v1606, %v1610
        %v1613 = vshrl.u32 %v1430, 16
        %v1615 = vshll.u32 %v1430, 16
        %v1617 = vrot.slane %v1615, 1
        %v1618 = vor.u32 %v1613, %v1617
        %v1620 = vshll.u32 %v1431, 16
        %v1622 = vrot.slane %v1620, 1
        %v1623 = vsel %vm533, %v1618, %v1622
        %1640 = vst [vmem:[#allocation2 + $0x8] sm:$0xff] %v1443
        %1641 = vst [vmem:[#allocation2 + $0x20] sm:$0xff] %v1455
        %1642 = vst [vmem:[#allocation2 + $0x38] sm:$0xff] %v1467
        %1643 = vst [vmem:[#allocation2 + $0x50] sm:$0xff] %v1479
        %1644 = vst [vmem:[#allocation2 + $0x68] sm:$0xff] %v1491
        %1645 = vst [vmem:[#allocation2 + $0x80] sm:$0xff] %v1503
        %1646 = vst [vmem:[#allocation2 + $0x98] sm:$0xff] %v1515
        %1647 = vst [vmem:[#allocation2 + $0xb0] sm:$0xff] %v1527
        %1648 = vst [vmem:[#allocation2 + $0xc8] sm:$0xff] %v1539
        %1649 = vst [vmem:[#allocation2 + $0xe0] sm:$0xff] %v1551
        %1650 = vst [vmem:[#allocation2 + $0xf8] sm:$0xff] %v1563
        %1651 = vst [vmem:[#allocation2 + $0x110] sm:$0xff] %v1575
        %1652 = vst [vmem:[#allocation2 + $0x128] sm:$0xff] %v1587
        %1653 = vst [vmem:[#allocation2 + $0x140] sm:$0xff] %v1599
        %1654 = vst [vmem:[#allocation2 + $0x158] sm:$0xff] %v1611
        %1655 = vst [vmem:[#allocation2 + $0x170] sm:$0xff] %v1623
        %v1656 = vld [vmem:[%s1111] sm:$0xe]
        %v1657 = vld [vmem:[%s1111 + $0x4] sm:$0xf]
        %v1658 = vld [vmem:[%s1111 + $0x8] sm:$0x1]
        %v1659 = vld [vmem:[%s1111 + $0xc] sm:$0xe]
        %v1660 = vld [vmem:[%s1111 + $0x10] sm:$0xf]
        %v1661 = vld [vmem:[%s1111 + $0x14] sm:$0x1]
        %v1662 = vld [vmem:[%s1111 + $0x18] sm:$0xe]
        %v1663 = vld [vmem:[%s1111 + $0x1c] sm:$0xf]
        %v1664 = vld [vmem:[%s1111 + $0x20] sm:$0x1]
        %v1665 = vld [vmem:[%s1111 + $0x24] sm:$0xe]
        %v1666 = vld [vmem:[%s1111 + $0x28] sm:$0xf]
        %v1667 = vld [vmem:[%s1111 + $0x2c] sm:$0x1]
        %v1668 = vld [vmem:[%s1111 + $0x30] sm:$0xe]
        %v1669 = vld [vmem:[%s1111 + $0x34] sm:$0xf]
        %v1670 = vld [vmem:[%s1111 + $0x38] sm:$0x1]
        %v1671 = vld [vmem:[%s1111 + $0x3c] sm:$0xe]
        %v1672 = vld [vmem:[%s1111 + $0x40] sm:$0xf]
        %v1673 = vld [vmem:[%s1111 + $0x44] sm:$0x1]
        %v1674 = vld [vmem:[%s1111 + $0x48] sm:$0xe]
        %v1675 = vld [vmem:[%s1111 + $0x4c] sm:$0xf]
        %v1676 = vld [vmem:[%s1111 + $0x50] sm:$0x1]
        %v1677 = vld [vmem:[%s1111 + $0x54] sm:$0xe]
        %v1678 = vld [vmem:[%s1111 + $0x58] sm:$0xf]
        %v1679 = vld [vmem:[%s1111 + $0x5c] sm:$0x1]
        %v1680 = vld [vmem:[%s1111 + $0x60] sm:$0xe]
        %v1681 = vld [vmem:[%s1111 + $0x64] sm:$0xf]
        %v1682 = vld [vmem:[%s1111 + $0x68] sm:$0x1]
        %v1683 = vld [vmem:[%s1111 + $0x6c] sm:$0xe]
        %v1684 = vld [vmem:[%s1111 + $0x70] sm:$0xf]
        %v1685 = vld [vmem:[%s1111 + $0x74] sm:$0x1]
        %v1686 = vld [vmem:[%s1111 + $0x78] sm:$0xe]
        %v1687 = vld [vmem:[%s1111 + $0x7c] sm:$0xf]
        %v1688 = vld [vmem:[%s1111 + $0x80] sm:$0x1]
        %v1689 = vld [vmem:[%s1111 + $0x84] sm:$0xe]
        %v1690 = vld [vmem:[%s1111 + $0x88] sm:$0xf]
        %v1691 = vld [vmem:[%s1111 + $0x8c] sm:$0x1]
        %v1692 = vld [vmem:[%s1111 + $0x90] sm:$0xe]
        %v1693 = vld [vmem:[%s1111 + $0x94] sm:$0xf]
        %v1694 = vld [vmem:[%s1111 + $0x98] sm:$0x1]
        %v1695 = vld [vmem:[%s1111 + $0x9c] sm:$0xe]
        %v1696 = vld [vmem:[%s1111 + $0xa0] sm:$0xf]
        %v1697 = vld [vmem:[%s1111 + $0xa4] sm:$0x1]
        %v1698 = vld [vmem:[%s1111 + $0xa8] sm:$0xe]
        %v1699 = vld [vmem:[%s1111 + $0xac] sm:$0xf]
        %v1700 = vld [vmem:[%s1111 + $0xb0] sm:$0x1]
        %v1701 = vld [vmem:[%s1111 + $0xb4] sm:$0xe]
        %v1702 = vld [vmem:[%s1111 + $0xb8] sm:$0xf]
        %v1703 = vld [vmem:[%s1111 + $0xbc] sm:$0x1]
        %v1752 = vunpack.c.l.b16 %v1656
        %v1753 = vunpack.c.l.b16 %v1657
        %v1754 = vunpack.c.l.b16 %v1658
        %v1755 = vunpack.c.l.b16 %v1659
        %v1756 = vunpack.c.l.b16 %v1660
        %v1757 = vunpack.c.l.b16 %v1661
        %v1758 = vunpack.c.l.b16 %v1662
        %v1759 = vunpack.c.l.b16 %v1663
        %v1760 = vunpack.c.l.b16 %v1664
        %v1761 = vunpack.c.l.b16 %v1665
        %v1762 = vunpack.c.l.b16 %v1666
        %v1763 = vunpack.c.l.b16 %v1667
        %v1764 = vunpack.c.l.b16 %v1668
        %v1765 = vunpack.c.l.b16 %v1669
        %v1766 = vunpack.c.l.b16 %v1670
        %v1767 = vunpack.c.l.b16 %v1671
        %v1768 = vunpack.c.l.b16 %v1672
        %v1769 = vunpack.c.l.b16 %v1673
        %v1770 = vunpack.c.l.b16 %v1674
        %v1771 = vunpack.c.l.b16 %v1675
        %v1772 = vunpack.c.l.b16 %v1676
        %v1773 = vunpack.c.l.b16 %v1677
        %v1774 = vunpack.c.l.b16 %v1678
        %v1775 = vunpack.c.l.b16 %v1679
        %v1776 = vunpack.c.l.b16 %v1680
        %v1777 = vunpack.c.l.b16 %v1681
        %v1778 = vunpack.c.l.b16 %v1682
        %v1779 = vunpack.c.l.b16 %v1683
        %v1780 = vunpack.c.l.b16 %v1684
        %v1781 = vunpack.c.l.b16 %v1685
        %v1782 = vunpack.c.l.b16 %v1686
        %v1783 = vunpack.c.l.b16 %v1687
        %v1784 = vunpack.c.l.b16 %v1688
        %v1785 = vunpack.c.l.b16 %v1689
        %v1786 = vunpack.c.l.b16 %v1690
        %v1787 = vunpack.c.l.b16 %v1691
        %v1788 = vunpack.c.l.b16 %v1692
        %v1789 = vunpack.c.l.b16 %v1693
        %v1790 = vunpack.c.l.b16 %v1694
        %v1791 = vunpack.c.l.b16 %v1695
        %v1792 = vunpack.c.l.b16 %v1696
        %v1793 = vunpack.c.l.b16 %v1697
        %v1794 = vunpack.c.l.b16 %v1698
        %v1795 = vunpack.c.l.b16 %v1699
        %v1796 = vunpack.c.l.b16 %v1700
        %v1797 = vunpack.c.l.b16 %v1701
        %v1798 = vunpack.c.l.b16 %v1702
        %v1799 = vunpack.c.l.b16 %v1703
        %v1800 = vpack.c.b16 %v1753, %v1752
        %v1801 = vpack.c.b16 %v1754, %v1754
        %v1802 = vpack.c.b16 %v1756, %v1755
        %v1803 = vpack.c.b16 %v1757, %v1757
        %v1804 = vpack.c.b16 %v1759, %v1758
        %v1805 = vpack.c.b16 %v1760, %v1760
        %v1806 = vpack.c.b16 %v1762, %v1761
        %v1807 = vpack.c.b16 %v1763, %v1763
        %v1808 = vpack.c.b16 %v1765, %v1764
        %v1809 = vpack.c.b16 %v1766, %v1766
        %v1810 = vpack.c.b16 %v1768, %v1767
        %v1811 = vpack.c.b16 %v1769, %v1769
        %v1812 = vpack.c.b16 %v1771, %v1770
        %v1813 = vpack.c.b16 %v1772, %v1772
        %v1814 = vpack.c.b16 %v1774, %v1773
        %v1815 = vpack.c.b16 %v1775, %v1775
        %v1816 = vpack.c.b16 %v1777, %v1776
        %v1817 = vpack.c.b16 %v1778, %v1778
        %v1818 = vpack.c.b16 %v1780, %v1779
        %v1819 = vpack.c.b16 %v1781, %v1781
        %v1820 = vpack.c.b16 %v1783, %v1782
        %v1821 = vpack.c.b16 %v1784, %v1784
        %v1822 = vpack.c.b16 %v1786, %v1785
        %v1823 = vpack.c.b16 %v1787, %v1787
        %v1824 = vpack.c.b16 %v1789, %v1788
        %v1825 = vpack.c.b16 %v1790, %v1790
        %v1826 = vpack.c.b16 %v1792, %v1791
        %v1827 = vpack.c.b16 %v1793, %v1793
        %v1828 = vpack.c.b16 %v1795, %v1794
        %v1829 = vpack.c.b16 %v1796, %v1796
        %v1830 = vpack.c.b16 %v1798, %v1797
        %v1831 = vpack.c.b16 %v1799, %v1799
        %v1832 = vrot.slane %v1800, 1
        %v1833 = vrot.slane %v1801, 1
        %v1834 = vsel %vm934, %v1832, %v1833
        %v1835 = vrot.slane %v1802, 1
        %v1836 = vrot.slane %v1803, 1
        %v1837 = vsel %vm934, %v1835, %v1836
        %v1838 = vrot.slane %v1804, 1
        %v1839 = vrot.slane %v1805, 1
        %v1840 = vsel %vm934, %v1838, %v1839
        %v1841 = vrot.slane %v1806, 1
        %v1842 = vrot.slane %v1807, 1
        %v1843 = vsel %vm934, %v1841, %v1842
        %v1844 = vrot.slane %v1808, 1
        %v1845 = vrot.slane %v1809, 1
        %v1846 = vsel %vm934, %v1844, %v1845
        %v1847 = vrot.slane %v1810, 1
        %v1848 = vrot.slane %v1811, 1
        %v1849 = vsel %vm934, %v1847, %v1848
        %v1850 = vrot.slane %v1812, 1
        %v1851 = vrot.slane %v1813, 1
        %v1852 = vsel %vm934, %v1850, %v1851
        %v1853 = vrot.slane %v1814, 1
        %v1854 = vrot.slane %v1815, 1
        %v1855 = vsel %vm934, %v1853, %v1854
        %v1856 = vrot.slane %v1816, 1
        %v1857 = vrot.slane %v1817, 1
        %v1858 = vsel %vm934, %v1856, %v1857
        %v1859 = vrot.slane %v1818, 1
        %v1860 = vrot.slane %v1819, 1
        %v1861 = vsel %vm934, %v1859, %v1860
        %v1862 = vrot.slane %v1820, 1
        %v1863 = vrot.slane %v1821, 1
        %v1864 = vsel %vm934, %v1862, %v1863
        %v1865 = vrot.slane %v1822, 1
        %v1866 = vrot.slane %v1823, 1
        %v1867 = vsel %vm934, %v1865, %v1866
        %v1868 = vrot.slane %v1824, 1
        %v1869 = vrot.slane %v1825, 1
        %v1870 = vsel %vm934, %v1868, %v1869
        %v1871 = vrot.slane %v1826, 1
        %v1872 = vrot.slane %v1827, 1
        %v1873 = vsel %vm934, %v1871, %v1872
        %v1874 = vrot.slane %v1828, 1
        %v1875 = vrot.slane %v1829, 1
        %v1876 = vsel %vm934, %v1874, %v1875
        %v1877 = vrot.slane %v1830, 1
        %v1878 = vrot.slane %v1831, 1
        %v1879 = vsel %vm934, %v1877, %v1878
        %1896 = vst [vmem:[#allocation2 + $0x10] sm:$0xff] %v1834
        %1897 = vst [vmem:[#allocation2 + $0x28] sm:$0xff] %v1837
        %1898 = vst [vmem:[#allocation2 + $0x40] sm:$0xff] %v1840
        %1899 = vst [vmem:[#allocation2 + $0x58] sm:$0xff] %v1843
        %1900 = vst [vmem:[#allocation2 + $0x70] sm:$0xff] %v1846
        %1901 = vst [vmem:[#allocation2 + $0x88] sm:$0xff] %v1849
        %1902 = vst [vmem:[#allocation2 + $0xa0] sm:$0xff] %v1852
        %1903 = vst [vmem:[#allocation2 + $0xb8] sm:$0xff] %v1855
        %1904 = vst [vmem:[#allocation2 + $0xd0] sm:$0xff] %v1858
        %1905 = vst [vmem:[#allocation2 + $0xe8] sm:$0xff] %v1861
        %1906 = vst [vmem:[#allocation2 + $0x100] sm:$0xff] %v1864
        %1907 = vst [vmem:[#allocation2 + $0x118] sm:$0xff] %v1867
        %1908 = vst [vmem:[#allocation2 + $0x130] sm:$0xff] %v1870
        %1909 = vst [vmem:[#allocation2 + $0x148] sm:$0xff] %v1873
        %1910 = vst [vmem:[#allocation2 + $0x160] sm:$0xff] %v1876
        %1911 = vst [vmem:[#allocation2 + $0x178] sm:$0xff] %v1879
        %v1912 = vld [vmem:[#allocation2] sm:$0xff]
        %v1913 = vld [vmem:[#allocation2 + $0x8] sm:$0xff]
        %v1914 = vld [vmem:[#allocation2 + $0x10] sm:$0xff]
        %v1915 = vld [vmem:[#allocation2 + $0x18] sm:$0xff]
        %v1916 = vld [vmem:[#allocation2 + $0x20] sm:$0xff]
        %v1917 = vld [vmem:[#allocation2 + $0x28] sm:$0xff]
        %v1918 = vld [vmem:[#allocation2 + $0x30] sm:$0xff]
        %v1919 = vld [vmem:[#allocation2 + $0x38] sm:$0xff]
        %v1920 = vld [vmem:[#allocation2 + $0x40] sm:$0xff]
        %v1921 = vld [vmem:[#allocation2 + $0x48] sm:$0xff]
        %v1922 = vld [vmem:[#allocation2 + $0x50] sm:$0xff]
        %v1923 = vld [vmem:[#allocation2 + $0x58] sm:$0xff]
        %v1924 = vld [vmem:[#allocation2 + $0x60] sm:$0xff]
        %v1925 = vld [vmem:[#allocation2 + $0x68] sm:$0xff]
        %v1926 = vld [vmem:[#allocation2 + $0x70] sm:$0xff]
        %v1927 = vld [vmem:[#allocation2 + $0x78] sm:$0xff]
        %v1928 = vld [vmem:[#allocation2 + $0x80] sm:$0xff]
        %v1929 = vld [vmem:[#allocation2 + $0x88] sm:$0xff]
        %v1930 = vld [vmem:[#allocation2 + $0x90] sm:$0xff]
        %v1931 = vld [vmem:[#allocation2 + $0x98] sm:$0xff]
        %v1932 = vld [vmem:[#allocation2 + $0xa0] sm:$0xff]
        %v1933 = vld [vmem:[#allocation2 + $0xa8] sm:$0xff]
        %v1934 = vld [vmem:[#allocation2 + $0xb0] sm:$0xff]
        %v1935 = vld [vmem:[#allocation2 + $0xb8] sm:$0xff]
        %v1936 = vld [vmem:[#allocation2 + $0xc0] sm:$0xff]
        %v1937 = vld [vmem:[#allocation2 + $0xc8] sm:$0xff]
        %v1938 = vld [vmem:[#allocation2 + $0xd0] sm:$0xff]
        %v1939 = vld [vmem:[#allocation2 + $0xd8] sm:$0xff]
        %v1940 = vld [vmem:[#allocation2 + $0xe0] sm:$0xff]
        %v1941 = vld [vmem:[#allocation2 + $0xe8] sm:$0xff]
        %v1942 = vld [vmem:[#allocation2 + $0xf0] sm:$0xff]
        %v1943 = vld [vmem:[#allocation2 + $0xf8] sm:$0xff]
        %v1944 = vld [vmem:[#allocation2 + $0x100] sm:$0xff]
        %v1945 = vld [vmem:[#allocation2 + $0x108] sm:$0xff]
        %v1946 = vld [vmem:[#allocation2 + $0x110] sm:$0xff]
        %v1947 = vld [vmem:[#allocation2 + $0x118] sm:$0xff]
        %v1948 = vld [vmem:[#allocation2 + $0x120] sm:$0xff]
        %v1949 = vld [vmem:[#allocation2 + $0x128] sm:$0xff]
        %v1950 = vld [vmem:[#allocation2 + $0x130] sm:$0xff]
        %v1951 = vld [vmem:[#allocation2 + $0x138] sm:$0xff]
        %v1952 = vld [vmem:[#allocation2 + $0x140] sm:$0xff]
        %v1953 = vld [vmem:[#allocation2 + $0x148] sm:$0xff]
        %v1954 = vld [vmem:[#allocation2 + $0x150] sm:$0xff]
        %v1955 = vld [vmem:[#allocation2 + $0x158] sm:$0xff]
        %v1956 = vld [vmem:[#allocation2 + $0x160] sm:$0xff]
        %v1957 = vld [vmem:[#allocation2 + $0x168] sm:$0xff]
        %v1958 = vld [vmem:[#allocation2 + $0x170] sm:$0xff]
        %v1959 = vld [vmem:[#allocation2 + $0x178] sm:$0xff]
        %v1960 = vld [vmem:[%s1 + $0xc0] sm:$0xf]
        %v1961 = vld [vmem:[%s1 + $0xc4] sm:$0xf]
        %v1962 = vld [vmem:[%s1 + $0xc8] sm:$0xf]
        %v1963 = vld [vmem:[%s1 + $0xcc] sm:$0xf]
        %v1964 = vld [vmem:[%s1 + $0xd0] sm:$0xf]
        %v1965 = vld [vmem:[%s1 + $0xd4] sm:$0xf]
        %v1966 = vld [vmem:[%s1 + $0xd8] sm:$0xf]
        %v1967 = vld [vmem:[%s1 + $0xdc] sm:$0xf]
        %v1968 = vld [vmem:[%s1 + $0xe0] sm:$0xf]
        %v1969 = vld [vmem:[%s1 + $0xe4] sm:$0xf]
        %v1970 = vld [vmem:[%s1 + $0xe8] sm:$0xf]
        %v1971 = vld [vmem:[%s1 + $0xec] sm:$0xf]
        %v1972 = vld [vmem:[%s1 + $0xf0] sm:$0xf]
        %v1973 = vld [vmem:[%s1 + $0xf4] sm:$0xf]
        %v1974 = vld [vmem:[%s1 + $0xf8] sm:$0xf]
        %v1975 = vld [vmem:[%s1 + $0xfc] sm:$0xf]
        %v1976 = vld [vmem:[%s1 + $0x100] sm:$0xf]
        %v1977 = vld [vmem:[%s1 + $0x104] sm:$0xf]
        %v1978 = vld [vmem:[%s1 + $0x108] sm:$0xf]
        %v1979 = vld [vmem:[%s1 + $0x10c] sm:$0xf]
        %v1980 = vld [vmem:[%s1 + $0x110] sm:$0xf]
        %v1981 = vld [vmem:[%s1 + $0x114] sm:$0xf]
        %v1982 = vld [vmem:[%s1 + $0x118] sm:$0xf]
        %v1983 = vld [vmem:[%s1 + $0x11c] sm:$0xf]
        %v1984 = vld [vmem:[%s1 + $0x120] sm:$0xf]
        %v1985 = vld [vmem:[%s1 + $0x124] sm:$0xf]
        %v1986 = vld [vmem:[%s1 + $0x128] sm:$0xf]
        %v1987 = vld [vmem:[%s1 + $0x12c] sm:$0xf]
        %v1988 = vld [vmem:[%s1 + $0x130] sm:$0xf]
        %v1989 = vld [vmem:[%s1 + $0x134] sm:$0xf]
        %v1990 = vld [vmem:[%s1 + $0x138] sm:$0xf]
        %v1991 = vld [vmem:[%s1 + $0x13c] sm:$0xf]
        %v1992 = vld [vmem:[%s1 + $0x140] sm:$0xf]
        %v1993 = vld [vmem:[%s1 + $0x144] sm:$0xf]
        %v1994 = vld [vmem:[%s1 + $0x148] sm:$0xf]
        %v1995 = vld [vmem:[%s1 + $0x14c] sm:$0xf]
        %v1996 = vld [vmem:[%s1 + $0x150] sm:$0xf]
        %v1997 = vld [vmem:[%s1 + $0x154] sm:$0xf]
        %v1998 = vld [vmem:[%s1 + $0x158] sm:$0xf]
        %v1999 = vld [vmem:[%s1 + $0x15c] sm:$0xf]
        %v2000 = vld [vmem:[%s1 + $0x160] sm:$0xf]
        %v2001 = vld [vmem:[%s1 + $0x164] sm:$0xf]
        %v2002 = vld [vmem:[%s1 + $0x168] sm:$0xf]
        %v2003 = vld [vmem:[%s1 + $0x16c] sm:$0xf]
        %v2004 = vld [vmem:[%s1 + $0x170] sm:$0xf]
        %v2005 = vld [vmem:[%s1 + $0x174] sm:$0xf]
        %v2006 = vld [vmem:[%s1 + $0x178] sm:$0xf]
        %v2007 = vld [vmem:[%s1 + $0x17c] sm:$0xf]
        %v2056 = vunpack.c.l.b16 %v1960
        %v2057 = vunpack.c.l.b16 %v1961
        %v2058 = vunpack.c.l.b16 %v1962
        %v2059 = vunpack.c.l.b16 %v1963
        %v2060 = vunpack.c.l.b16 %v1964
        %v2061 = vunpack.c.l.b16 %v1965
        %v2062 = vunpack.c.l.b16 %v1966
        %v2063 = vunpack.c.l.b16 %v1967
        %v2064 = vunpack.c.l.b16 %v1968
        %v2065 = vunpack.c.l.b16 %v1969
        %v2066 = vunpack.c.l.b16 %v1970
        %v2067 = vunpack.c.l.b16 %v1971
        %v2068 = vunpack.c.l.b16 %v1972
        %v2069 = vunpack.c.l.b16 %v1973
        %v2070 = vunpack.c.l.b16 %v1974
        %v2071 = vunpack.c.l.b16 %v1975
        %v2072 = vunpack.c.l.b16 %v1976
        %v2073 = vunpack.c.l.b16 %v1977
        %v2074 = vunpack.c.l.b16 %v1978
        %v2075 = vunpack.c.l.b16 %v1979
        %v2076 = vunpack.c.l.b16 %v1980
        %v2077 = vunpack.c.l.b16 %v1981
        %v2078 = vunpack.c.l.b16 %v1982
        %v2079 = vunpack.c.l.b16 %v1983
        %v2080 = vunpack.c.l.b16 %v1984
        %v2081 = vunpack.c.l.b16 %v1985
        %v2082 = vunpack.c.l.b16 %v1986
        %v2083 = vunpack.c.l.b16 %v1987
        %v2084 = vunpack.c.l.b16 %v1988
        %v2085 = vunpack.c.l.b16 %v1989
        %v2086 = vunpack.c.l.b16 %v1990
        %v2087 = vunpack.c.l.b16 %v1991
        %v2088 = vunpack.c.l.b16 %v1992
        %v2089 = vunpack.c.l.b16 %v1993
        %v2090 = vunpack.c.l.b16 %v1994
        %v2091 = vunpack.c.l.b16 %v1995
        %v2092 = vunpack.c.l.b16 %v1996
        %v2093 = vunpack.c.l.b16 %v1997
        %v2094 = vunpack.c.l.b16 %v1998
        %v2095 = vunpack.c.l.b16 %v1999
        %v2096 = vunpack.c.l.b16 %v2000
        %v2097 = vunpack.c.l.b16 %v2001
        %v2098 = vunpack.c.l.b16 %v2002
        %v2099 = vunpack.c.l.b16 %v2003
        %v2100 = vunpack.c.l.b16 %v2004
        %v2101 = vunpack.c.l.b16 %v2005
        %v2102 = vunpack.c.l.b16 %v2006
        %v2103 = vunpack.c.l.b16 %v2007
        %v2104 = vpack.c.b16 %v2057, %v2056
        %v2105 = vpack.c.b16 %v2059, %v2058
        %v2106 = vpack.c.b16 %v2061, %v2060
        %v2107 = vpack.c.b16 %v2063, %v2062
        %v2108 = vpack.c.b16 %v2065, %v2064
        %v2109 = vpack.c.b16 %v2067, %v2066
        %v2110 = vpack.c.b16 %v2069, %v2068
        %v2111 = vpack.c.b16 %v2071, %v2070
        %v2112 = vpack.c.b16 %v2073, %v2072
        %v2113 = vpack.c.b16 %v2075, %v2074
        %v2114 = vpack.c.b16 %v2077, %v2076
        %v2115 = vpack.c.b16 %v2079, %v2078
        %v2116 = vpack.c.b16 %v2081, %v2080
        %v2117 = vpack.c.b16 %v2083, %v2082
        %v2118 = vpack.c.b16 %v2085, %v2084
        %v2119 = vpack.c.b16 %v2087, %v2086
        %v2120 = vpack.c.b16 %v2089, %v2088
        %v2121 = vpack.c.b16 %v2091, %v2090
        %v2122 = vpack.c.b16 %v2093, %v2092
        %v2123 = vpack.c.b16 %v2095, %v2094
        %v2124 = vpack.c.b16 %v2097, %v2096
        %v2125 = vpack.c.b16 %v2099, %v2098
        %v2126 = vpack.c.b16 %v2101, %v2100
        %v2127 = vpack.c.b16 %v2103, %v2102
        %2152 = vmatprep.subr.bf16.mxu0 0
        %2153 = vmatpush1.bf16.msra.mxu0 %v2104
        %2154 = vmatprep.subr.bf16.mxu0 0
        %2155 = vmatpush1.bf16.msra.mxu0 %v2105
        %2156 = vmatprep.subr.bf16.mxu0 0
        %2157 = vmatpush1.bf16.msra.mxu0 %v2106
        %2158 = vmatprep.subr.bf16.mxu0 0
        %2159 = vmatpush1.bf16.msra.mxu0 %v2107
        %2160 = vmatprep.subr.bf16.mxu0 0
        %2161 = vmatpush1.bf16.msra.mxu0 %v2108
        %2162 = vmatprep.subr.bf16.mxu0 0
        %2163 = vmatpush1.bf16.msra.mxu0 %v2109
        %2164 = vmatprep.subr.bf16.mxu0 0
        %2165 = vmatpush1.bf16.msra.mxu0 %v2110
        %2166 = vmatprep.subr.bf16.mxu0 0
        %2167 = vmatpush1.bf16.msra.mxu0 %v2111
        %2168 = vmatprep.subr.bf16.mxu0 0
        %2169 = vmatpush1.bf16.msra.mxu0 %v2112
        %2170 = vmatprep.subr.bf16.mxu0 0
        %2171 = vmatpush1.bf16.msra.mxu0 %v2113
        %2172 = vmatprep.subr.bf16.mxu0 0
        %2173 = vmatpush1.bf16.msra.mxu0 %v2114
        %2174 = vmatprep.subr.bf16.mxu0 0
        %2175 = vmatpush1.bf16.msra.mxu0 %v2115
        %2176 = vmatprep.subr.bf16.mxu0 0
        %2177 = vmatpush1.bf16.msra.mxu0 %v2116
        %2178 = vmatprep.subr.bf16.mxu0 0
        %2179 = vmatpush1.bf16.msra.mxu0 %v2117
        %2180 = vmatprep.subr.bf16.mxu0 0
        %2181 = vmatpush1.bf16.msra.mxu0 %v2118
        %2182 = vmatprep.subr.bf16.mxu0 0
        %2183 = vmatpush1.bf16.msra.mxu0 %v2119
        %2184 = vmatprep.mubr.bf16.mxu0 %v1913
        %2185 = vmatmul.mubr.bf16.gmra.mrb[0].mxu0 %v1912
        %v2186 = vpop.f32.mrb[0].mxu0
        %v2187 = vadd.f32 0.0, %v2186
        %v2188 = vpop.f32.mrb[0].mxu0
        %v2189 = vpop.f32.mrb[0].mxu0
        %v2190 = vadd.f32 0.0, %v2189
        %v2191 = vpop.f32.mrb[0].mxu0
        %2192 = vmatprep.mubr.bf16.mxu0 %v1916
        %2193 = vmatmul.mubr.bf16.gmra.mrb[0].mxu0 %v1915
        %v2194 = vpop.f32.mrb[0].mxu0
        %v2195 = vadd.f32 0.0, %v2194
        %v2196 = vpop.f32.mrb[0].mxu0
        %v2197 = vpop.f32.mrb[0].mxu0
        %v2198 = vadd.f32 0.0, %v2197
        %v2199 = vpop.f32.mrb[0].mxu0
        %2200 = vmatprep.mubr.bf16.mxu0 %v1919
        %2201 = vmatmul.mubr.bf16.gmra.mrb[0].mxu0 %v1918
        %v2202 = vpop.f32.mrb[0].mxu0
        %v2203 = vadd.f32 0.0, %v2202
        %v2204 = vpop.f32.mrb[0].mxu0
        %v2205 = vpop.f32.mrb[0].mxu0
        %v2206 = vadd.f32 0.0, %v2205
        %v2207 = vpop.f32.mrb[0].mxu0
        %2208 = vmatprep.mubr.bf16.mxu0 %v1922
        %2209 = vmatmul.mubr.bf16.gmra.mrb[0].mxu0 %v1921
        %v2210 = vpop.f32.mrb[0].mxu0
        %v2211 = vadd.f32 0.0, %v2210
        %v2212 = vpop.f32.mrb[0].mxu0
        %v2213 = vpop.f32.mrb[0].mxu0
        %v2214 = vadd.f32 0.0, %v2213
        %v2215 = vpop.f32.mrb[0].mxu0
        %2216 = vmatprep.mubr.bf16.mxu0 %v1925
        %2217 = vmatmul.mubr.bf16.gmra.mrb[0].mxu0 %v1924
        %v2218 = vpop.f32.mrb[0].mxu0
        %v2219 = vadd.f32 0.0, %v2218
        %v2220 = vpop.f32.mrb[0].mxu0
        %v2221 = vpop.f32.mrb[0].mxu0
        %v2222 = vadd.f32 0.0, %v2221
        %v2223 = vpop.f32.mrb[0].mxu0
        %2224 = vmatprep.mubr.bf16.mxu0 %v1928
        %2225 = vmatmul.mubr.bf16.gmra.mrb[0].mxu0 %v1927
        %v2226 = vpop.f32.mrb[0].mxu0
        %v2227 = vadd.f32 0.0, %v2226
        %v2228 = vpop.f32.mrb[0].mxu0
        %v2229 = vpop.f32.mrb[0].mxu0
        %v2230 = vadd.f32 0.0, %v2229
        %v2231 = vpop.f32.mrb[0].mxu0
        %2232 = vmatprep.mubr.bf16.mxu0 %v1931
        %2233 = vmatmul.mubr.bf16.gmra.mrb[0].mxu0 %v1930
        %v2234 = vpop.f32.mrb[0].mxu0
        %v2235 = vadd.f32 0.0, %v2234
        %v2236 = vpop.f32.mrb[0].mxu0
        %v2237 = vpop.f32.mrb[0].mxu0
        %v2238 = vadd.f32 0.0, %v2237
        %v2239 = vpop.f32.mrb[0].mxu0
        %2240 = vmatprep.mubr.bf16.mxu0 %v1934
        %2241 = vmatmul.mubr.bf16.gmra.mrb[0].mxu0 %v1933
        %v2242 = vpop.f32.mrb[0].mxu0
        %v2243 = vadd.f32 0.0, %v2242
        %v2244 = vpop.f32.mrb[0].mxu0
        %v2245 = vpop.f32.mrb[0].mxu0
        %v2246 = vadd.f32 0.0, %v2245
        %v2247 = vpop.f32.mrb[0].mxu0
        %2248 = vmatprep.mubr.bf16.mxu0 %v1937
        %2249 = vmatmul.mubr.bf16.gmra.mrb[0].mxu0 %v1936
        %v2250 = vpop.f32.mrb[0].mxu0
        %v2251 = vadd.f32 0.0, %v2250
        %v2252 = vpop.f32.mrb[0].mxu0
        %v2253 = vpop.f32.mrb[0].mxu0
        %v2254 = vadd.f32 0.0, %v2253
        %v2255 = vpop.f32.mrb[0].mxu0
        %2256 = vmatprep.mubr.bf16.mxu0 %v1940
        %2257 = vmatmul.mubr.bf16.gmra.mrb[0].mxu0 %v1939
        %v2258 = vpop.f32.mrb[0].mxu0
        %v2259 = vadd.f32 0.0, %v2258
        %v2260 = vpop.f32.mrb[0].mxu0
        %v2261 = vpop.f32.mrb[0].mxu0
        %v2262 = vadd.f32 0.0, %v2261
        %v2263 = vpop.f32.mrb[0].mxu0
        %2264 = vmatprep.mubr.bf16.mxu0 %v1943
        %2265 = vmatmul.mubr.bf16.gmra.mrb[0].mxu0 %v1942
        %v2266 = vpop.f32.mrb[0].mxu0
        %v2267 = vadd.f32 0.0, %v2266
        %v2268 = vpop.f32.mrb[0].mxu0
        %v2269 = vpop.f32.mrb[0].mxu0
        %v2270 = vadd.f32 0.0, %v2269
        %v2271 = vpop.f32.mrb[0].mxu0
        %2272 = vmatprep.mubr.bf16.mxu0 %v1946
        %2273 = vmatmul.mubr.bf16.gmra.mrb[0].mxu0 %v1945
        %v2274 = vpop.f32.mrb[0].mxu0
        %v2275 = vadd.f32 0.0, %v2274
        %v2276 = vpop.f32.mrb[0].mxu0
        %v2277 = vpop.f32.mrb[0].mxu0
        %v2278 = vadd.f32 0.0, %v2277
        %v2279 = vpop.f32.mrb[0].mxu0
        %2280 = vmatprep.mubr.bf16.mxu0 %v1949
        %2281 = vmatmul.mubr.bf16.gmra.mrb[0].mxu0 %v1948
        %v2282 = vpop.f32.mrb[0].mxu0
        %v2283 = vadd.f32 0.0, %v2282
        %v2284 = vpop.f32.mrb[0].mxu0
        %v2285 = vpop.f32.mrb[0].mxu0
        %v2286 = vadd.f32 0.0, %v2285
        %v2287 = vpop.f32.mrb[0].mxu0
        %2288 = vmatprep.mubr.bf16.mxu0 %v1952
        %2289 = vmatmul.mubr.bf16.gmra.mrb[0].mxu0 %v1951
        %v2290 = vpop.f32.mrb[0].mxu0
        %v2291 = vadd.f32 0.0, %v2290
        %v2292 = vpop.f32.mrb[0].mxu0
        %v2293 = vpop.f32.mrb[0].mxu0
        %v2294 = vadd.f32 0.0, %v2293
        %v2295 = vpop.f32.mrb[0].mxu0
        %2296 = vmatprep.mubr.bf16.mxu0 %v1955
        %2297 = vmatmul.mubr.bf16.gmra.mrb[0].mxu0 %v1954
        %v2298 = vpop.f32.mrb[0].mxu0
        %v2299 = vadd.f32 0.0, %v2298
        %v2300 = vpop.f32.mrb[0].mxu0
        %v2301 = vpop.f32.mrb[0].mxu0
        %v2302 = vadd.f32 0.0, %v2301
        %v2303 = vpop.f32.mrb[0].mxu0
        %2304 = vmatprep.mubr.bf16.mxu0 %v1958
        %2305 = vmatmul.mubr.bf16.gmra.mrb[0].mxu0 %v1957
        %v2306 = vpop.f32.mrb[0].mxu0
        %v2307 = vadd.f32 0.0, %v2306
        %v2308 = vpop.f32.mrb[0].mxu0
        %v2309 = vpop.f32.mrb[0].mxu0
        %v2310 = vadd.f32 0.0, %v2309
        %v2311 = vpop.f32.mrb[0].mxu0
        %2312 = vdwg.mxu0
        %2313 = vmatprep.subr.bf16.mxu0 0
        %2314 = vmatpush1.bf16.msra.mxu0 %v2120
        %2315 = vmatprep.subr.bf16.mxu0 0
        %2316 = vmatpush1.bf16.msra.mxu0 %v2121
        %2317 = vmatprep.subr.bf16.mxu0 0
        %2318 = vmatpush1.bf16.msra.mxu0 %v2122
        %2319 = vmatprep.subr.bf16.mxu0 0
        %2320 = vmatpush1.bf16.msra.mxu0 %v2123
        %2321 = vmatprep.subr.bf16.mxu0 0
        %2322 = vmatpush1.bf16.msra.mxu0 %v2124
        %2323 = vmatprep.subr.bf16.mxu0 0
        %2324 = vmatpush1.bf16.msra.mxu0 %v2125
        %2325 = vmatprep.subr.bf16.mxu0 0
        %2326 = vmatpush1.bf16.msra.mxu0 %v2126
        %2327 = vmatprep.subr.bf16.mxu0 0
        %2328 = vmatpush1.bf16.msra.mxu0 %v2127
        %2329 = vmatprep.subr.bf16.mxu0 0
        %2330 = vmatpush1.bf16.msra.mxu0 0
        %2331 = vmatprep.subr.bf16.mxu0 0
        %2332 = vmatpush1.bf16.msra.mxu0 0
        %2333 = vmatprep.subr.bf16.mxu0 0
        %2334 = vmatpush1.bf16.msra.mxu0 0
        %2335 = vmatprep.subr.bf16.mxu0 0
        %2336 = vmatpush1.bf16.msra.mxu0 0
        %2337 = vmatprep.subr.bf16.mxu0 0
        %2338 = vmatpush1.bf16.msra.mxu0 0
        %2339 = vmatprep.subr.bf16.mxu0 0
        %2340 = vmatpush1.bf16.msra.mxu0 0
        %2341 = vmatprep.subr.bf16.mxu0 0
        %2342 = vmatpush1.bf16.msra.mxu0 0
        %2343 = vmatprep.subr.bf16.mxu0 0
        %2344 = vmatpush1.bf16.msra.mxu0 0
        %2345 = vmatprep.mubr.bf16.mxu0 0
        %2346 = vmatmul.mubr.bf16.gmra.mrb[0].mxu0 %v1914
        %v2347 = vpop.f32.mrb[0].mxu0
        %v2348 = vadd.f32 %v2187, %v2347
        %v2349 = vpop.f32.mrb[0].mxu0
        %v2350 = vpop.f32.mrb[0].mxu0
        %v2351 = vadd.f32 %v2190, %v2350
        %v2352 = vpop.f32.mrb[0].mxu0
        %2353 = vmatprep.mubr.bf16.mxu0 0
        %2354 = vmatmul.mubr.bf16.gmra.mrb[0].mxu0 %v1917
        %v2355 = vpop.f32.mrb[0].mxu0
        %v2356 = vadd.f32 %v2195, %v2355
        %v2357 = vpop.f32.mrb[0].mxu0
        %v2358 = vpop.f32.mrb[0].mxu0
        %v2359 = vadd.f32 %v2198, %v2358
        %v2360 = vpop.f32.mrb[0].mxu0
        %2361 = vmatprep.mubr.bf16.mxu0 0
        %2362 = vmatmul.mubr.bf16.gmra.mrb[0].mxu0 %v1920
        %v2363 = vpop.f32.mrb[0].mxu0
        %v2364 = vadd.f32 %v2203, %v2363
        %v2365 = vpop.f32.mrb[0].mxu0
        %v2366 = vpop.f32.mrb[0].mxu0
        %v2367 = vadd.f32 %v2206, %v2366
        %v2368 = vpop.f32.mrb[0].mxu0
        %2369 = vmatprep.mubr.bf16.mxu0 0
        %2370 = vmatmul.mubr.bf16.gmra.mrb[0].mxu0 %v1923
        %v2371 = vpop.f32.mrb[0].mxu0
        %v2372 = vadd.f32 %v2211, %v2371
        %v2373 = vpop.f32.mrb[0].mxu0
        %v2374 = vpop.f32.mrb[0].mxu0
        %v2375 = vadd.f32 %v2214, %v2374
        %v2376 = vpop.f32.mrb[0].mxu0
        %2377 = vmatprep.mubr.bf16.mxu0 0
        %2378 = vmatmul.mubr.bf16.gmra.mrb[0].mxu0 %v1926
        %v2379 = vpop.f32.mrb[0].mxu0
        %v2380 = vadd.f32 %v2219, %v2379
        %v2381 = vpop.f32.mrb[0].mxu0
        %v2382 = vpop.f32.mrb[0].mxu0
        %v2383 = vadd.f32 %v2222, %v2382
        %v2384 = vpop.f32.mrb[0].mxu0
        %2385 = vmatprep.mubr.bf16.mxu0 0
        %2386 = vmatmul.mubr.bf16.gmra.mrb[0].mxu0 %v1929
        %v2387 = vpop.f32.mrb[0].mxu0
        %v2388 = vadd.f32 %v2227, %v2387
        %v2389 = vpop.f32.mrb[0].mxu0
        %v2390 = vpop.f32.mrb[0].mxu0
        %v2391 = vadd.f32 %v2230, %v2390
        %v2392 = vpop.f32.mrb[0].mxu0
        %2393 = vmatprep.mubr.bf16.mxu0 0
        %2394 = vmatmul.mubr.bf16.gmra.mrb[0].mxu0 %v1932
        %v2395 = vpop.f32.mrb[0].mxu0
        %v2396 = vadd.f32 %v2235, %v2395
        %v2397 = vpop.f32.mrb[0].mxu0
        %v2398 = vpop.f32.mrb[0].mxu0
        %v2399 = vadd.f32 %v2238, %v2398
        %v2400 = vpop.f32.mrb[0].mxu0
        %2401 = vmatprep.mubr.bf16.mxu0 0
        %2402 = vmatmul.mubr.bf16.gmra.mrb[0].mxu0 %v1935
        %v2403 = vpop.f32.mrb[0].mxu0
        %v2404 = vadd.f32 %v2243, %v2403
        %v2405 = vpop.f32.mrb[0].mxu0
        %v2406 = vpop.f32.mrb[0].mxu0
        %v2407 = vadd.f32 %v2246, %v2406
        %v2408 = vpop.f32.mrb[0].mxu0
        %2409 = vmatprep.mubr.bf16.mxu0 0
        %2410 = vmatmul.mubr.bf16.gmra.mrb[0].mxu0 %v1938
        %v2411 = vpop.f32.mrb[0].mxu0
        %v2412 = vadd.f32 %v2251, %v2411
        %v2413 = vpop.f32.mrb[0].mxu0
        %v2414 = vpop.f32.mrb[0].mxu0
        %v2415 = vadd.f32 %v2254, %v2414
        %v2416 = vpop.f32.mrb[0].mxu0
        %2417 = vmatprep.mubr.bf16.mxu0 0
        %2418 = vmatmul.mubr.bf16.gmra.mrb[0].mxu0 %v1941
        %v2419 = vpop.f32.mrb[0].mxu0
        %v2420 = vadd.f32 %v2259, %v2419
        %v2421 = vpop.f32.mrb[0].mxu0
        %v2422 = vpop.f32.mrb[0].mxu0
        %v2423 = vadd.f32 %v2262, %v2422
        %v2424 = vpop.f32.mrb[0].mxu0
        %2425 = vmatprep.mubr.bf16.mxu0 0
        %2426 = vmatmul.mubr.bf16.gmra.mrb[0].mxu0 %v1944
        %v2427 = vpop.f32.mrb[0].mxu0
        %v2428 = vadd.f32 %v2267, %v2427
        %v2429 = vpop.f32.mrb[0].mxu0
        %v2430 = vpop.f32.mrb[0].mxu0
        %v2431 = vadd.f32 %v2270, %v2430
        %v2432 = vpop.f32.mrb[0].mxu0
        %2433 = vmatprep.mubr.bf16.mxu0 0
        %2434 = vmatmul.mubr.bf16.gmra.mrb[0].mxu0 %v1947
        %v2435 = vpop.f32.mrb[0].mxu0
        %v2436 = vadd.f32 %v2275, %v2435
        %v2437 = vpop.f32.mrb[0].mxu0
        %v2438 = vpop.f32.mrb[0].mxu0
        %v2439 = vadd.f32 %v2278, %v2438
        %v2440 = vpop.f32.mrb[0].mxu0
        %2441 = vmatprep.mubr.bf16.mxu0 0
        %2442 = vmatmul.mubr.bf16.gmra.mrb[0].mxu0 %v1950
        %v2443 = vpop.f32.mrb[0].mxu0
        %v2444 = vadd.f32 %v2283, %v2443
        %v2445 = vpop.f32.mrb[0].mxu0
        %v2446 = vpop.f32.mrb[0].mxu0
        %v2447 = vadd.f32 %v2286, %v2446
        %v2448 = vpop.f32.mrb[0].mxu0
        %2449 = vmatprep.mubr.bf16.mxu0 0
        %2450 = vmatmul.mubr.bf16.gmra.mrb[0].mxu0 %v1953
        %v2451 = vpop.f32.mrb[0].mxu0
        %v2452 = vadd.f32 %v2291, %v2451
        %v2453 = vpop.f32.mrb[0].mxu0
        %v2454 = vpop.f32.mrb[0].mxu0
        %v2455 = vadd.f32 %v2294, %v2454
        %v2456 = vpop.f32.mrb[0].mxu0
        %2457 = vmatprep.mubr.bf16.mxu0 0
        %2458 = vmatmul.mubr.bf16.gmra.mrb[0].mxu0 %v1956
        %v2459 = vpop.f32.mrb[0].mxu0
        %v2460 = vadd.f32 %v2299, %v2459
        %v2461 = vpop.f32.mrb[0].mxu0
        %v2462 = vpop.f32.mrb[0].mxu0
        %v2463 = vadd.f32 %v2302, %v2462
        %v2464 = vpop.f32.mrb[0].mxu0
        %2465 = vmatprep.mubr.bf16.mxu0 0
        %2466 = vmatmul.mubr.bf16.gmra.mrb[0].mxu0 %v1959
        %v2467 = vpop.f32.mrb[0].mxu0
        %v2468 = vadd.f32 %v2307, %v2467
        %v2469 = vpop.f32.mrb[0].mxu0
        %v2470 = vpop.f32.mrb[0].mxu0
        %v2471 = vadd.f32 %v2310, %v2470
        %v2472 = vpop.f32.mrb[0].mxu0
        %2473 = vdwg.mxu0
        %v2522 = vunpack.c.l.b16 %v1063
        %v2523 = vunpack.c.l.b16 %v1064
        %v2524 = vunpack.c.l.b16 %v1065
        %v2525 = vunpack.c.l.b16 %v1066
        %v2526 = vunpack.c.l.b16 %v1067
        %v2527 = vunpack.c.l.b16 %v1068
        %v2528 = vunpack.c.l.b16 %v1069
        %v2529 = vunpack.c.l.b16 %v1070
        %v2530 = vunpack.c.l.b16 %v1071
        %v2531 = vunpack.c.l.b16 %v1072
        %v2532 = vunpack.c.l.b16 %v1073
        %v2533 = vunpack.c.l.b16 %v1074
        %v2534 = vunpack.c.l.b16 %v1075
        %v2535 = vunpack.c.l.b16 %v1076
        %v2536 = vunpack.c.l.b16 %v1077
        %v2537 = vunpack.c.l.b16 %v1078
        %v2538 = vunpack.c.l.b16 %v1079
        %v2539 = vunpack.c.l.b16 %v1080
        %v2540 = vunpack.c.l.b16 %v1081
        %v2541 = vunpack.c.l.b16 %v1082
        %v2542 = vunpack.c.l.b16 %v1083
        %v2543 = vunpack.c.l.b16 %v1084
        %v2544 = vunpack.c.l.b16 %v1085
        %v2545 = vunpack.c.l.b16 %v1086
        %v2546 = vunpack.c.l.b16 %v1087
        %v2547 = vunpack.c.l.b16 %v1088
        %v2548 = vunpack.c.l.b16 %v1089
        %v2549 = vunpack.c.l.b16 %v1090
        %v2550 = vunpack.c.l.b16 %v1091
        %v2551 = vunpack.c.l.b16 %v1092
        %v2552 = vunpack.c.l.b16 %v1093
        %v2553 = vunpack.c.l.b16 %v1094
        %v2554 = vunpack.c.l.b16 %v1095
        %v2555 = vunpack.c.l.b16 %v1096
        %v2556 = vunpack.c.l.b16 %v1097
        %v2557 = vunpack.c.l.b16 %v1098
        %v2558 = vunpack.c.l.b16 %v1099
        %v2559 = vunpack.c.l.b16 %v1100
        %v2560 = vunpack.c.l.b16 %v1101
        %v2561 = vunpack.c.l.b16 %v1102
        %v2562 = vunpack.c.l.b16 %v1103
        %v2563 = vunpack.c.l.b16 %v1104
        %v2564 = vunpack.c.l.b16 %v1105
        %v2565 = vunpack.c.l.b16 %v1106
        %v2566 = vunpack.c.l.b16 %v1107
        %v2567 = vunpack.c.l.b16 %v1108
        %v2568 = vunpack.c.l.b16 %v1109
        %v2569 = vunpack.c.l.b16 %v1110
        %v2570 = vpack.c.b16 %v2523, %v2522
        %v2571 = vpack.c.b16 %v2525, %v2524
        %v2572 = vpack.c.b16 %v2527, %v2526
        %v2573 = vpack.c.b16 %v2529, %v2528
        %v2574 = vpack.c.b16 %v2531, %v2530
        %v2575 = vpack.c.b16 %v2533, %v2532
        %v2576 = vpack.c.b16 %v2535, %v2534
        %v2577 = vpack.c.b16 %v2537, %v2536
        %v2578 = vpack.c.b16 %v2539, %v2538
        %v2579 = vpack.c.b16 %v2541, %v2540
        %v2580 = vpack.c.b16 %v2543, %v2542
        %v2581 = vpack.c.b16 %v2545, %v2544
        %v2582 = vpack.c.b16 %v2547, %v2546
        %v2583 = vpack.c.b16 %v2549, %v2548
        %v2584 = vpack.c.b16 %v2551, %v2550
        %v2585 = vpack.c.b16 %v2553, %v2552
        %v2586 = vpack.c.b16 %v2555, %v2554
        %v2587 = vpack.c.b16 %v2557, %v2556
        %v2588 = vpack.c.b16 %v2559, %v2558
        %v2589 = vpack.c.b16 %v2561, %v2560
        %v2590 = vpack.c.b16 %v2563, %v2562
        %v2591 = vpack.c.b16 %v2565, %v2564
        %v2592 = vpack.c.b16 %v2567, %v2566
        %v2593 = vpack.c.b16 %v2569, %v2568
        %2618 = vmatprep.subr.bf16.mxu0 0
        %2619 = vmatpush1.bf16.msra.mxu0 %v2570
        %2620 = vmatprep.subr.bf16.mxu0 0
        %2621 = vmatpush1.bf16.msra.mxu0 %v2571
        %2622 = vmatprep.subr.bf16.mxu0 0
        %2623 = vmatpush1.bf16.msra.mxu0 %v2572
        %2624 = vmatprep.subr.bf16.mxu0 0
        %2625 = vmatpush1.bf16.msra.mxu0 %v2573
        %2626 = vmatprep.subr.bf16.mxu0 0
        %2627 = vmatpush1.bf16.msra.mxu0 %v2574
        %2628 = vmatprep.subr.bf16.mxu0 0
        %2629 = vmatpush1.bf16.msra.mxu0 %v2575
        %2630 = vmatprep.subr.bf16.mxu0 0
        %2631 = vmatpush1.bf16.msra.mxu0 %v2576
        %2632 = vmatprep.subr.bf16.mxu0 0
        %2633 = vmatpush1.bf16.msra.mxu0 %v2577
        %2634 = vmatprep.subr.bf16.mxu0 0
        %2635 = vmatpush1.bf16.msra.mxu0 %v2578
        %2636 = vmatprep.subr.bf16.mxu0 0
        %2637 = vmatpush1.bf16.msra.mxu0 %v2579
        %2638 = vmatprep.subr.bf16.mxu0 0
        %2639 = vmatpush1.bf16.msra.mxu0 %v2580
        %2640 = vmatprep.subr.bf16.mxu0 0
        %2641 = vmatpush1.bf16.msra.mxu0 %v2581
        %2642 = vmatprep.subr.bf16.mxu0 0
        %2643 = vmatpush1.bf16.msra.mxu0 %v2582
        %2644 = vmatprep.subr.bf16.mxu0 0
        %2645 = vmatpush1.bf16.msra.mxu0 %v2583
        %2646 = vmatprep.subr.bf16.mxu0 0
        %2647 = vmatpush1.bf16.msra.mxu0 %v2584
        %2648 = vmatprep.subr.bf16.mxu0 0
        %2649 = vmatpush1.bf16.msra.mxu0 %v2585
        %2650 = vmatprep.mubr.bf16.mxu0 %v1016
        %2651 = vmatmul.mubr.bf16.gmra.mrb[0].mxu0 %v1015
        %v2652 = vpop.f32.mrb[0].mxu0
        %v2653 = vadd.f32 %v2348, %v2652
        %v2654 = vpop.f32.mrb[0].mxu0
        %v2655 = vpop.f32.mrb[0].mxu0
        %v2656 = vadd.f32 %v2351, %v2655
        %v2657 = vpop.f32.mrb[0].mxu0
        %2658 = vmatprep.mubr.bf16.mxu0 %v1019
        %2659 = vmatmul.mubr.bf16.gmra.mrb[0].mxu0 %v1018
        %v2660 = vpop.f32.mrb[0].mxu0
        %v2661 = vadd.f32 %v2356, %v2660
        %v2662 = vpop.f32.mrb[0].mxu0
        %v2663 = vpop.f32.mrb[0].mxu0
        %v2664 = vadd.f32 %v2359, %v2663
        %v2665 = vpop.f32.mrb[0].mxu0
        %2666 = vmatprep.mubr.bf16.mxu0 %v1022
        %2667 = vmatmul.mubr.bf16.gmra.mrb[0].mxu0 %v1021
        %v2668 = vpop.f32.mrb[0].mxu0
        %v2669 = vadd.f32 %v2364, %v2668
        %v2670 = vpop.f32.mrb[0].mxu0
        %v2671 = vpop.f32.mrb[0].mxu0
        %v2672 = vadd.f32 %v2367, %v2671
        %v2673 = vpop.f32.mrb[0].mxu0
        %2674 = vmatprep.mubr.bf16.mxu0 %v1025
        %2675 = vmatmul.mubr.bf16.gmra.mrb[0].mxu0 %v1024
        %v2676 = vpop.f32.mrb[0].mxu0
        %v2677 = vadd.f32 %v2372, %v2676
        %v2678 = vpop.f32.mrb[0].mxu0
        %v2679 = vpop.f32.mrb[0].mxu0
        %v2680 = vadd.f32 %v2375, %v2679
        %v2681 = vpop.f32.mrb[0].mxu0
        %2682 = vmatprep.mubr.bf16.mxu0 %v1028
        %2683 = vmatmul.mubr.bf16.gmra.mrb[0].mxu0 %v1027
        %v2684 = vpop.f32.mrb[0].mxu0
        %v2685 = vadd.f32 %v2380, %v2684
        %v2686 = vpop.f32.mrb[0].mxu0
        %v2687 = vpop.f32.mrb[0].mxu0
        %v2688 = vadd.f32 %v2383, %v2687
        %v2689 = vpop.f32.mrb[0].mxu0
        %2690 = vmatprep.mubr.bf16.mxu0 %v1031
        %2691 = vmatmul.mubr.bf16.gmra.mrb[0].mxu0 %v1030
        %v2692 = vpop.f32.mrb[0].mxu0
        %v2693 = vadd.f32 %v2388, %v2692
        %v2694 = vpop.f32.mrb[0].mxu0
        %v2695 = vpop.f32.mrb[0].mxu0
        %v2696 = vadd.f32 %v2391, %v2695
        %v2697 = vpop.f32.mrb[0].mxu0
        %2698 = vmatprep.mubr.bf16.mxu0 %v1034
        %2699 = vmatmul.mubr.bf16.gmra.mrb[0].mxu0 %v1033
        %v2700 = vpop.f32.mrb[0].mxu0
        %v2701 = vadd.f32 %v2396, %v2700
        %v2702 = vpop.f32.mrb[0].mxu0
        %v2703 = vpop.f32.mrb[0].mxu0
        %v2704 = vadd.f32 %v2399, %v2703
        %v2705 = vpop.f32.mrb[0].mxu0
        %2706 = vmatprep.mubr.bf16.mxu0 %v1037
        %2707 = vmatmul.mubr.bf16.gmra.mrb[0].mxu0 %v1036
        %v2708 = vpop.f32.mrb[0].mxu0
        %v2709 = vadd.f32 %v2404, %v2708
        %v2710 = vpop.f32.mrb[0].mxu0
        %v2711 = vpop.f32.mrb[0].mxu0
        %v2712 = vadd.f32 %v2407, %v2711
        %v2713 = vpop.f32.mrb[0].mxu0
        %2714 = vmatprep.mubr.bf16.mxu0 %v1040
        %2715 = vmatmul.mubr.bf16.gmra.mrb[0].mxu0 %v1039
        %v2716 = vpop.f32.mrb[0].mxu0
        %v2717 = vadd.f32 %v2412, %v2716
        %v2718 = vpop.f32.mrb[0].mxu0
        %v2719 = vpop.f32.mrb[0].mxu0
        %v2720 = vadd.f32 %v2415, %v2719
        %v2721 = vpop.f32.mrb[0].mxu0
        %2722 = vmatprep.mubr.bf16.mxu0 %v1043
        %2723 = vmatmul.mubr.bf16.gmra.mrb[0].mxu0 %v1042
        %v2724 = vpop.f32.mrb[0].mxu0
        %v2725 = vadd.f32 %v2420, %v2724
        %v2726 = vpop.f32.mrb[0].mxu0
        %v2727 = vpop.f32.mrb[0].mxu0
        %v2728 = vadd.f32 %v2423, %v2727
        %v2729 = vpop.f32.mrb[0].mxu0
        %2730 = vmatprep.mubr.bf16.mxu0 %v1046
        %2731 = vmatmul.mubr.bf16.gmra.mrb[0].mxu0 %v1045
        %v2732 = vpop.f32.mrb[0].mxu0
        %v2733 = vadd.f32 %v2428, %v2732
        %v2734 = vpop.f32.mrb[0].mxu0
        %v2735 = vpop.f32.mrb[0].mxu0
        %v2736 = vadd.f32 %v2431, %v2735
        %v2737 = vpop.f32.mrb[0].mxu0
        %2738 = vmatprep.mubr.bf16.mxu0 %v1049
        %2739 = vmatmul.mubr.bf16.gmra.mrb[0].mxu0 %v1048
        %v2740 = vpop.f32.mrb[0].mxu0
        %v2741 = vadd.f32 %v2436, %v2740
        %v2742 = vpop.f32.mrb[0].mxu0
        %v2743 = vpop.f32.mrb[0].mxu0
        %v2744 = vadd.f32 %v2439, %v2743
        %v2745 = vpop.f32.mrb[0].mxu0
        %2746 = vmatprep.mubr.bf16.mxu0 %v1052
        %2747 = vmatmul.mubr.bf16.gmra.mrb[0].mxu0 %v1051
        %v2748 = vpop.f32.mrb[0].mxu0
        %v2749 = vadd.f32 %v2444, %v2748
        %v2750 = vpop.f32.mrb[0].mxu0
        %v2751 = vpop.f32.mrb[0].mxu0
        %v2752 = vadd.f32 %v2447, %v2751
        %v2753 = vpop.f32.mrb[0].mxu0
        %2754 = vmatprep.mubr.bf16.mxu0 %v1055
        %2755 = vmatmul.mubr.bf16.gmra.mrb[0].mxu0 %v1054
        %v2756 = vpop.f32.mrb[0].mxu0
        %v2757 = vadd.f32 %v2452, %v2756
        %v2758 = vpop.f32.mrb[0].mxu0
        %v2759 = vpop.f32.mrb[0].mxu0
        %v2760 = vadd.f32 %v2455, %v2759
        %v2761 = vpop.f32.mrb[0].mxu0
        %2762 = vmatprep.mubr.bf16.mxu0 %v1058
        %2763 = vmatmul.mubr.bf16.gmra.mrb[0].mxu0 %v1057
        %v2764 = vpop.f32.mrb[0].mxu0
        %v2765 = vadd.f32 %v2460, %v2764
        %v2766 = vpop.f32.mrb[0].mxu0
        %v2767 = vpop.f32.mrb[0].mxu0
        %v2768 = vadd.f32 %v2463, %v2767
        %v2769 = vpop.f32.mrb[0].mxu0
        %2770 = vmatprep.mubr.bf16.mxu0 %v1061
        %2771 = vmatmul.mubr.bf16.gmra.mrb[0].mxu0 %v1060
        %v2772 = vpop.f32.mrb[0].mxu0
        %v2773 = vadd.f32 %v2468, %v2772
        %v2774 = vpop.f32.mrb[0].mxu0
        %v2775 = vpop.f32.mrb[0].mxu0
        %v2776 = vadd.f32 %v2471, %v2775
        %v2777 = vpop.f32.mrb[0].mxu0
        %2778 = vdwg.mxu0
        %2779 = vmatprep.subr.bf16.mxu0 0
        %2780 = vmatpush1.bf16.msra.mxu0 %v2586
        %2781 = vmatprep.subr.bf16.mxu0 0
        %2782 = vmatpush1.bf16.msra.mxu0 %v2587
        %2783 = vmatprep.subr.bf16.mxu0 0
        %2784 = vmatpush1.bf16.msra.mxu0 %v2588
        %2785 = vmatprep.subr.bf16.mxu0 0
        %2786 = vmatpush1.bf16.msra.mxu0 %v2589
        %2787 = vmatprep.subr.bf16.mxu0 0
        %2788 = vmatpush1.bf16.msra.mxu0 %v2590
        %2789 = vmatprep.subr.bf16.mxu0 0
        %2790 = vmatpush1.bf16.msra.mxu0 %v2591
        %2791 = vmatprep.subr.bf16.mxu0 0
        %2792 = vmatpush1.bf16.msra.mxu0 %v2592
        %2793 = vmatprep.subr.bf16.mxu0 0
        %2794 = vmatpush1.bf16.msra.mxu0 %v2593
        %2795 = vmatprep.subr.bf16.mxu0 0
        %2796 = vmatpush1.bf16.msra.mxu0 0
        %2797 = vmatprep.subr.bf16.mxu0 0
        %2798 = vmatpush1.bf16.msra.mxu0 0
        %2799 = vmatprep.subr.bf16.mxu0 0
        %2800 = vmatpush1.bf16.msra.mxu0 0
        %2801 = vmatprep.subr.bf16.mxu0 0
        %2802 = vmatpush1.bf16.msra.mxu0 0
        %2803 = vmatprep.subr.bf16.mxu0 0
        %2804 = vmatpush1.bf16.msra.mxu0 0
        %2805 = vmatprep.subr.bf16.mxu0 0
        %2806 = vmatpush1.bf16.msra.mxu0 0
        %2807 = vmatprep.subr.bf16.mxu0 0
        %2808 = vmatpush1.bf16.msra.mxu0 0
        %2809 = vmatprep.subr.bf16.mxu0 0
        %2810 = vmatpush1.bf16.msra.mxu0 0
        %2811 = vmatprep.mubr.bf16.mxu0 0
        %2812 = vmatmul.mubr.bf16.gmra.mrb[0].mxu0 %v1017
        %v2813 = vpop.f32.mrb[0].mxu0
        %v2814 = vadd.f32 %v2653, %v2813
        %v2815 = vpop.f32.mrb[0].mxu0
        %v2816 = vpop.f32.mrb[0].mxu0
        %v2817 = vadd.f32 %v2656, %v2816
        %v2818 = vpop.f32.mrb[0].mxu0
        %2819 = vmatprep.mubr.bf16.mxu0 0
        %2820 = vmatmul.mubr.bf16.gmra.mrb[0].mxu0 %v1020
        %v2821 = vpop.f32.mrb[0].mxu0
        %v2822 = vadd.f32 %v2661, %v2821
        %v2823 = vpop.f32.mrb[0].mxu0
        %v2824 = vpop.f32.mrb[0].mxu0
        %v2825 = vadd.f32 %v2664, %v2824
        %v2826 = vpop.f32.mrb[0].mxu0
        %2827 = vmatprep.mubr.bf16.mxu0 0
        %2828 = vmatmul.mubr.bf16.gmra.mrb[0].mxu0 %v1023
        %v2829 = vpop.f32.mrb[0].mxu0
        %v2830 = vadd.f32 %v2669, %v2829
        %v2831 = vpop.f32.mrb[0].mxu0
        %v2832 = vpop.f32.mrb[0].mxu0
        %v2833 = vadd.f32 %v2672, %v2832
        %v2834 = vpop.f32.mrb[0].mxu0
        %2835 = vmatprep.mubr.bf16.mxu0 0
        %2836 = vmatmul.mubr.bf16.gmra.mrb[0].mxu0 %v1026
        %v2837 = vpop.f32.mrb[0].mxu0
        %v2838 = vadd.f32 %v2677, %v2837
        %v2839 = vpop.f32.mrb[0].mxu0
        %v2840 = vpop.f32.mrb[0].mxu0
        %v2841 = vadd.f32 %v2680, %v2840
        %v2842 = vpop.f32.mrb[0].mxu0
        %2843 = vmatprep.mubr.bf16.mxu0 0
        %2844 = vmatmul.mubr.bf16.gmra.mrb[0].mxu0 %v1029
        %v2845 = vpop.f32.mrb[0].mxu0
        %v2846 = vadd.f32 %v2685, %v2845
        %v2847 = vpop.f32.mrb[0].mxu0
        %v2848 = vpop.f32.mrb[0].mxu0
        %v2849 = vadd.f32 %v2688, %v2848
        %v2850 = vpop.f32.mrb[0].mxu0
        %2851 = vmatprep.mubr.bf16.mxu0 0
        %2852 = vmatmul.mubr.bf16.gmra.mrb[0].mxu0 %v1032
        %v2853 = vpop.f32.mrb[0].mxu0
        %v2854 = vadd.f32 %v2693, %v2853
        %v2855 = vpop.f32.mrb[0].mxu0
        %v2856 = vpop.f32.mrb[0].mxu0
        %v2857 = vadd.f32 %v2696, %v2856
        %v2858 = vpop.f32.mrb[0].mxu0
        %2859 = vmatprep.mubr.bf16.mxu0 0
        %2860 = vmatmul.mubr.bf16.gmra.mrb[0].mxu0 %v1035
        %v2861 = vpop.f32.mrb[0].mxu0
        %v2862 = vadd.f32 %v2701, %v2861
        %v2863 = vpop.f32.mrb[0].mxu0
        %v2864 = vpop.f32.mrb[0].mxu0
        %v2865 = vadd.f32 %v2704, %v2864
        %v2866 = vpop.f32.mrb[0].mxu0
        %2867 = vmatprep.mubr.bf16.mxu0 0
        %2868 = vmatmul.mubr.bf16.gmra.mrb[0].mxu0 %v1038
        %v2869 = vpop.f32.mrb[0].mxu0
        %v2870 = vadd.f32 %v2709, %v2869
        %v2871 = vpop.f32.mrb[0].mxu0
        %v2872 = vpop.f32.mrb[0].mxu0
        %v2873 = vadd.f32 %v2712, %v2872
        %v2874 = vpop.f32.mrb[0].mxu0
        %2875 = vmatprep.mubr.bf16.mxu0 0
        %2876 = vmatmul.mubr.bf16.gmra.mrb[0].mxu0 %v1041
        %v2877 = vpop.f32.mrb[0].mxu0
        %v2878 = vadd.f32 %v2717, %v2877
        %v2879 = vpop.f32.mrb[0].mxu0
        %v2880 = vpop.f32.mrb[0].mxu0
        %v2881 = vadd.f32 %v2720, %v2880
        %v2882 = vpop.f32.mrb[0].mxu0
        %2883 = vmatprep.mubr.bf16.mxu0 0
        %2884 = vmatmul.mubr.bf16.gmra.mrb[0].mxu0 %v1044
        %v2885 = vpop.f32.mrb[0].mxu0
        %v2886 = vadd.f32 %v2725, %v2885
        %v2887 = vpop.f32.mrb[0].mxu0
        %v2888 = vpop.f32.mrb[0].mxu0
        %v2889 = vadd.f32 %v2728, %v2888
        %v2890 = vpop.f32.mrb[0].mxu0
        %2891 = vmatprep.mubr.bf16.mxu0 0
        %2892 = vmatmul.mubr.bf16.gmra.mrb[0].mxu0 %v1047
        %v2893 = vpop.f32.mrb[0].mxu0
        %v2894 = vadd.f32 %v2733, %v2893
        %v2895 = vpop.f32.mrb[0].mxu0
        %v2896 = vpop.f32.mrb[0].mxu0
        %v2897 = vadd.f32 %v2736, %v2896
        %v2898 = vpop.f32.mrb[0].mxu0
        %2899 = vmatprep.mubr.bf16.mxu0 0
        %2900 = vmatmul.mubr.bf16.gmra.mrb[0].mxu0 %v1050
        %v2901 = vpop.f32.mrb[0].mxu0
        %v2902 = vadd.f32 %v2741, %v2901
        %v2903 = vpop.f32.mrb[0].mxu0
        %v2904 = vpop.f32.mrb[0].mxu0
        %v2905 = vadd.f32 %v2744, %v2904
        %v2906 = vpop.f32.mrb[0].mxu0
        %2907 = vmatprep.mubr.bf16.mxu0 0
        %2908 = vmatmul.mubr.bf16.gmra.mrb[0].mxu0 %v1053
        %v2909 = vpop.f32.mrb[0].mxu0
        %v2910 = vadd.f32 %v2749, %v2909
        %v2911 = vpop.f32.mrb[0].mxu0
        %v2912 = vpop.f32.mrb[0].mxu0
        %v2913 = vadd.f32 %v2752, %v2912
        %v2914 = vpop.f32.mrb[0].mxu0
        %2915 = vmatprep.mubr.bf16.mxu0 0
        %2916 = vmatmul.mubr.bf16.gmra.mrb[0].mxu0 %v1056
        %v2917 = vpop.f32.mrb[0].mxu0
        %v2918 = vadd.f32 %v2757, %v2917
        %v2919 = vpop.f32.mrb[0].mxu0
        %v2920 = vpop.f32.mrb[0].mxu0
        %v2921 = vadd.f32 %v2760, %v2920
        %v2922 = vpop.f32.mrb[0].mxu0
        %2923 = vmatprep.mubr.bf16.mxu0 0
        %2924 = vmatmul.mubr.bf16.gmra.mrb[0].mxu0 %v1059
        %v2925 = vpop.f32.mrb[0].mxu0
        %v2926 = vadd.f32 %v2765, %v2925
        %v2927 = vpop.f32.mrb[0].mxu0
        %v2928 = vpop.f32.mrb[0].mxu0
        %v2929 = vadd.f32 %v2768, %v2928
        %v2930 = vpop.f32.mrb[0].mxu0
        %2931 = vmatprep.mubr.bf16.mxu0 0
        %2932 = vmatmul.mubr.bf16.gmra.mrb[0].mxu0 %v1062
        %v2933 = vpop.f32.mrb[0].mxu0
        %v2934 = vadd.f32 %v2773, %v2933
        %v2935 = vpop.f32.mrb[0].mxu0
        %v2936 = vpop.f32.mrb[0].mxu0
        %v2937 = vadd.f32 %v2776, %v2936
        %v2938 = vpop.f32.mrb[0].mxu0
        %2939 = vdwg.mxu0
        %s2940 = scalar_lea.vmem %s211, 24
        %v2941 = vld [vmem:[%s2940] sm:$0xf]
        %v2942 = vld [vmem:[%s2940 + $0x4] sm:$0xf]
        %v2943 = vld [vmem:[%s2940 + $0xc] sm:$0xf]
        %v2944 = vld [vmem:[%s2940 + $0x10] sm:$0xf]
        %v2945 = vld [vmem:[%s2940 + $0x18] sm:$0xf]
        %v2946 = vld [vmem:[%s2940 + $0x1c] sm:$0xf]
        %v2947 = vld [vmem:[%s2940 + $0x24] sm:$0xf]
        %v2948 = vld [vmem:[%s2940 + $0x28] sm:$0xf]
        %v2949 = vld [vmem:[%s2940 + $0x30] sm:$0xf]
        %v2950 = vld [vmem:[%s2940 + $0x34] sm:$0xf]
        %v2951 = vld [vmem:[%s2940 + $0x3c] sm:$0xf]
        %v2952 = vld [vmem:[%s2940 + $0x40] sm:$0xf]
        %v2953 = vld [vmem:[%s2940 + $0x48] sm:$0xf]
        %v2954 = vld [vmem:[%s2940 + $0x4c] sm:$0xf]
        %v2955 = vld [vmem:[%s2940 + $0x54] sm:$0xf]
        %v2956 = vld [vmem:[%s2940 + $0x58] sm:$0xf]
        %v2957 = vld [vmem:[%s2940 + $0x60] sm:$0xf]
        %v2958 = vld [vmem:[%s2940 + $0x64] sm:$0xf]
        %v2959 = vld [vmem:[%s2940 + $0x6c] sm:$0xf]
        %v2960 = vld [vmem:[%s2940 + $0x70] sm:$0xf]
        %v2961 = vld [vmem:[%s2940 + $0x78] sm:$0xf]
        %v2962 = vld [vmem:[%s2940 + $0x7c] sm:$0xf]
        %v2963 = vld [vmem:[%s2940 + $0x84] sm:$0xf]
        %v2964 = vld [vmem:[%s2940 + $0x88] sm:$0xf]
        %v2965 = vld [vmem:[%s2940 + $0x90] sm:$0xf]
        %v2966 = vld [vmem:[%s2940 + $0x94] sm:$0xf]
        %v2967 = vld [vmem:[%s2940 + $0x9c] sm:$0xf]
        %v2968 = vld [vmem:[%s2940 + $0xa0] sm:$0xf]
        %v2969 = vld [vmem:[%s2940 + $0xa8] sm:$0xf]
        %v2970 = vld [vmem:[%s2940 + $0xac] sm:$0xf]
        %v2971 = vld [vmem:[%s2940 + $0xb4] sm:$0xf]
        %v2972 = vld [vmem:[%s2940 + $0xb8] sm:$0xf]
        %v3005 = vunpack.c.l.b16 %v2941
        %v3006 = vunpack.c.l.b16 %v2942
        %v3007 = vunpack.c.l.b16 %v2943
        %v3008 = vunpack.c.l.b16 %v2944
        %v3009 = vunpack.c.l.b16 %v2945
        %v3010 = vunpack.c.l.b16 %v2946
        %v3011 = vunpack.c.l.b16 %v2947
        %v3012 = vunpack.c.l.b16 %v2948
        %v3013 = vunpack.c.l.b16 %v2949
        %v3014 = vunpack.c.l.b16 %v2950
        %v3015 = vunpack.c.l.b16 %v2951
        %v3016 = vunpack.c.l.b16 %v2952
        %v3017 = vunpack.c.l.b16 %v2953
        %v3018 = vunpack.c.l.b16 %v2954
        %v3019 = vunpack.c.l.b16 %v2955
        %v3020 = vunpack.c.l.b16 %v2956
        %v3021 = vunpack.c.l.b16 %v2957
        %v3022 = vunpack.c.l.b16 %v2958
        %v3023 = vunpack.c.l.b16 %v2959
        %v3024 = vunpack.c.l.b16 %v2960
        %v3025 = vunpack.c.l.b16 %v2961
        %v3026 = vunpack.c.l.b16 %v2962
        %v3027 = vunpack.c.l.b16 %v2963
        %v3028 = vunpack.c.l.b16 %v2964
        %v3029 = vunpack.c.l.b16 %v2965
        %v3030 = vunpack.c.l.b16 %v2966
        %v3031 = vunpack.c.l.b16 %v2967
        %v3032 = vunpack.c.l.b16 %v2968
        %v3033 = vunpack.c.l.b16 %v2969
        %v3034 = vunpack.c.l.b16 %v2970
        %v3035 = vunpack.c.l.b16 %v2971
        %v3036 = vunpack.c.l.b16 %v2972
        %v3037 = vpack.c.b16 %v3006, %v3005
        %v3038 = vpack.c.b16 %v3008, %v3007
        %v3039 = vpack.c.b16 %v3010, %v3009
        %v3040 = vpack.c.b16 %v3012, %v3011
        %v3041 = vpack.c.b16 %v3014, %v3013
        %v3042 = vpack.c.b16 %v3016, %v3015
        %v3043 = vpack.c.b16 %v3018, %v3017
        %v3044 = vpack.c.b16 %v3020, %v3019
        %v3045 = vpack.c.b16 %v3022, %v3021
        %v3046 = vpack.c.b16 %v3024, %v3023
        %v3047 = vpack.c.b16 %v3026, %v3025
        %v3048 = vpack.c.b16 %v3028, %v3027
        %v3049 = vpack.c.b16 %v3030, %v3029
        %v3050 = vpack.c.b16 %v3032, %v3031
        %v3051 = vpack.c.b16 %v3034, %v3033
        %v3052 = vpack.c.b16 %v3036, %v3035
        %3069 = vst [vmem:[#allocation2] sm:$0xff] %v3037
        %3070 = vst [vmem:[#allocation2 + $0x18] sm:$0xff] %v3038
        %3071 = vst [vmem:[#allocation2 + $0x30] sm:$0xff] %v3039
        %3072 = vst [vmem:[#allocation2 + $0x48] sm:$0xff] %v3040
        %3073 = vst [vmem:[#allocation2 + $0x60] sm:$0xff] %v3041
        %3074 = vst [vmem:[#allocation2 + $0x78] sm:$0xff] %v3042
        %3075 = vst [vmem:[#allocation2 + $0x90] sm:$0xff] %v3043
        %3076 = vst [vmem:[#allocation2 + $0xa8] sm:$0xff] %v3044
        %3077 = vst [vmem:[#allocation2 + $0xc0] sm:$0xff] %v3045
        %3078 = vst [vmem:[#allocation2 + $0xd8] sm:$0xff] %v3046
        %3079 = vst [vmem:[#allocation2 + $0xf0] sm:$0xff] %v3047
        %3080 = vst [vmem:[#allocation2 + $0x108] sm:$0xff] %v3048
        %3081 = vst [vmem:[#allocation2 + $0x120] sm:$0xff] %v3049
        %3082 = vst [vmem:[#allocation2 + $0x138] sm:$0xff] %v3050
        %3083 = vst [vmem:[#allocation2 + $0x150] sm:$0xff] %v3051
        %3084 = vst [vmem:[#allocation2 + $0x168] sm:$0xff] %v3052
        %v3085 = vld [vmem:[%s2940] sm:$0xf]
        %v3086 = vld [vmem:[%s2940 + $0x4] sm:$0xf]
        %v3087 = vld [vmem:[%s2940 + $0x8] sm:$0x1]
        %v3088 = vld [vmem:[%s2940 + $0xc] sm:$0xf]
        %v3089 = vld [vmem:[%s2940 + $0x10] sm:$0xf]
        %v3090 = vld [vmem:[%s2940 + $0x14] sm:$0x1]
        %v3091 = vld [vmem:[%s2940 + $0x18] sm:$0xf]
        %v3092 = vld [vmem:[%s2940 + $0x1c] sm:$0xf]
        %v3093 = vld [vmem:[%s2940 + $0x20] sm:$0x1]
        %v3094 = vld [vmem:[%s2940 + $0x24] sm:$0xf]
        %v3095 = vld [vmem:[%s2940 + $0x28] sm:$0xf]
        %v3096 = vld [vmem:[%s2940 + $0x2c] sm:$0x1]
        %v3097 = vld [vmem:[%s2940 + $0x30] sm:$0xf]
        %v3098 = vld [vmem:[%s2940 + $0x34] sm:$0xf]
        %v3099 = vld [vmem:[%s2940 + $0x38] sm:$0x1]
        %v3100 = vld [vmem:[%s2940 + $0x3c] sm:$0xf]
        %v3101 = vld [vmem:[%s2940 + $0x40] sm:$0xf]
        %v3102 = vld [vmem:[%s2940 + $0x44] sm:$0x1]
        %v3103 = vld [vmem:[%s2940 + $0x48] sm:$0xf]
        %v3104 = vld [vmem:[%s2940 + $0x4c] sm:$0xf]
        %v3105 = vld [vmem:[%s2940 + $0x50] sm:$0x1]
        %v3106 = vld [vmem:[%s2940 + $0x54] sm:$0xf]
        %v3107 = vld [vmem:[%s2940 + $0x58] sm:$0xf]
        %v3108 = vld [vmem:[%s2940 + $0x5c] sm:$0x1]
        %v3109 = vld [vmem:[%s2940 + $0x60] sm:$0xf]
        %v3110 = vld [vmem:[%s2940 + $0x64] sm:$0xf]
        %v3111 = vld [vmem:[%s2940 + $0x68] sm:$0x1]
        %v3112 = vld [vmem:[%s2940 + $0x6c] sm:$0xf]
        %v3113 = vld [vmem:[%s2940 + $0x70] sm:$0xf]
        %v3114 = vld [vmem:[%s2940 + $0x74] sm:$0x1]
        %v3115 = vld [vmem:[%s2940 + $0x78] sm:$0xf]
        %v3116 = vld [vmem:[%s2940 + $0x7c] sm:$0xf]
        %v3117 = vld [vmem:[%s2940 + $0x80] sm:$0x1]
        %v3118 = vld [vmem:[%s2940 + $0x84] sm:$0xf]
        %v3119 = vld [vmem:[%s2940 + $0x88] sm:$0xf]
        %v3120 = vld [vmem:[%s2940 + $0x8c] sm:$0x1]
        %v3121 = vld [vmem:[%s2940 + $0x90] sm:$0xf]
        %v3122 = vld [vmem:[%s2940 + $0x94] sm:$0xf]
        %v3123 = vld [vmem:[%s2940 + $0x98] sm:$0x1]
        %v3124 = vld [vmem:[%s2940 + $0x9c] sm:$0xf]
        %v3125 = vld [vmem:[%s2940 + $0xa0] sm:$0xf]
        %v3126 = vld [vmem:[%s2940 + $0xa4] sm:$0x1]
        %v3127 = vld [vmem:[%s2940 + $0xa8] sm:$0xf]
        %v3128 = vld [vmem:[%s2940 + $0xac] sm:$0xf]
        %v3129 = vld [vmem:[%s2940 + $0xb0] sm:$0x1]
        %v3130 = vld [vmem:[%s2940 + $0xb4] sm:$0xf]
        %v3131 = vld [vmem:[%s2940 + $0xb8] sm:$0xf]
        %v3132 = vld [vmem:[%s2940 + $0xbc] sm:$0x1]
        %v3181 = vunpack.c.l.b16 %v3085
        %v3182 = vunpack.c.l.b16 %v3086
        %v3183 = vunpack.c.l.b16 %v3087
        %v3184 = vunpack.c.l.b16 %v3088
        %v3185 = vunpack.c.l.b16 %v3089
        %v3186 = vunpack.c.l.b16 %v3090
        %v3187 = vunpack.c.l.b16 %v3091
        %v3188 = vunpack.c.l.b16 %v3092
        %v3189 = vunpack.c.l.b16 %v3093
        %v3190 = vunpack.c.l.b16 %v3094
        %v3191 = vunpack.c.l.b16 %v3095
        %v3192 = vunpack.c.l.b16 %v3096
        %v3193 = vunpack.c.l.b16 %v3097
        %v3194 = vunpack.c.l.b16 %v3098
        %v3195 = vunpack.c.l.b16 %v3099
        %v3196 = vunpack.c.l.b16 %v3100
        %v3197 = vunpack.c.l.b16 %v3101
        %v3198 = vunpack.c.l.b16 %v3102
        %v3199 = vunpack.c.l.b16 %v3103
        %v3200 = vunpack.c.l.b16 %v3104
        %v3201 = vunpack.c.l.b16 %v3105
        %v3202 = vunpack.c.l.b16 %v3106
        %v3203 = vunpack.c.l.b16 %v3107
        %v3204 = vunpack.c.l.b16 %v3108
        %v3205 = vunpack.c.l.b16 %v3109
        %v3206 = vunpack.c.l.b16 %v3110
        %v3207 = vunpack.c.l.b16 %v3111
        %v3208 = vunpack.c.l.b16 %v3112
        %v3209 = vunpack.c.l.b16 %v3113
        %v3210 = vunpack.c.l.b16 %v3114
        %v3211 = vunpack.c.l.b16 %v3115
        %v3212 = vunpack.c.l.b16 %v3116
        %v3213 = vunpack.c.l.b16 %v3117
        %v3214 = vunpack.c.l.b16 %v3118
        %v3215 = vunpack.c.l.b16 %v3119
        %v3216 = vunpack.c.l.b16 %v3120
        %v3217 = vunpack.c.l.b16 %v3121
        %v3218 = vunpack.c.l.b16 %v3122
        %v3219 = vunpack.c.l.b16 %v3123
        %v3220 = vunpack.c.l.b16 %v3124
        %v3221 = vunpack.c.l.b16 %v3125
        %v3222 = vunpack.c.l.b16 %v3126
        %v3223 = vunpack.c.l.b16 %v3127
        %v3224 = vunpack.c.l.b16 %v3128
        %v3225 = vunpack.c.l.b16 %v3129
        %v3226 = vunpack.c.l.b16 %v3130
        %v3227 = vunpack.c.l.b16 %v3131
        %v3228 = vunpack.c.l.b16 %v3132
        %v3229 = vpack.c.b16 %v3182, %v3181
        %v3230 = vpack.c.b16 %v3183, %v3183
        %v3231 = vpack.c.b16 %v3185, %v3184
        %v3232 = vpack.c.b16 %v3186, %v3186
        %v3233 = vpack.c.b16 %v3188, %v3187
        %v3234 = vpack.c.b16 %v3189, %v3189
        %v3235 = vpack.c.b16 %v3191, %v3190
        %v3236 = vpack.c.b16 %v3192, %v3192
        %v3237 = vpack.c.b16 %v3194, %v3193
        %v3238 = vpack.c.b16 %v3195, %v3195
        %v3239 = vpack.c.b16 %v3197, %v3196
        %v3240 = vpack.c.b16 %v3198, %v3198
        %v3241 = vpack.c.b16 %v3200, %v3199
        %v3242 = vpack.c.b16 %v3201, %v3201
        %v3243 = vpack.c.b16 %v3203, %v3202
        %v3244 = vpack.c.b16 %v3204, %v3204
        %v3245 = vpack.c.b16 %v3206, %v3205
        %v3246 = vpack.c.b16 %v3207, %v3207
        %v3247 = vpack.c.b16 %v3209, %v3208
        %v3248 = vpack.c.b16 %v3210, %v3210
        %v3249 = vpack.c.b16 %v3212, %v3211
        %v3250 = vpack.c.b16 %v3213, %v3213
        %v3251 = vpack.c.b16 %v3215, %v3214
        %v3252 = vpack.c.b16 %v3216, %v3216
        %v3253 = vpack.c.b16 %v3218, %v3217
        %v3254 = vpack.c.b16 %v3219, %v3219
        %v3255 = vpack.c.b16 %v3221, %v3220
        %v3256 = vpack.c.b16 %v3222, %v3222
        %v3257 = vpack.c.b16 %v3224, %v3223
        %v3258 = vpack.c.b16 %v3225, %v3225
        %v3259 = vpack.c.b16 %v3227, %v3226
        %v3260 = vpack.c.b16 %v3228, %v3228
        %v3262 = vshrl.u32 %v3229, 16
        %v3264 = vshll.u32 %v3229, 16
        %v3266 = vrot.slane %v3264, 1
        %v3267 = vor.u32 %v3262, %v3266
        %v3269 = vshll.u32 %v3230, 16
        %v3271 = vrot.slane %v3269, 1
        %v3272 = vsel %vm533, %v3267, %v3271
        %v3274 = vshrl.u32 %v3231, 16
        %v3276 = vshll.u32 %v3231, 16
        %v3278 = vrot.slane %v3276, 1
        %v3279 = vor.u32 %v3274, %v3278
        %v3281 = vshll.u32 %v3232, 16
        %v3283 = vrot.slane %v3281, 1
        %v3284 = vsel %vm533, %v3279, %v3283
        %v3286 = vshrl.u32 %v3233, 16
        %v3288 = vshll.u32 %v3233, 16
        %v3290 = vrot.slane %v3288, 1
        %v3291 = vor.u32 %v3286, %v3290
        %v3293 = vshll.u32 %v3234, 16
        %v3295 = vrot.slane %v3293, 1
        %v3296 = vsel %vm533, %v3291, %v3295
        %v3298 = vshrl.u32 %v3235, 16
        %v3300 = vshll.u32 %v3235, 16
        %v3302 = vrot.slane %v3300, 1
        %v3303 = vor.u32 %v3298, %v3302
        %v3305 = vshll.u32 %v3236, 16
        %v3307 = vrot.slane %v3305, 1
        %v3308 = vsel %vm533, %v3303, %v3307
        %v3310 = vshrl.u32 %v3237, 16
        %v3312 = vshll.u32 %v3237, 16
        %v3314 = vrot.slane %v3312, 1
        %v3315 = vor.u32 %v3310, %v3314
        %v3317 = vshll.u32 %v3238, 16
        %v3319 = vrot.slane %v3317, 1
        %v3320 = vsel %vm533, %v3315, %v3319
        %v3322 = vshrl.u32 %v3239, 16
        %v3324 = vshll.u32 %v3239, 16
        %v3326 = vrot.slane %v3324, 1
        %v3327 = vor.u32 %v3322, %v3326
        %v3329 = vshll.u32 %v3240, 16
        %v3331 = vrot.slane %v3329, 1
        %v3332 = vsel %vm533, %v3327, %v3331
        %v3334 = vshrl.u32 %v3241, 16
        %v3336 = vshll.u32 %v3241, 16
        %v3338 = vrot.slane %v3336, 1
        %v3339 = vor.u32 %v3334, %v3338
        %v3341 = vshll.u32 %v3242, 16
        %v3343 = vrot.slane %v3341, 1
        %v3344 = vsel %vm533, %v3339, %v3343
        %v3346 = vshrl.u32 %v3243, 16
        %v3348 = vshll.u32 %v3243, 16
        %v3350 = vrot.slane %v3348, 1
        %v3351 = vor.u32 %v3346, %v3350
        %v3353 = vshll.u32 %v3244, 16
        %v3355 = vrot.slane %v3353, 1
        %v3356 = vsel %vm533, %v3351, %v3355
        %v3358 = vshrl.u32 %v3245, 16
        %v3360 = vshll.u32 %v3245, 16
        %v3362 = vrot.slane %v3360, 1
        %v3363 = vor.u32 %v3358, %v3362
        %v3365 = vshll.u32 %v3246, 16
        %v3367 = vrot.slane %v3365, 1
        %v3368 = vsel %vm533, %v3363, %v3367
        %v3370 = vshrl.u32 %v3247, 16
        %v3372 = vshll.u32 %v3247, 16
        %v3374 = vrot.slane %v3372, 1
        %v3375 = vor.u32 %v3370, %v3374
        %v3377 = vshll.u32 %v3248, 16
        %v3379 = vrot.slane %v3377, 1
        %v3380 = vsel %vm533, %v3375, %v3379
        %v3382 = vshrl.u32 %v3249, 16
        %v3384 = vshll.u32 %v3249, 16
        %v3386 = vrot.slane %v3384, 1
        %v3387 = vor.u32 %v3382, %v3386
        %v3389 = vshll.u32 %v3250, 16
        %v3391 = vrot.slane %v3389, 1
        %v3392 = vsel %vm533, %v3387, %v3391
        %v3394 = vshrl.u32 %v3251, 16
        %v3396 = vshll.u32 %v3251, 16
        %v3398 = vrot.slane %v3396, 1
        %v3399 = vor.u32 %v3394, %v3398
        %v3401 = vshll.u32 %v3252, 16
        %v3403 = vrot.slane %v3401, 1
        %v3404 = vsel %vm533, %v3399, %v3403
        %v3406 = vshrl.u32 %v3253, 16
        %v3408 = vshll.u32 %v3253, 16
        %v3410 = vrot.slane %v3408, 1
        %v3411 = vor.u32 %v3406, %v3410
        %v3413 = vshll.u32 %v3254, 16
        %v3415 = vrot.slane %v3413, 1
        %v3416 = vsel %vm533, %v3411, %v3415
        %v3418 = vshrl.u32 %v3255, 16
        %v3420 = vshll.u32 %v3255, 16
        %v3422 = vrot.slane %v3420, 1
        %v3423 = vor.u32 %v3418, %v3422
        %v3425 = vshll.u32 %v3256, 16
        %v3427 = vrot.slane %v3425, 1
        %v3428 = vsel %vm533, %v3423, %v3427
        %v3430 = vshrl.u32 %v3257, 16
        %v3432 = vshll.u32 %v3257, 16
        %v3434 = vrot.slane %v3432, 1
        %v3435 = vor.u32 %v3430, %v3434
        %v3437 = vshll.u32 %v3258, 16
        %v3439 = vrot.slane %v3437, 1
        %v3440 = vsel %vm533, %v3435, %v3439
        %v3442 = vshrl.u32 %v3259, 16
        %v3444 = vshll.u32 %v3259, 16
        %v3446 = vrot.slane %v3444, 1
        %v3447 = vor.u32 %v3442, %v3446
        %v3449 = vshll.u32 %v3260, 16
        %v3451 = vrot.slane %v3449, 1
        %v3452 = vsel %vm533, %v3447, %v3451
        %3469 = vst [vmem:[#allocation2 + $0x8] sm:$0xff] %v3272
        %3470 = vst [vmem:[#allocation2 + $0x20] sm:$0xff] %v3284
        %3471 = vst [vmem:[#allocation2 + $0x38] sm:$0xff] %v3296
        %3472 = vst [vmem:[#allocation2 + $0x50] sm:$0xff] %v3308
        %3473 = vst [vmem:[#allocation2 + $0x68] sm:$0xff] %v3320
        %3474 = vst [vmem:[#allocation2 + $0x80] sm:$0xff] %v3332
        %3475 = vst [vmem:[#allocation2 + $0x98] sm:$0xff] %v3344
        %3476 = vst [vmem:[#allocation2 + $0xb0] sm:$0xff] %v3356
        %3477 = vst [vmem:[#allocation2 + $0xc8] sm:$0xff] %v3368
        %3478 = vst [vmem:[#allocation2 + $0xe0] sm:$0xff] %v3380
        %3479 = vst [vmem:[#allocation2 + $0xf8] sm:$0xff] %v3392
        %3480 = vst [vmem:[#allocation2 + $0x110] sm:$0xff] %v3404
        %3481 = vst [vmem:[#allocation2 + $0x128] sm:$0xff] %v3416
        %3482 = vst [vmem:[#allocation2 + $0x140] sm:$0xff] %v3428
        %3483 = vst [vmem:[#allocation2 + $0x158] sm:$0xff] %v3440
        %3484 = vst [vmem:[#allocation2 + $0x170] sm:$0xff] %v3452
        %v3485 = vld [vmem:[%s2940] sm:$0xe]
        %v3486 = vld [vmem:[%s2940 + $0x4] sm:$0xf]
        %v3487 = vld [vmem:[%s2940 + $0x8] sm:$0x1]
        %v3488 = vld [vmem:[%s2940 + $0xc] sm:$0xe]
        %v3489 = vld [vmem:[%s2940 + $0x10] sm:$0xf]
        %v3490 = vld [vmem:[%s2940 + $0x14] sm:$0x1]
        %v3491 = vld [vmem:[%s2940 + $0x18] sm:$0xe]
        %v3492 = vld [vmem:[%s2940 + $0x1c] sm:$0xf]
        %v3493 = vld [vmem:[%s2940 + $0x20] sm:$0x1]
        %v3494 = vld [vmem:[%s2940 + $0x24] sm:$0xe]
        %v3495 = vld [vmem:[%s2940 + $0x28] sm:$0xf]
        %v3496 = vld [vmem:[%s2940 + $0x2c] sm:$0x1]
        %v3497 = vld [vmem:[%s2940 + $0x30] sm:$0xe]
        %v3498 = vld [vmem:[%s2940 + $0x34] sm:$0xf]
        %v3499 = vld [vmem:[%s2940 + $0x38] sm:$0x1]
        %v3500 = vld [vmem:[%s2940 + $0x3c] sm:$0xe]
        %v3501 = vld [vmem:[%s2940 + $0x40] sm:$0xf]
        %v3502 = vld [vmem:[%s2940 + $0x44] sm:$0x1]
        %v3503 = vld [vmem:[%s2940 + $0x48] sm:$0xe]
        %v3504 = vld [vmem:[%s2940 + $0x4c] sm:$0xf]
        %v3505 = vld [vmem:[%s2940 + $0x50] sm:$0x1]
        %v3506 = vld [vmem:[%s2940 + $0x54] sm:$0xe]
        %v3507 = vld [vmem:[%s2940 + $0x58] sm:$0xf]
        %v3508 = vld [vmem:[%s2940 + $0x5c] sm:$0x1]
        %v3509 = vld [vmem:[%s2940 + $0x60] sm:$0xe]
        %v3510 = vld [vmem:[%s2940 + $0x64] sm:$0xf]
        %v3511 = vld [vmem:[%s2940 + $0x68] sm:$0x1]
        %v3512 = vld [vmem:[%s2940 + $0x6c] sm:$0xe]
        %v3513 = vld [vmem:[%s2940 + $0x70] sm:$0xf]
        %v3514 = vld [vmem:[%s2940 + $0x74] sm:$0x1]
        %v3515 = vld [vmem:[%s2940 + $0x78] sm:$0xe]
        %v3516 = vld [vmem:[%s2940 + $0x7c] sm:$0xf]
        %v3517 = vld [vmem:[%s2940 + $0x80] sm:$0x1]
        %v3518 = vld [vmem:[%s2940 + $0x84] sm:$0xe]
        %v3519 = vld [vmem:[%s2940 + $0x88] sm:$0xf]
        %v3520 = vld [vmem:[%s2940 + $0x8c] sm:$0x1]
        %v3521 = vld [vmem:[%s2940 + $0x90] sm:$0xe]
        %v3522 = vld [vmem:[%s2940 + $0x94] sm:$0xf]
        %v3523 = vld [vmem:[%s2940 + $0x98] sm:$0x1]
        %v3524 = vld [vmem:[%s2940 + $0x9c] sm:$0xe]
        %v3525 = vld [vmem:[%s2940 + $0xa0] sm:$0xf]
        %v3526 = vld [vmem:[%s2940 + $0xa4] sm:$0x1]
        %v3527 = vld [vmem:[%s2940 + $0xa8] sm:$0xe]
        %v3528 = vld [vmem:[%s2940 + $0xac] sm:$0xf]
        %v3529 = vld [vmem:[%s2940 + $0xb0] sm:$0x1]
        %v3530 = vld [vmem:[%s2940 + $0xb4] sm:$0xe]
        %v3531 = vld [vmem:[%s2940 + $0xb8] sm:$0xf]
        %v3532 = vld [vmem:[%s2940 + $0xbc] sm:$0x1]
        %v3581 = vunpack.c.l.b16 %v3485
        %v3582 = vunpack.c.l.b16 %v3486
        %v3583 = vunpack.c.l.b16 %v3487
        %v3584 = vunpack.c.l.b16 %v3488
        %v3585 = vunpack.c.l.b16 %v3489
        %v3586 = vunpack.c.l.b16 %v3490
        %v3587 = vunpack.c.l.b16 %v3491
        %v3588 = vunpack.c.l.b16 %v3492
        %v3589 = vunpack.c.l.b16 %v3493
        %v3590 = vunpack.c.l.b16 %v3494
        %v3591 = vunpack.c.l.b16 %v3495
        %v3592 = vunpack.c.l.b16 %v3496
        %v3593 = vunpack.c.l.b16 %v3497
        %v3594 = vunpack.c.l.b16 %v3498
        %v3595 = vunpack.c.l.b16 %v3499
        %v3596 = vunpack.c.l.b16 %v3500
        %v3597 = vunpack.c.l.b16 %v3501
        %v3598 = vunpack.c.l.b16 %v3502
        %v3599 = vunpack.c.l.b16 %v3503
        %v3600 = vunpack.c.l.b16 %v3504
        %v3601 = vunpack.c.l.b16 %v3505
        %v3602 = vunpack.c.l.b16 %v3506
        %v3603 = vunpack.c.l.b16 %v3507
        %v3604 = vunpack.c.l.b16 %v3508
        %v3605 = vunpack.c.l.b16 %v3509
        %v3606 = vunpack.c.l.b16 %v3510
        %v3607 = vunpack.c.l.b16 %v3511
        %v3608 = vunpack.c.l.b16 %v3512
        %v3609 = vunpack.c.l.b16 %v3513
        %v3610 = vunpack.c.l.b16 %v3514
        %v3611 = vunpack.c.l.b16 %v3515
        %v3612 = vunpack.c.l.b16 %v3516
        %v3613 = vunpack.c.l.b16 %v3517
        %v3614 = vunpack.c.l.b16 %v3518
        %v3615 = vunpack.c.l.b16 %v3519
        %v3616 = vunpack.c.l.b16 %v3520
        %v3617 = vunpack.c.l.b16 %v3521
        %v3618 = vunpack.c.l.b16 %v3522
        %v3619 = vunpack.c.l.b16 %v3523
        %v3620 = vunpack.c.l.b16 %v3524
        %v3621 = vunpack.c.l.b16 %v3525
        %v3622 = vunpack.c.l.b16 %v3526
        %v3623 = vunpack.c.l.b16 %v3527
        %v3624 = vunpack.c.l.b16 %v3528
        %v3625 = vunpack.c.l.b16 %v3529
        %v3626 = vunpack.c.l.b16 %v3530
        %v3627 = vunpack.c.l.b16 %v3531
        %v3628 = vunpack.c.l.b16 %v3532
        %v3629 = vpack.c.b16 %v3582, %v3581
        %v3630 = vpack.c.b16 %v3583, %v3583
        %v3631 = vpack.c.b16 %v3585, %v3584
        %v3632 = vpack.c.b16 %v3586, %v3586
        %v3633 = vpack.c.b16 %v3588, %v3587
        %v3634 = vpack.c.b16 %v3589, %v3589
        %v3635 = vpack.c.b16 %v3591, %v3590
        %v3636 = vpack.c.b16 %v3592, %v3592
        %v3637 = vpack.c.b16 %v3594, %v3593
        %v3638 = vpack.c.b16 %v3595, %v3595
        %v3639 = vpack.c.b16 %v3597, %v3596
        %v3640 = vpack.c.b16 %v3598, %v3598
        %v3641 = vpack.c.b16 %v3600, %v3599
        %v3642 = vpack.c.b16 %v3601, %v3601
        %v3643 = vpack.c.b16 %v3603, %v3602
        %v3644 = vpack.c.b16 %v3604, %v3604
        %v3645 = vpack.c.b16 %v3606, %v3605
        %v3646 = vpack.c.b16 %v3607, %v3607
        %v3647 = vpack.c.b16 %v3609, %v3608
        %v3648 = vpack.c.b16 %v3610, %v3610
        %v3649 = vpack.c.b16 %v3612, %v3611
        %v3650 = vpack.c.b16 %v3613, %v3613
        %v3651 = vpack.c.b16 %v3615, %v3614
        %v3652 = vpack.c.b16 %v3616, %v3616
        %v3653 = vpack.c.b16 %v3618, %v3617
        %v3654 = vpack.c.b16 %v3619, %v3619
        %v3655 = vpack.c.b16 %v3621, %v3620
        %v3656 = vpack.c.b16 %v3622, %v3622
        %v3657 = vpack.c.b16 %v3624, %v3623
        %v3658 = vpack.c.b16 %v3625, %v3625
        %v3659 = vpack.c.b16 %v3627, %v3626
        %v3660 = vpack.c.b16 %v3628, %v3628
        %v3661 = vrot.slane %v3629, 1
        %v3662 = vrot.slane %v3630, 1
        %v3663 = vsel %vm934, %v3661, %v3662
        %v3664 = vrot.slane %v3631, 1
        %v3665 = vrot.slane %v3632, 1
        %v3666 = vsel %vm934, %v3664, %v3665
        %v3667 = vrot.slane %v3633, 1
        %v3668 = vrot.slane %v3634, 1
        %v3669 = vsel %vm934, %v3667, %v3668
        %v3670 = vrot.slane %v3635, 1
        %v3671 = vrot.slane %v3636, 1
        %v3672 = vsel %vm934, %v3670, %v3671
        %v3673 = vrot.slane %v3637, 1
        %v3674 = vrot.slane %v3638, 1
        %v3675 = vsel %vm934, %v3673, %v3674
        %v3676 = vrot.slane %v3639, 1
        %v3677 = vrot.slane %v3640, 1
        %v3678 = vsel %vm934, %v3676, %v3677
        %v3679 = vrot.slane %v3641, 1
        %v3680 = vrot.slane %v3642, 1
        %v3681 = vsel %vm934, %v3679, %v3680
        %v3682 = vrot.slane %v3643, 1
        %v3683 = vrot.slane %v3644, 1
        %v3684 = vsel %vm934, %v3682, %v3683
        %v3685 = vrot.slane %v3645, 1
        %v3686 = vrot.slane %v3646, 1
        %v3687 = vsel %vm934, %v3685, %v3686
        %v3688 = vrot.slane %v3647, 1
        %v3689 = vrot.slane %v3648, 1
        %v3690 = vsel %vm934, %v3688, %v3689
        %v3691 = vrot.slane %v3649, 1
        %v3692 = vrot.slane %v3650, 1
        %v3693 = vsel %vm934, %v3691, %v3692
        %v3694 = vrot.slane %v3651, 1
        %v3695 = vrot.slane %v3652, 1
        %v3696 = vsel %vm934, %v3694, %v3695
        %v3697 = vrot.slane %v3653, 1
        %v3698 = vrot.slane %v3654, 1
        %v3699 = vsel %vm934, %v3697, %v3698
        %v3700 = vrot.slane %v3655, 1
        %v3701 = vrot.slane %v3656, 1
        %v3702 = vsel %vm934, %v3700, %v3701
        %v3703 = vrot.slane %v3657, 1
        %v3704 = vrot.slane %v3658, 1
        %v3705 = vsel %vm934, %v3703, %v3704
        %v3706 = vrot.slane %v3659, 1
        %v3707 = vrot.slane %v3660, 1
        %v3708 = vsel %vm934, %v3706, %v3707
        %3725 = vst [vmem:[#allocation2 + $0x10] sm:$0xff] %v3663
        %3726 = vst [vmem:[#allocation2 + $0x28] sm:$0xff] %v3666
        %3727 = vst [vmem:[#allocation2 + $0x40] sm:$0xff] %v3669
        %3728 = vst [vmem:[#allocation2 + $0x58] sm:$0xff] %v3672
        %3729 = vst [vmem:[#allocation2 + $0x70] sm:$0xff] %v3675
        %3730 = vst [vmem:[#allocation2 + $0x88] sm:$0xff] %v3678
        %3731 = vst [vmem:[#allocation2 + $0xa0] sm:$0xff] %v3681
        %3732 = vst [vmem:[#allocation2 + $0xb8] sm:$0xff] %v3684
        %3733 = vst [vmem:[#allocation2 + $0xd0] sm:$0xff] %v3687
        %3734 = vst [vmem:[#allocation2 + $0xe8] sm:$0xff] %v3690
        %3735 = vst [vmem:[#allocation2 + $0x100] sm:$0xff] %v3693
        %3736 = vst [vmem:[#allocation2 + $0x118] sm:$0xff] %v3696
        %3737 = vst [vmem:[#allocation2 + $0x130] sm:$0xff] %v3699
        %3738 = vst [vmem:[#allocation2 + $0x148] sm:$0xff] %v3702
        %3739 = vst [vmem:[#allocation2 + $0x160] sm:$0xff] %v3705
        %3740 = vst [vmem:[#allocation2 + $0x178] sm:$0xff] %v3708
        %v3741 = vld [vmem:[#allocation2] sm:$0xff]
        %v3742 = vld [vmem:[#allocation2 + $0x8] sm:$0xff]
        %v3743 = vld [vmem:[#allocation2 + $0x10] sm:$0xff]
        %v3744 = vld [vmem:[#allocation2 + $0x18] sm:$0xff]
        %v3745 = vld [vmem:[#allocation2 + $0x20] sm:$0xff]
        %v3746 = vld [vmem:[#allocation2 + $0x28] sm:$0xff]
        %v3747 = vld [vmem:[#allocation2 + $0x30] sm:$0xff]
        %v3748 = vld [vmem:[#allocation2 + $0x38] sm:$0xff]
        %v3749 = vld [vmem:[#allocation2 + $0x40] sm:$0xff]
        %v3750 = vld [vmem:[#allocation2 + $0x48] sm:$0xff]
        %v3751 = vld [vmem:[#allocation2 + $0x50] sm:$0xff]
        %v3752 = vld [vmem:[#allocation2 + $0x58] sm:$0xff]
        %v3753 = vld [vmem:[#allocation2 + $0x60] sm:$0xff]
        %v3754 = vld [vmem:[#allocation2 + $0x68] sm:$0xff]
        %v3755 = vld [vmem:[#allocation2 + $0x70] sm:$0xff]
        %v3756 = vld [vmem:[#allocation2 + $0x78] sm:$0xff]
        %v3757 = vld [vmem:[#allocation2 + $0x80] sm:$0xff]
        %v3758 = vld [vmem:[#allocation2 + $0x88] sm:$0xff]
        %v3759 = vld [vmem:[#allocation2 + $0x90] sm:$0xff]
        %v3760 = vld [vmem:[#allocation2 + $0x98] sm:$0xff]
        %v3761 = vld [vmem:[#allocation2 + $0xa0] sm:$0xff]
        %v3762 = vld [vmem:[#allocation2 + $0xa8] sm:$0xff]
        %v3763 = vld [vmem:[#allocation2 + $0xb0] sm:$0xff]
        %v3764 = vld [vmem:[#allocation2 + $0xb8] sm:$0xff]
        %v3765 = vld [vmem:[#allocation2 + $0xc0] sm:$0xff]
        %v3766 = vld [vmem:[#allocation2 + $0xc8] sm:$0xff]
        %v3767 = vld [vmem:[#allocation2 + $0xd0] sm:$0xff]
        %v3768 = vld [vmem:[#allocation2 + $0xd8] sm:$0xff]
        %v3769 = vld [vmem:[#allocation2 + $0xe0] sm:$0xff]
        %v3770 = vld [vmem:[#allocation2 + $0xe8] sm:$0xff]
        %v3771 = vld [vmem:[#allocation2 + $0xf0] sm:$0xff]
        %v3772 = vld [vmem:[#allocation2 + $0xf8] sm:$0xff]
        %v3773 = vld [vmem:[#allocation2 + $0x100] sm:$0xff]
        %v3774 = vld [vmem:[#allocation2 + $0x108] sm:$0xff]
        %v3775 = vld [vmem:[#allocation2 + $0x110] sm:$0xff]
        %v3776 = vld [vmem:[#allocation2 + $0x118] sm:$0xff]
        %v3777 = vld [vmem:[#allocation2 + $0x120] sm:$0xff]
        %v3778 = vld [vmem:[#allocation2 + $0x128] sm:$0xff]
        %v3779 = vld [vmem:[#allocation2 + $0x130] sm:$0xff]
        %v3780 = vld [vmem:[#allocation2 + $0x138] sm:$0xff]
        %v3781 = vld [vmem:[#allocation2 + $0x140] sm:$0xff]
        %v3782 = vld [vmem:[#allocation2 + $0x148] sm:$0xff]
        %v3783 = vld [vmem:[#allocation2 + $0x150] sm:$0xff]
        %v3784 = vld [vmem:[#allocation2 + $0x158] sm:$0xff]
        %v3785 = vld [vmem:[#allocation2 + $0x160] sm:$0xff]
        %v3786 = vld [vmem:[#allocation2 + $0x168] sm:$0xff]
        %v3787 = vld [vmem:[#allocation2 + $0x170] sm:$0xff]
        %v3788 = vld [vmem:[#allocation2 + $0x178] sm:$0xff]
        %v3789 = vld [vmem:[%s1 + $0x180] sm:$0xf]
        %v3790 = vld [vmem:[%s1 + $0x184] sm:$0xf]
        %v3791 = vld [vmem:[%s1 + $0x188] sm:$0xf]
        %v3792 = vld [vmem:[%s1 + $0x18c] sm:$0xf]
        %v3793 = vld [vmem:[%s1 + $0x190] sm:$0xf]
        %v3794 = vld [vmem:[%s1 + $0x194] sm:$0xf]
        %v3795 = vld [vmem:[%s1 + $0x198] sm:$0xf]
        %v3796 = vld [vmem:[%s1 + $0x19c] sm:$0xf]
        %v3797 = vld [vmem:[%s1 + $0x1a0] sm:$0xf]
        %v3798 = vld [vmem:[%s1 + $0x1a4] sm:$0xf]
        %v3799 = vld [vmem:[%s1 + $0x1a8] sm:$0xf]
        %v3800 = vld [vmem:[%s1 + $0x1ac] sm:$0xf]
        %v3801 = vld [vmem:[%s1 + $0x1b0] sm:$0xf]
        %v3802 = vld [vmem:[%s1 + $0x1b4] sm:$0xf]
        %v3803 = vld [vmem:[%s1 + $0x1b8] sm:$0xf]
        %v3804 = vld [vmem:[%s1 + $0x1bc] sm:$0xf]
        %v3805 = vld [vmem:[%s1 + $0x1c0] sm:$0xf]
        %v3806 = vld [vmem:[%s1 + $0x1c4] sm:$0xf]
        %v3807 = vld [vmem:[%s1 + $0x1c8] sm:$0xf]
        %v3808 = vld [vmem:[%s1 + $0x1cc] sm:$0xf]
        %v3809 = vld [vmem:[%s1 + $0x1d0] sm:$0xf]
        %v3810 = vld [vmem:[%s1 + $0x1d4] sm:$0xf]
        %v3811 = vld [vmem:[%s1 + $0x1d8] sm:$0xf]
        %v3812 = vld [vmem:[%s1 + $0x1dc] sm:$0xf]
        %v3813 = vld [vmem:[%s1 + $0x1e0] sm:$0xf]
        %v3814 = vld [vmem:[%s1 + $0x1e4] sm:$0xf]
        %v3815 = vld [vmem:[%s1 + $0x1e8] sm:$0xf]
        %v3816 = vld [vmem:[%s1 + $0x1ec] sm:$0xf]
        %v3817 = vld [vmem:[%s1 + $0x1f0] sm:$0xf]
        %v3818 = vld [vmem:[%s1 + $0x1f4] sm:$0xf]
        %v3819 = vld [vmem:[%s1 + $0x1f8] sm:$0xf]
        %v3820 = vld [vmem:[%s1 + $0x1fc] sm:$0xf]
        %v3821 = vld [vmem:[%s1 + $0x200] sm:$0xf]
        %v3822 = vld [vmem:[%s1 + $0x204] sm:$0xf]
        %v3823 = vld [vmem:[%s1 + $0x208] sm:$0xf]
        %v3824 = vld [vmem:[%s1 + $0x20c] sm:$0xf]
        %v3825 = vld [vmem:[%s1 + $0x210] sm:$0xf]
        %v3826 = vld [vmem:[%s1 + $0x214] sm:$0xf]
        %v3827 = vld [vmem:[%s1 + $0x218] sm:$0xf]
        %v3828 = vld [vmem:[%s1 + $0x21c] sm:$0xf]
        %v3829 = vld [vmem:[%s1 + $0x220] sm:$0xf]
        %v3830 = vld [vmem:[%s1 + $0x224] sm:$0xf]
        %v3831 = vld [vmem:[%s1 + $0x228] sm:$0xf]
        %v3832 = vld [vmem:[%s1 + $0x22c] sm:$0xf]
        %v3833 = vld [vmem:[%s1 + $0x230] sm:$0xf]
        %v3834 = vld [vmem:[%s1 + $0x234] sm:$0xf]
        %v3835 = vld [vmem:[%s1 + $0x238] sm:$0xf]
        %v3836 = vld [vmem:[%s1 + $0x23c] sm:$0xf]
        %v3885 = vunpack.c.l.b16 %v3789
        %v3886 = vunpack.c.l.b16 %v3790
        %v3887 = vunpack.c.l.b16 %v3791
        %v3888 = vunpack.c.l.b16 %v3792
        %v3889 = vunpack.c.l.b16 %v3793
        %v3890 = vunpack.c.l.b16 %v3794
        %v3891 = vunpack.c.l.b16 %v3795
        %v3892 = vunpack.c.l.b16 %v3796
        %v3893 = vunpack.c.l.b16 %v3797
        %v3894 = vunpack.c.l.b16 %v3798
        %v3895 = vunpack.c.l.b16 %v3799
        %v3896 = vunpack.c.l.b16 %v3800
        %v3897 = vunpack.c.l.b16 %v3801
        %v3898 = vunpack.c.l.b16 %v3802
        %v3899 = vunpack.c.l.b16 %v3803
        %v3900 = vunpack.c.l.b16 %v3804
        %v3901 = vunpack.c.l.b16 %v3805
        %v3902 = vunpack.c.l.b16 %v3806
        %v3903 = vunpack.c.l.b16 %v3807
        %v3904 = vunpack.c.l.b16 %v3808
        %v3905 = vunpack.c.l.b16 %v3809
        %v3906 = vunpack.c.l.b16 %v3810
        %v3907 = vunpack.c.l.b16 %v3811
        %v3908 = vunpack.c.l.b16 %v3812
        %v3909 = vunpack.c.l.b16 %v3813
        %v3910 = vunpack.c.l.b16 %v3814
        %v3911 = vunpack.c.l.b16 %v3815
        %v3912 = vunpack.c.l.b16 %v3816
        %v3913 = vunpack.c.l.b16 %v3817
        %v3914 = vunpack.c.l.b16 %v3818
        %v3915 = vunpack.c.l.b16 %v3819
        %v3916 = vunpack.c.l.b16 %v3820
        %v3917 = vunpack.c.l.b16 %v3821
        %v3918 = vunpack.c.l.b16 %v3822
        %v3919 = vunpack.c.l.b16 %v3823
        %v3920 = vunpack.c.l.b16 %v3824
        %v3921 = vunpack.c.l.b16 %v3825
        %v3922 = vunpack.c.l.b16 %v3826
        %v3923 = vunpack.c.l.b16 %v3827
        %v3924 = vunpack.c.l.b16 %v3828
        %v3925 = vunpack.c.l.b16 %v3829
        %v3926 = vunpack.c.l.b16 %v3830
        %v3927 = vunpack.c.l.b16 %v3831
        %v3928 = vunpack.c.l.b16 %v3832
        %v3929 = vunpack.c.l.b16 %v3833
        %v3930 = vunpack.c.l.b16 %v3834
        %v3931 = vunpack.c.l.b16 %v3835
        %v3932 = vunpack.c.l.b16 %v3836
        %v3933 = vpack.c.b16 %v3886, %v3885
        %v3934 = vpack.c.b16 %v3888, %v3887
        %v3935 = vpack.c.b16 %v3890, %v3889
        %v3936 = vpack.c.b16 %v3892, %v3891
        %v3937 = vpack.c.b16 %v3894, %v3893
        %v3938 = vpack.c.b16 %v3896, %v3895
        %v3939 = vpack.c.b16 %v3898, %v3897
        %v3940 = vpack.c.b16 %v3900, %v3899
        %v3941 = vpack.c.b16 %v3902, %v3901
        %v3942 = vpack.c.b16 %v3904, %v3903
        %v3943 = vpack.c.b16 %v3906, %v3905
        %v3944 = vpack.c.b16 %v3908, %v3907
        %v3945 = vpack.c.b16 %v3910, %v3909
        %v3946 = vpack.c.b16 %v3912, %v3911
        %v3947 = vpack.c.b16 %v3914, %v3913
        %v3948 = vpack.c.b16 %v3916, %v3915
        %v3949 = vpack.c.b16 %v3918, %v3917
        %v3950 = vpack.c.b16 %v3920, %v3919
        %v3951 = vpack.c.b16 %v3922, %v3921
        %v3952 = vpack.c.b16 %v3924, %v3923
        %v3953 = vpack.c.b16 %v3926, %v3925
        %v3954 = vpack.c.b16 %v3928, %v3927
        %v3955 = vpack.c.b16 %v3930, %v3929
        %v3956 = vpack.c.b16 %v3932, %v3931
        %3981 = vmatprep.subr.bf16.mxu0 0
        %3982 = vmatpush1.bf16.msra.mxu0 %v3933
        %3983 = vmatprep.subr.bf16.mxu0 0
        %3984 = vmatpush1.bf16.msra.mxu0 %v3934
        %3985 = vmatprep.subr.bf16.mxu0 0
        %3986 = vmatpush1.bf16.msra.mxu0 %v3935
        %3987 = vmatprep.subr.bf16.mxu0 0
        %3988 = vmatpush1.bf16.msra.mxu0 %v3936
        %3989 = vmatprep.subr.bf16.mxu0 0
        %3990 = vmatpush1.bf16.msra.mxu0 %v3937
        %3991 = vmatprep.subr.bf16.mxu0 0
        %3992 = vmatpush1.bf16.msra.mxu0 %v3938
        %3993 = vmatprep.subr.bf16.mxu0 0
        %3994 = vmatpush1.bf16.msra.mxu0 %v3939
        %3995 = vmatprep.subr.bf16.mxu0 0
        %3996 = vmatpush1.bf16.msra.mxu0 %v3940
        %3997 = vmatprep.subr.bf16.mxu0 0
        %3998 = vmatpush1.bf16.msra.mxu0 %v3941
        %3999 = vmatprep.subr.bf16.mxu0 0
        %4000 = vmatpush1.bf16.msra.mxu0 %v3942
        %4001 = vmatprep.subr.bf16.mxu0 0
        %4002 = vmatpush1.bf16.msra.mxu0 %v3943
        %4003 = vmatprep.subr.bf16.mxu0 0
        %4004 = vmatpush1.bf16.msra.mxu0 %v3944
        %4005 = vmatprep.subr.bf16.mxu0 0
        %4006 = vmatpush1.bf16.msra.mxu0 %v3945
        %4007 = vmatprep.subr.bf16.mxu0 0
        %4008 = vmatpush1.bf16.msra.mxu0 %v3946
        %4009 = vmatprep.subr.bf16.mxu0 0
        %4010 = vmatpush1.bf16.msra.mxu0 %v3947
        %4011 = vmatprep.subr.bf16.mxu0 0
        %4012 = vmatpush1.bf16.msra.mxu0 %v3948
        %4013 = vmatprep.mubr.bf16.mxu0 %v3742
        %4014 = vmatmul.mubr.bf16.gmra.mrb[0].mxu0 %v3741
        %v4015 = vpop.f32.mrb[0].mxu0
        %v4016 = vadd.f32 0.0, %v4015
        %v4017 = vpop.f32.mrb[0].mxu0
        %v4018 = vpop.f32.mrb[0].mxu0
        %v4019 = vadd.f32 0.0, %v4018
        %v4020 = vpop.f32.mrb[0].mxu0
        %4021 = vmatprep.mubr.bf16.mxu0 %v3745
        %4022 = vmatmul.mubr.bf16.gmra.mrb[0].mxu0 %v3744
        %v4023 = vpop.f32.mrb[0].mxu0
        %v4024 = vadd.f32 0.0, %v4023
        %v4025 = vpop.f32.mrb[0].mxu0
        %v4026 = vpop.f32.mrb[0].mxu0
        %v4027 = vadd.f32 0.0, %v4026
        %v4028 = vpop.f32.mrb[0].mxu0
        %4029 = vmatprep.mubr.bf16.mxu0 %v3748
        %4030 = vmatmul.mubr.bf16.gmra.mrb[0].mxu0 %v3747
        %v4031 = vpop.f32.mrb[0].mxu0
        %v4032 = vadd.f32 0.0, %v4031
        %v4033 = vpop.f32.mrb[0].mxu0
        %v4034 = vpop.f32.mrb[0].mxu0
        %v4035 = vadd.f32 0.0, %v4034
        %v4036 = vpop.f32.mrb[0].mxu0
        %4037 = vmatprep.mubr.bf16.mxu0 %v3751
        %4038 = vmatmul.mubr.bf16.gmra.mrb[0].mxu0 %v3750
        %v4039 = vpop.f32.mrb[0].mxu0
        %v4040 = vadd.f32 0.0, %v4039
        %v4041 = vpop.f32.mrb[0].mxu0
        %v4042 = vpop.f32.mrb[0].mxu0
        %v4043 = vadd.f32 0.0, %v4042
        %v4044 = vpop.f32.mrb[0].mxu0
        %4045 = vmatprep.mubr.bf16.mxu0 %v3754
        %4046 = vmatmul.mubr.bf16.gmra.mrb[0].mxu0 %v3753
        %v4047 = vpop.f32.mrb[0].mxu0
        %v4048 = vadd.f32 0.0, %v4047
        %v4049 = vpop.f32.mrb[0].mxu0
        %v4050 = vpop.f32.mrb[0].mxu0
        %v4051 = vadd.f32 0.0, %v4050
        %v4052 = vpop.f32.mrb[0].mxu0
        %4053 = vmatprep.mubr.bf16.mxu0 %v3757
        %4054 = vmatmul.mubr.bf16.gmra.mrb[0].mxu0 %v3756
        %v4055 = vpop.f32.mrb[0].mxu0
        %v4056 = vadd.f32 0.0, %v4055
        %v4057 = vpop.f32.mrb[0].mxu0
        %v4058 = vpop.f32.mrb[0].mxu0
        %v4059 = vadd.f32 0.0, %v4058
        %v4060 = vpop.f32.mrb[0].mxu0
        %4061 = vmatprep.mubr.bf16.mxu0 %v3760
        %4062 = vmatmul.mubr.bf16.gmra.mrb[0].mxu0 %v3759
        %v4063 = vpop.f32.mrb[0].mxu0
        %v4064 = vadd.f32 0.0, %v4063
        %v4065 = vpop.f32.mrb[0].mxu0
        %v4066 = vpop.f32.mrb[0].mxu0
        %v4067 = vadd.f32 0.0, %v4066
        %v4068 = vpop.f32.mrb[0].mxu0
        %4069 = vmatprep.mubr.bf16.mxu0 %v3763
        %4070 = vmatmul.mubr.bf16.gmra.mrb[0].mxu0 %v3762
        %v4071 = vpop.f32.mrb[0].mxu0
        %v4072 = vadd.f32 0.0, %v4071
        %v4073 = vpop.f32.mrb[0].mxu0
        %v4074 = vpop.f32.mrb[0].mxu0
        %v4075 = vadd.f32 0.0, %v4074
        %v4076 = vpop.f32.mrb[0].mxu0
        %4077 = vmatprep.mubr.bf16.mxu0 %v3766
        %4078 = vmatmul.mubr.bf16.gmra.mrb[0].mxu0 %v3765
        %v4079 = vpop.f32.mrb[0].mxu0
        %v4080 = vadd.f32 0.0, %v4079
        %v4081 = vpop.f32.mrb[0].mxu0
        %v4082 = vpop.f32.mrb[0].mxu0
        %v4083 = vadd.f32 0.0, %v4082
        %v4084 = vpop.f32.mrb[0].mxu0
        %4085 = vmatprep.mubr.bf16.mxu0 %v3769
        %4086 = vmatmul.mubr.bf16.gmra.mrb[0].mxu0 %v3768
        %v4087 = vpop.f32.mrb[0].mxu0
        %v4088 = vadd.f32 0.0, %v4087
        %v4089 = vpop.f32.mrb[0].mxu0
        %v4090 = vpop.f32.mrb[0].mxu0
        %v4091 = vadd.f32 0.0, %v4090
        %v4092 = vpop.f32.mrb[0].mxu0
        %4093 = vmatprep.mubr.bf16.mxu0 %v3772
        %4094 = vmatmul.mubr.bf16.gmra.mrb[0].mxu0 %v3771
        %v4095 = vpop.f32.mrb[0].mxu0
        %v4096 = vadd.f32 0.0, %v4095
        %v4097 = vpop.f32.mrb[0].mxu0
        %v4098 = vpop.f32.mrb[0].mxu0
        %v4099 = vadd.f32 0.0, %v4098
        %v4100 = vpop.f32.mrb[0].mxu0
        %4101 = vmatprep.mubr.bf16.mxu0 %v3775
        %4102 = vmatmul.mubr.bf16.gmra.mrb[0].mxu0 %v3774
        %v4103 = vpop.f32.mrb[0].mxu0
        %v4104 = vadd.f32 0.0, %v4103
        %v4105 = vpop.f32.mrb[0].mxu0
        %v4106 = vpop.f32.mrb[0].mxu0
        %v4107 = vadd.f32 0.0, %v4106
        %v4108 = vpop.f32.mrb[0].mxu0
        %4109 = vmatprep.mubr.bf16.mxu0 %v3778
        %4110 = vmatmul.mubr.bf16.gmra.mrb[0].mxu0 %v3777
        %v4111 = vpop.f32.mrb[0].mxu0
        %v4112 = vadd.f32 0.0, %v4111
        %v4113 = vpop.f32.mrb[0].mxu0
        %v4114 = vpop.f32.mrb[0].mxu0
        %v4115 = vadd.f32 0.0, %v4114
        %v4116 = vpop.f32.mrb[0].mxu0
        %4117 = vmatprep.mubr.bf16.mxu0 %v3781
        %4118 = vmatmul.mubr.bf16.gmra.mrb[0].mxu0 %v3780
        %v4119 = vpop.f32.mrb[0].mxu0
        %v4120 = vadd.f32 0.0, %v4119
        %v4121 = vpop.f32.mrb[0].mxu0
        %v4122 = vpop.f32.mrb[0].mxu0
        %v4123 = vadd.f32 0.0, %v4122
        %v4124 = vpop.f32.mrb[0].mxu0
        %4125 = vmatprep.mubr.bf16.mxu0 %v3784
        %4126 = vmatmul.mubr.bf16.gmra.mrb[0].mxu0 %v3783
        %v4127 = vpop.f32.mrb[0].mxu0
        %v4128 = vadd.f32 0.0, %v4127
        %v4129 = vpop.f32.mrb[0].mxu0
        %v4130 = vpop.f32.mrb[0].mxu0
        %v4131 = vadd.f32 0.0, %v4130
        %v4132 = vpop.f32.mrb[0].mxu0
        %4133 = vmatprep.mubr.bf16.mxu0 %v3787
        %4134 = vmatmul.mubr.bf16.gmra.mrb[0].mxu0 %v3786
        %v4135 = vpop.f32.mrb[0].mxu0
        %v4136 = vadd.f32 0.0, %v4135
        %v4137 = vpop.f32.mrb[0].mxu0
        %v4138 = vpop.f32.mrb[0].mxu0
        %v4139 = vadd.f32 0.0, %v4138
        %v4140 = vpop.f32.mrb[0].mxu0
        %4141 = vdwg.mxu0
        %4142 = vmatprep.subr.bf16.mxu0 0
        %4143 = vmatpush1.bf16.msra.mxu0 %v3949
        %4144 = vmatprep.subr.bf16.mxu0 0
        %4145 = vmatpush1.bf16.msra.mxu0 %v3950
        %4146 = vmatprep.subr.bf16.mxu0 0
        %4147 = vmatpush1.bf16.msra.mxu0 %v3951
        %4148 = vmatprep.subr.bf16.mxu0 0
        %4149 = vmatpush1.bf16.msra.mxu0 %v3952
        %4150 = vmatprep.subr.bf16.mxu0 0
        %4151 = vmatpush1.bf16.msra.mxu0 %v3953
        %4152 = vmatprep.subr.bf16.mxu0 0
        %4153 = vmatpush1.bf16.msra.mxu0 %v3954
        %4154 = vmatprep.subr.bf16.mxu0 0
        %4155 = vmatpush1.bf16.msra.mxu0 %v3955
        %4156 = vmatprep.subr.bf16.mxu0 0
        %4157 = vmatpush1.bf16.msra.mxu0 %v3956
        %4158 = vmatprep.subr.bf16.mxu0 0
        %4159 = vmatpush1.bf16.msra.mxu0 0
        %4160 = vmatprep.subr.bf16.mxu0 0
        %4161 = vmatpush1.bf16.msra.mxu0 0
        %4162 = vmatprep.subr.bf16.mxu0 0
        %4163 = vmatpush1.bf16.msra.mxu0 0
        %4164 = vmatprep.subr.bf16.mxu0 0
        %4165 = vmatpush1.bf16.msra.mxu0 0
        %4166 = vmatprep.subr.bf16.mxu0 0
        %4167 = vmatpush1.bf16.msra.mxu0 0
        %4168 = vmatprep.subr.bf16.mxu0 0
        %4169 = vmatpush1.bf16.msra.mxu0 0
        %4170 = vmatprep.subr.bf16.mxu0 0
        %4171 = vmatpush1.bf16.msra.mxu0 0
        %4172 = vmatprep.subr.bf16.mxu0 0
        %4173 = vmatpush1.bf16.msra.mxu0 0
        %4174 = vmatprep.mubr.bf16.mxu0 0
        %4175 = vmatmul.mubr.bf16.gmra.mrb[0].mxu0 %v3743
        %v4176 = vpop.f32.mrb[0].mxu0
        %v4177 = vadd.f32 %v4016, %v4176
        %v4178 = vpop.f32.mrb[0].mxu0
        %v4179 = vpop.f32.mrb[0].mxu0
        %v4180 = vadd.f32 %v4019, %v4179
        %v4181 = vpop.f32.mrb[0].mxu0
        %4182 = vmatprep.mubr.bf16.mxu0 0
        %4183 = vmatmul.mubr.bf16.gmra.mrb[0].mxu0 %v3746
        %v4184 = vpop.f32.mrb[0].mxu0
        %v4185 = vadd.f32 %v4024, %v4184
        %v4186 = vpop.f32.mrb[0].mxu0
        %v4187 = vpop.f32.mrb[0].mxu0
        %v4188 = vadd.f32 %v4027, %v4187
        %v4189 = vpop.f32.mrb[0].mxu0
        %4190 = vmatprep.mubr.bf16.mxu0 0
        %4191 = vmatmul.mubr.bf16.gmra.mrb[0].mxu0 %v3749
        %v4192 = vpop.f32.mrb[0].mxu0
        %v4193 = vadd.f32 %v4032, %v4192
        %v4194 = vpop.f32.mrb[0].mxu0
        %v4195 = vpop.f32.mrb[0].mxu0
        %v4196 = vadd.f32 %v4035, %v4195
        %v4197 = vpop.f32.mrb[0].mxu0
        %4198 = vmatprep.mubr.bf16.mxu0 0
        %4199 = vmatmul.mubr.bf16.gmra.mrb[0].mxu0 %v3752
        %v4200 = vpop.f32.mrb[0].mxu0
        %v4201 = vadd.f32 %v4040, %v4200
        %v4202 = vpop.f32.mrb[0].mxu0
        %v4203 = vpop.f32.mrb[0].mxu0
        %v4204 = vadd.f32 %v4043, %v4203
        %v4205 = vpop.f32.mrb[0].mxu0
        %4206 = vmatprep.mubr.bf16.mxu0 0
        %4207 = vmatmul.mubr.bf16.gmra.mrb[0].mxu0 %v3755
        %v4208 = vpop.f32.mrb[0].mxu0
        %v4209 = vadd.f32 %v4048, %v4208
        %v4210 = vpop.f32.mrb[0].mxu0
        %v4211 = vpop.f32.mrb[0].mxu0
        %v4212 = vadd.f32 %v4051, %v4211
        %v4213 = vpop.f32.mrb[0].mxu0
        %4214 = vmatprep.mubr.bf16.mxu0 0
        %4215 = vmatmul.mubr.bf16.gmra.mrb[0].mxu0 %v3758
        %v4216 = vpop.f32.mrb[0].mxu0
        %v4217 = vadd.f32 %v4056, %v4216
        %v4218 = vpop.f32.mrb[0].mxu0
        %v4219 = vpop.f32.mrb[0].mxu0
        %v4220 = vadd.f32 %v4059, %v4219
        %v4221 = vpop.f32.mrb[0].mxu0
        %4222 = vmatprep.mubr.bf16.mxu0 0
        %4223 = vmatmul.mubr.bf16.gmra.mrb[0].mxu0 %v3761
        %v4224 = vpop.f32.mrb[0].mxu0
        %v4225 = vadd.f32 %v4064, %v4224
        %v4226 = vpop.f32.mrb[0].mxu0
        %v4227 = vpop.f32.mrb[0].mxu0
        %v4228 = vadd.f32 %v4067, %v4227
        %v4229 = vpop.f32.mrb[0].mxu0
        %4230 = vmatprep.mubr.bf16.mxu0 0
        %4231 = vmatmul.mubr.bf16.gmra.mrb[0].mxu0 %v3764
        %v4232 = vpop.f32.mrb[0].mxu0
        %v4233 = vadd.f32 %v4072, %v4232
        %v4234 = vpop.f32.mrb[0].mxu0
        %v4235 = vpop.f32.mrb[0].mxu0
        %v4236 = vadd.f32 %v4075, %v4235
        %v4237 = vpop.f32.mrb[0].mxu0
        %4238 = vmatprep.mubr.bf16.mxu0 0
        %4239 = vmatmul.mubr.bf16.gmra.mrb[0].mxu0 %v3767
        %v4240 = vpop.f32.mrb[0].mxu0
        %v4241 = vadd.f32 %v4080, %v4240
        %v4242 = vpop.f32.mrb[0].mxu0
        %v4243 = vpop.f32.mrb[0].mxu0
        %v4244 = vadd.f32 %v4083, %v4243
        %v4245 = vpop.f32.mrb[0].mxu0
        %4246 = vmatprep.mubr.bf16.mxu0 0
        %4247 = vmatmul.mubr.bf16.gmra.mrb[0].mxu0 %v3770
        %v4248 = vpop.f32.mrb[0].mxu0
        %v4249 = vadd.f32 %v4088, %v4248
        %v4250 = vpop.f32.mrb[0].mxu0
        %v4251 = vpop.f32.mrb[0].mxu0
        %v4252 = vadd.f32 %v4091, %v4251
        %v4253 = vpop.f32.mrb[0].mxu0
        %4254 = vmatprep.mubr.bf16.mxu0 0
        %4255 = vmatmul.mubr.bf16.gmra.mrb[0].mxu0 %v3773
        %v4256 = vpop.f32.mrb[0].mxu0
        %v4257 = vadd.f32 %v4096, %v4256
        %v4258 = vpop.f32.mrb[0].mxu0
        %v4259 = vpop.f32.mrb[0].mxu0
        %v4260 = vadd.f32 %v4099, %v4259
        %v4261 = vpop.f32.mrb[0].mxu0
        %4262 = vmatprep.mubr.bf16.mxu0 0
        %4263 = vmatmul.mubr.bf16.gmra.mrb[0].mxu0 %v3776
        %v4264 = vpop.f32.mrb[0].mxu0
        %v4265 = vadd.f32 %v4104, %v4264
        %v4266 = vpop.f32.mrb[0].mxu0
        %v4267 = vpop.f32.mrb[0].mxu0
        %v4268 = vadd.f32 %v4107, %v4267
        %v4269 = vpop.f32.mrb[0].mxu0
        %4270 = vmatprep.mubr.bf16.mxu0 0
        %4271 = vmatmul.mubr.bf16.gmra.mrb[0].mxu0 %v3779
        %v4272 = vpop.f32.mrb[0].mxu0
        %v4273 = vadd.f32 %v4112, %v4272
        %v4274 = vpop.f32.mrb[0].mxu0
        %v4275 = vpop.f32.mrb[0].mxu0
        %v4276 = vadd.f32 %v4115, %v4275
        %v4277 = vpop.f32.mrb[0].mxu0
        %4278 = vmatprep.mubr.bf16.mxu0 0
        %4279 = vmatmul.mubr.bf16.gmra.mrb[0].mxu0 %v3782
        %v4280 = vpop.f32.mrb[0].mxu0
        %v4281 = vadd.f32 %v4120, %v4280
        %v4282 = vpop.f32.mrb[0].mxu0
        %v4283 = vpop.f32.mrb[0].mxu0
        %v4284 = vadd.f32 %v4123, %v4283
        %v4285 = vpop.f32.mrb[0].mxu0
        %4286 = vmatprep.mubr.bf16.mxu0 0
        %4287 = vmatmul.mubr.bf16.gmra.mrb[0].mxu0 %v3785
        %v4288 = vpop.f32.mrb[0].mxu0
        %v4289 = vadd.f32 %v4128, %v4288
        %v4290 = vpop.f32.mrb[0].mxu0
        %v4291 = vpop.f32.mrb[0].mxu0
        %v4292 = vadd.f32 %v4131, %v4291
        %v4293 = vpop.f32.mrb[0].mxu0
        %4294 = vmatprep.mubr.bf16.mxu0 0
        %4295 = vmatmul.mubr.bf16.gmra.mrb[0].mxu0 %v3788
        %v4296 = vpop.f32.mrb[0].mxu0
        %v4297 = vadd.f32 %v4136, %v4296
        %v4298 = vpop.f32.mrb[0].mxu0
        %v4299 = vpop.f32.mrb[0].mxu0
        %v4300 = vadd.f32 %v4139, %v4299
        %v4301 = vpop.f32.mrb[0].mxu0
        %4302 = vdwg.mxu0
        %v4303 = vadd.f32 %v2814, %v4177
        %v4304 = vadd.f32 %v2817, %v4180
        %v4305 = vadd.f32 %v2822, %v4185
        %v4306 = vadd.f32 %v2825, %v4188
        %v4307 = vadd.f32 %v2830, %v4193
        %v4308 = vadd.f32 %v2833, %v4196
        %v4309 = vadd.f32 %v2838, %v4201
        %v4310 = vadd.f32 %v2841, %v4204
        %v4311 = vadd.f32 %v2846, %v4209
        %v4312 = vadd.f32 %v2849, %v4212
        %v4313 = vadd.f32 %v2854, %v4217
        %v4314 = vadd.f32 %v2857, %v4220
        %v4315 = vadd.f32 %v2862, %v4225
        %v4316 = vadd.f32 %v2865, %v4228
        %v4317 = vadd.f32 %v2870, %v4233
        %v4318 = vadd.f32 %v2873, %v4236
        %v4319 = vadd.f32 %v2878, %v4241
        %v4320 = vadd.f32 %v2881, %v4244
        %v4321 = vadd.f32 %v2886, %v4249
        %v4322 = vadd.f32 %v2889, %v4252
        %v4323 = vadd.f32 %v2894, %v4257
        %v4324 = vadd.f32 %v2897, %v4260
        %v4325 = vadd.f32 %v2902, %v4265
        %v4326 = vadd.f32 %v2905, %v4268
        %v4327 = vadd.f32 %v2910, %v4273
        %v4328 = vadd.f32 %v2913, %v4276
        %v4329 = vadd.f32 %v2918, %v4281
        %v4330 = vadd.f32 %v2921, %v4284
        %v4331 = vadd.f32 %v2926, %v4289
        %v4332 = vadd.f32 %v2929, %v4292
        %v4333 = vadd.f32 %v2934, %v4297
        %v4334 = vadd.f32 %v2937, %v4300
        %v4335 = vpack.c.bf16 %v4304, %v4303
        %v4336 = vpack.c.bf16 %v4306, %v4305
        %v4337 = vpack.c.bf16 %v4308, %v4307
        %v4338 = vpack.c.bf16 %v4310, %v4309
        %v4339 = vpack.c.bf16 %v4312, %v4311
        %v4340 = vpack.c.bf16 %v4314, %v4313
        %v4341 = vpack.c.bf16 %v4316, %v4315
        %v4342 = vpack.c.bf16 %v4318, %v4317
        %v4343 = vpack.c.bf16 %v4320, %v4319
        %v4344 = vpack.c.bf16 %v4322, %v4321
        %v4345 = vpack.c.bf16 %v4324, %v4323
        %v4346 = vpack.c.bf16 %v4326, %v4325
        %v4347 = vpack.c.bf16 %v4328, %v4327
        %v4348 = vpack.c.bf16 %v4330, %v4329
        %v4349 = vpack.c.bf16 %v4332, %v4331
        %v4350 = vpack.c.bf16 %v4334, %v4333
        %v4367 = vunpack.c.l.b16 %v4335
        %v4368 = vunpack.c.h.b16 %v4335
        %v4369 = vunpack.c.l.b16 %v4336
        %v4370 = vunpack.c.h.b16 %v4336
        %v4371 = vunpack.c.l.b16 %v4337
        %v4372 = vunpack.c.h.b16 %v4337
        %v4373 = vunpack.c.l.b16 %v4338
        %v4374 = vunpack.c.h.b16 %v4338
        %v4375 = vunpack.c.l.b16 %v4339
        %v4376 = vunpack.c.h.b16 %v4339
        %v4377 = vunpack.c.l.b16 %v4340
        %v4378 = vunpack.c.h.b16 %v4340
        %v4379 = vunpack.c.l.b16 %v4341
        %v4380 = vunpack.c.h.b16 %v4341
        %v4381 = vunpack.c.l.b16 %v4342
        %v4382 = vunpack.c.h.b16 %v4342
        %v4383 = vunpack.c.l.b16 %v4343
        %v4384 = vunpack.c.h.b16 %v4343
        %v4385 = vunpack.c.l.b16 %v4344
        %v4386 = vunpack.c.h.b16 %v4344
        %v4387 = vunpack.c.l.b16 %v4345
        %v4388 = vunpack.c.h.b16 %v4345
        %v4389 = vunpack.c.l.b16 %v4346
        %v4390 = vunpack.c.h.b16 %v4346
        %v4391 = vunpack.c.l.b16 %v4347
        %v4392 = vunpack.c.h.b16 %v4347
        %v4393 = vunpack.c.l.b16 %v4348
        %v4394 = vunpack.c.h.b16 %v4348
        %v4395 = vunpack.c.l.b16 %v4349
        %v4396 = vunpack.c.h.b16 %v4349
        %v4397 = vunpack.c.l.b16 %v4350
        %v4398 = vunpack.c.h.b16 %v4350
        %v4399 = vpack.c.b16 %v4367, %v4367
        %v4400 = vpack.c.b16 %v4368, %v4368
        %v4401 = vpack.c.b16 %v4369, %v4369
        %v4402 = vpack.c.b16 %v4370, %v4370
        %v4403 = vpack.c.b16 %v4371, %v4371
        %v4404 = vpack.c.b16 %v4372, %v4372
        %v4405 = vpack.c.b16 %v4373, %v4373
        %v4406 = vpack.c.b16 %v4374, %v4374
        %v4407 = vpack.c.b16 %v4375, %v4375
        %v4408 = vpack.c.b16 %v4376, %v4376
        %v4409 = vpack.c.b16 %v4377, %v4377
        %v4410 = vpack.c.b16 %v4378, %v4378
        %v4411 = vpack.c.b16 %v4379, %v4379
        %v4412 = vpack.c.b16 %v4380, %v4380
        %v4413 = vpack.c.b16 %v4381, %v4381
        %v4414 = vpack.c.b16 %v4382, %v4382
        %v4415 = vpack.c.b16 %v4383, %v4383
        %v4416 = vpack.c.b16 %v4384, %v4384
        %v4417 = vpack.c.b16 %v4385, %v4385
        %v4418 = vpack.c.b16 %v4386, %v4386
        %v4419 = vpack.c.b16 %v4387, %v4387
        %v4420 = vpack.c.b16 %v4388, %v4388
        %v4421 = vpack.c.b16 %v4389, %v4389
        %v4422 = vpack.c.b16 %v4390, %v4390
        %v4423 = vpack.c.b16 %v4391, %v4391
        %v4424 = vpack.c.b16 %v4392, %v4392
        %v4425 = vpack.c.b16 %v4393, %v4393
        %v4426 = vpack.c.b16 %v4394, %v4394
        %v4427 = vpack.c.b16 %v4395, %v4395
        %v4428 = vpack.c.b16 %v4396, %v4396
        %v4429 = vpack.c.b16 %v4397, %v4397
        %v4430 = vpack.c.b16 %v4398, %v4398
        %4463 = vst [vmem:[%s194] sm:$0xf] %v4399
        %4464 = vst [vmem:[%s194 + $0x4] sm:$0xf] %v4400
        %4465 = vst [vmem:[%s194 + $0x8] sm:$0xf] %v4401
        %4466 = vst [vmem:[%s194 + $0xc] sm:$0xf] %v4402
        %4467 = vst [vmem:[%s194 + $0x10] sm:$0xf] %v4403
        %4468 = vst [vmem:[%s194 + $0x14] sm:$0xf] %v4404
        %4469 = vst [vmem:[%s194 + $0x18] sm:$0xf] %v4405
        %4470 = vst [vmem:[%s194 + $0x1c] sm:$0xf] %v4406
        %4471 = vst [vmem:[%s194 + $0x20] sm:$0xf] %v4407
        %4472 = vst [vmem:[%s194 + $0x24] sm:$0xf] %v4408
        %4473 = vst [vmem:[%s194 + $0x28] sm:$0xf] %v4409
        %4474 = vst [vmem:[%s194 + $0x2c] sm:$0xf] %v4410
        %4475 = vst [vmem:[%s194 + $0x30] sm:$0xf] %v4411
        %4476 = vst [vmem:[%s194 + $0x34] sm:$0xf] %v4412
        %4477 = vst [vmem:[%s194 + $0x38] sm:$0xf] %v4413
        %4478 = vst [vmem:[%s194 + $0x3c] sm:$0xf] %v4414
        %4479 = vst [vmem:[%s194 + $0x40] sm:$0xf] %v4415
        %4480 = vst [vmem:[%s194 + $0x44] sm:$0xf] %v4416
        %4481 = vst [vmem:[%s194 + $0x48] sm:$0xf] %v4417
        %4482 = vst [vmem:[%s194 + $0x4c] sm:$0xf] %v4418
        %4483 = vst [vmem:[%s194 + $0x50] sm:$0xf] %v4419
        %4484 = vst [vmem:[%s194 + $0x54] sm:$0xf] %v4420
        %4485 = vst [vmem:[%s194 + $0x58] sm:$0xf] %v4421
        %4486 = vst [vmem:[%s194 + $0x5c] sm:$0xf] %v4422
        %4487 = vst [vmem:[%s194 + $0x60] sm:$0xf] %v4423
        %4488 = vst [vmem:[%s194 + $0x64] sm:$0xf] %v4424
        %4489 = vst [vmem:[%s194 + $0x68] sm:$0xf] %v4425
        %4490 = vst [vmem:[%s194 + $0x6c] sm:$0xf] %v4426
        %4491 = vst [vmem:[%s194 + $0x70] sm:$0xf] %v4427
        %4492 = vst [vmem:[%s194 + $0x74] sm:$0xf] %v4428
        %4493 = vst [vmem:[%s194 + $0x78] sm:$0xf] %v4429
        %4494 = vst [vmem:[%s194 + $0x7c] sm:$0xf] %v4430
        %v4495 = vadd.f32 %v4303, %v4304
        %v4496 = vadd.f32 %v4495, %v4305
        %v4497 = vadd.f32 %v4496, %v4306
        %v4498 = vadd.f32 %v4497, %v4307
        %v4499 = vadd.f32 %v4498, %v4308
        %v4500 = vadd.f32 %v4499, %v4309
        %v4501 = vadd.f32 %v4500, %v4310
        %v4502 = vadd.f32 %v4501, %v4311
        %v4503 = vadd.f32 %v4502, %v4312
        %v4504 = vadd.f32 %v4503, %v4313
        %v4505 = vadd.f32 %v4504, %v4314
        %v4506 = vadd.f32 %v4505, %v4315
        %v4507 = vadd.f32 %v4506, %v4316
        %v4508 = vadd.f32 %v4507, %v4317
        %v4509 = vadd.f32 %v4508, %v4318
        %v4510 = vadd.f32 %v4509, %v4319
        %v4511 = vadd.f32 %v4510, %v4320
        %v4512 = vadd.f32 %v4511, %v4321
        %v4513 = vadd.f32 %v4512, %v4322
        %v4514 = vadd.f32 %v4513, %v4323
        %v4515 = vadd.f32 %v4514, %v4324
        %v4516 = vadd.f32 %v4515, %v4325
        %v4517 = vadd.f32 %v4516, %v4326
        %v4518 = vadd.f32 %v4517, %v4327
        %v4519 = vadd.f32 %v4518, %v4328
        %v4520 = vadd.f32 %v4519, %v4329
        %v4521 = vadd.f32 %v4520, %v4330
        %v4522 = vadd.f32 %v4521, %v4331
        %v4523 = vadd.f32 %v4522, %v4332
        %v4524 = vadd.f32 %v4523, %v4333
        %v4525 = vadd.f32 %v4524, %v4334
        %v4526 = vrot.slane %v4525, 4
        %v4527 = vadd.f32 %v4525, %v4526
        %v4528 = vrot.slane %v4527, 2
        %v4529 = vadd.f32 %v4527, %v4528
        %v4530 = vrot.slane %v4529, 1
        %v4531 = vadd.f32 %v4529, %v4530
        %4532 = vst [vmem:[%s200] sm:$0x1] %v4531
        %v4533 = vmul.f32 %v4303, %v4303
        %v4534 = vmul.f32 %v4304, %v4304
        %v4535 = vmul.f32 %v4305, %v4305
        %v4536 = vmul.f32 %v4306, %v4306
        %v4537 = vmul.f32 %v4307, %v4307
        %v4538 = vmul.f32 %v4308, %v4308
        %v4539 = vmul.f32 %v4309, %v4309
        %v4540 = vmul.f32 %v4310, %v4310
        %v4541 = vmul.f32 %v4311, %v4311
        %v4542 = vmul.f32 %v4312, %v4312
        %v4543 = vmul.f32 %v4313, %v4313
        %v4544 = vmul.f32 %v4314, %v4314
        %v4545 = vmul.f32 %v4315, %v4315
        %v4546 = vmul.f32 %v4316, %v4316
        %v4547 = vmul.f32 %v4317, %v4317
        %v4548 = vmul.f32 %v4318, %v4318
        %v4549 = vmul.f32 %v4319, %v4319
        %v4550 = vmul.f32 %v4320, %v4320
        %v4551 = vmul.f32 %v4321, %v4321
        %v4552 = vmul.f32 %v4322, %v4322
        %v4553 = vmul.f32 %v4323, %v4323
        %v4554 = vmul.f32 %v4324, %v4324
        %v4555 = vmul.f32 %v4325, %v4325
        %v4556 = vmul.f32 %v4326, %v4326
        %v4557 = vmul.f32 %v4327, %v4327
        %v4558 = vmul.f32 %v4328, %v4328
        %v4559 = vmul.f32 %v4329, %v4329
        %v4560 = vmul.f32 %v4330, %v4330
        %v4561 = vmul.f32 %v4331, %v4331
        %v4562 = vmul.f32 %v4332, %v4332
        %v4563 = vmul.f32 %v4333, %v4333
        %v4564 = vmul.f32 %v4334, %v4334
        %v4565 = vadd.f32 %v4533, %v4534
        %v4566 = vadd.f32 %v4565, %v4535
        %v4567 = vadd.f32 %v4566, %v4536
        %v4568 = vadd.f32 %v4567, %v4537
        %v4569 = vadd.f32 %v4568, %v4538
        %v4570 = vadd.f32 %v4569, %v4539
        %v4571 = vadd.f32 %v4570, %v4540
        %v4572 = vadd.f32 %v4571, %v4541
        %v4573 = vadd.f32 %v4572, %v4542
        %v4574 = vadd.f32 %v4573, %v4543
        %v4575 = vadd.f32 %v4574, %v4544
        %v4576 = vadd.f32 %v4575, %v4545
        %v4577 = vadd.f32 %v4576, %v4546
        %v4578 = vadd.f32 %v4577, %v4547
        %v4579 = vadd.f32 %v4578, %v4548
        %v4580 = vadd.f32 %v4579, %v4549
        %v4581 = vadd.f32 %v4580, %v4550
        %v4582 = vadd.f32 %v4581, %v4551
        %v4583 = vadd.f32 %v4582, %v4552
        %v4584 = vadd.f32 %v4583, %v4553
        %v4585 = vadd.f32 %v4584, %v4554
        %v4586 = vadd.f32 %v4585, %v4555
        %v4587 = vadd.f32 %v4586, %v4556
        %v4588 = vadd.f32 %v4587, %v4557
        %v4589 = vadd.f32 %v4588, %v4558
        %v4590 = vadd.f32 %v4589, %v4559
        %v4591 = vadd.f32 %v4590, %v4560
        %v4592 = vadd.f32 %v4591, %v4561
        %v4593 = vadd.f32 %v4592, %v4562
        %v4594 = vadd.f32 %v4593, %v4563
        %v4595 = vadd.f32 %v4594, %v4564
        %v4596 = vrot.slane %v4595, 4
        %v4597 = vadd.f32 %v4595, %v4596
        %v4598 = vrot.slane %v4597, 2
        %v4599 = vadd.f32 %v4597, %v4598
        %v4600 = vrot.slane %v4599, 1
        %v4601 = vadd.f32 %v4599, %v4600
        %4602 = vst [vmem:[%s206] sm:$0x1] %v4601
        %s4603 = sand.u32 %s77, 1
        %s4604 = scalar_lea.sflag [#allocation4], %s4603
        %s4605 = sand.u32 %s77, 1
        %s4606 = smul.addr %s4605, 128
        %s4607 = scalar_lea.vmem [#allocation3], %s4606
        %s4608 = sand.u32 %s22, 1
        %s4609 = scalar_lea.sflag [#allocation6], %s4608
        %s4610 = sand.u32 %s103, 1
        %s4611 = scalar_lea.vmem [#allocation5], %s4610
        %s4612 = sand.u32 %s22, 1
        %s4613 = scalar_lea.sflag [#allocation6], %s4612
        %s4614 = sand.u32 %s129, 1
        %s4615 = scalar_lea.vmem [#allocation7], %s4614
        // Predicated region
        $region29: #{tpu_custom_call.1} parent=27 // pred_check
          %p4616 = pneg %p87
        $region30: #{tpu_custom_call.1} parent=27 // pred_check_branch
          %4618 = sbr.rel (%p4616) target = $region32
        $region31: #{tpu_custom_call.1} parent=27 // pred_region
          %s4620 = ssub.s32 2048, 2048
          %4621 = vsyncadd %s4604, %s4620
          %s4622 = smul.addr %s22, 32
          %s4623 = smul.addr %s4622, 64
          %s4624 = scalar_lea.hbm %s2, %s4623
          %s4625 = sshll.u32 %s4607, 4
          %s4626 = int_to_ptr.vmem [resolvable:$true] %s4625
          %4631 = dma.vmem_to_hbm [thread:$0]  %s4626, 2048, %s4624, %s4604, 64, 64, 4
        $region32: #{tpu_custom_call.1} parent=27 // pred_fallthru
          _
        // Predicated region
        $region33: #{tpu_custom_call.1} parent=27 // pred_check
          %p4632 = pneg %p113
        $region34: #{tpu_custom_call.1} parent=27 // pred_check_branch
          %4634 = sbr.rel (%p4632) target = $region36
        $region35: #{tpu_custom_call.1} parent=27 // pred_region
          %s4636 = ssub.s32 16, 16
          %4637 = vsyncadd %s4609, %s4636
          %s4638 = smul.addr %s22, 16
          %s4639 = scalar_lea.hbm %s3, %s4638
          %s4641 = sshll.u32 %s4611, 4
          %s4642 = int_to_ptr.vmem [resolvable:$true] %s4641
          %4644 = dma.vmem_to_hbm [thread:$0]  %s4642, 16, %s4639, %s4609
        $region36: #{tpu_custom_call.1} parent=27 // pred_fallthru
          _
        // Predicated region
        $region37: #{tpu_custom_call.1} parent=27 // pred_check
          %p4645 = pneg %p139
        $region38: #{tpu_custom_call.1} parent=27 // pred_check_branch
          %4647 = sbr.rel (%p4645) target = $region40
        $region39: #{tpu_custom_call.1} parent=27 // pred_region
          %s4649 = ssub.s32 16, 16
          %4650 = vsyncadd %s4613, %s4649
          %s4651 = smul.addr %s22, 16
          %s4652 = scalar_lea.hbm %s4, %s4651
          %s4654 = sshll.u32 %s4615, 4
          %s4655 = int_to_ptr.vmem [resolvable:$true] %s4654
          %4657 = dma.vmem_to_hbm [thread:$0]  %s4655, 16, %s4652, %s4613
        $region40: #{tpu_custom_call.1} parent=27 // pred_fallthru
          _
      $region28: #{tpu_custom_call.1} parent=5 // pred_fallthru
        _
      %p4658 = scmp.le.s32.totalorder 2, %s17
      // Predicated region
      $region41: #{tpu_custom_call.1} parent=5 // pred_check
        %p4659 = pneg %p4658
      $region42: #{tpu_custom_call.1} parent=5 // pred_check_branch
        %4661 = sbr.rel (%p4659) target = $region44
      $region43: #{tpu_custom_call.1} parent=5 // pred_region
        %s4662 = ssub.s32 %s17, 2
        // Predicated region
        $region45: #{tpu_custom_call.1} parent=43 // pred_check
          %p4663 = pneg %p93
        $region46: #{tpu_custom_call.1} parent=43 // pred_check_branch
          %4665 = sbr.rel (%p4663) target = $region48
        $region47: #{tpu_custom_call.1} parent=43 // pred_region
          %s4666 = sand.u32 %s78, 1
          %s4667 = scalar_lea.sflag [#allocation4], %s4666
          %s4668 = sand.u32 %s78, 1
          %s4669 = smul.addr %s4668, 128
          %s4670 = scalar_lea.vmem [#allocation3], %s4669
          %4671 = dma.done %s4667, 2048
        $region48: #{tpu_custom_call.1} parent=43 // pred_fallthru
          _
        // Predicated region
        $region49: #{tpu_custom_call.1} parent=43 // pred_check
          %p4672 = pneg %p119
        $region50: #{tpu_custom_call.1} parent=43 // pred_check_branch
          %4674 = sbr.rel (%p4672) target = $region52
        $region51: #{tpu_custom_call.1} parent=43 // pred_region
          %s4675 = sand.u32 %s23, 1
          %s4676 = scalar_lea.sflag [#allocation6], %s4675
          %s4677 = sand.u32 %s104, 1
          %s4678 = scalar_lea.vmem [#allocation5], %s4677
          %4679 = dma.done %s4676, 16
        $region52: #{tpu_custom_call.1} parent=43 // pred_fallthru
          _
        // Predicated region
        $region53: #{tpu_custom_call.1} parent=43 // pred_check
          %p4680 = pneg %p145
        $region54: #{tpu_custom_call.1} parent=43 // pred_check_branch
          %4682 = sbr.rel (%p4680) target = $region56
        $region55: #{tpu_custom_call.1} parent=43 // pred_region
          %s4683 = sand.u32 %s23, 1
          %s4684 = scalar_lea.sflag [#allocation6], %s4683
          %s4685 = sand.u32 %s130, 1
          %s4686 = scalar_lea.vmem [#allocation7], %s4685
          %4687 = dma.done %s4684, 16
        $region56: #{tpu_custom_call.1} parent=43 // pred_fallthru
          _
      $region44: #{tpu_custom_call.1} parent=5 // pred_fallthru
        _
    $region6: #{tpu_custom_call.1} parent=1 // loop_footer
      %s21 = sadd.s32 1, %s17
    $region7: #{tpu_custom_call.1} parent=1 // loop_footer_branch
      %16 = sbr.rel target = $region3
    $region8: #{tpu_custom_call.1} parent=1 // loop_exit
      _
    %4688 = vsyncpa [#allocation4], 1
    %s4689 = scalar_lea.sflag [#allocation4], 1
    %4690 = vsyncpa %s4689, 1
    %4691 = vsyncpa [#allocation6], 1
    %s4692 = scalar_lea.sflag [#allocation6], 1
    %4693 = vsyncpa %s4692, 1

</llo_original>
